<compile_context>
chip_gen: v6e
topology: v6e:2x2x1
jax: 0.10.0
libtpu: 0.0.40
codegen_flags: <defaults>
</compile_context>

<pallas_src>
import functools

import numpy as np
import jax
import jax.numpy as jnp
from jax import lax
from jax.experimental import pallas as pl
from jax.experimental.pallas import tpu as pltpu


def _to_pair(p):
    return (p, p) if isinstance(p, int) else tuple(p)


def _idx(start, count, stride):
    # Static contiguous slice when stride == 1 (module default / best lowering).
    if stride == 1:
        return slice(start, start + count)
    # TODO(synk): strided ref reads (stride > 1) on sublane/lane axes are
    # unvalidated on all generations; module default stride is [1, 1].
    return pl.ds(start, count, stride)


def _tile_bytes(shape, dtype):
    """VMEM bytes of a buffer after sublane/lane padding (conservative)."""
    itemsize = np.dtype(dtype).itemsize
    sub = 8 * max(1, 4 // itemsize)            # 8 rows for f32, 16 for bf16
    dims = list(shape)
    dims[-1] = -(-dims[-1] // 128) * 128
    if len(dims) >= 2:
        dims[-2] = -(-dims[-2] // sub) * sub
    return int(np.prod(dims)) * itemsize


def _conv_kernel(x_ref, w_ref, b_ref, o_ref, xwin_ref, pcol_ref, *,
                 kH, kW, sH, sW, dH, dW,
                 tH, W_out, Cin, halo, Bh_in, pad_l, pad_r, W_in, W_pad,
                 num_h_tiles, pad_value):
    """One (batch, cout-split, H-tile) grid step.

    x_ref    : (1, Bh_in, W_in, Cin)     unpadded input rows (NHWC, compute dtype)
    w_ref    : (Cout_blk, kH*kW*Cin)     flattened filter bank (tap-major)
    b_ref    : (Cout_blk, 1)             bias, f32
    o_ref    : (1, Cout_blk, tH*W_out)   lane-dense output block (NC(HW))
    xwin_ref : (halo+Bh_in, W_pad, Cin)  padded window scratch (carries halo)
    pcol_ref : (tH*W_out, kH*kW*Cin)     im2col patch scratch
    """
    t = pl.program_id(2)
    Mt = tH * W_out
    win_rows = halo + Bh_in

    # ConstantPad2d, done once per (batch, cout-split): fill only the top
    # (causal) halo rows and the left/right pad strips -- the interior is
    # overwritten by x_ref on every step.
    if halo > 0 or pad_l > 0 or pad_r > 0:
        @pl.when(t == 0)
        def _init():
            if halo > 0:
                xwin_ref[0:halo, :, :] = jnp.full(
                    (halo, W_pad, Cin), pad_value, xwin_ref.dtype)
            if pad_l > 0:
                xwin_ref[halo:win_rows, 0:pad_l, :] = jnp.full(
                    (Bh_in, pad_l, Cin), pad_value, xwin_ref.dtype)
            if pad_r > 0:
                xwin_ref[halo:win_rows, pad_l + W_in:W_pad, :] = jnp.full(
                    (Bh_in, pad_r, Cin), pad_value, xwin_ref.dtype)

    # Halo carry: last `halo` input rows of the previous H tile become the top
    # of this window.  Correct only because the H-tile axis is "arbitrary"
    # (sequential, innermost) -- do NOT mark it "parallel".
    if halo > 0 and num_h_tiles > 1:
        @pl.when(t > 0)
        def _carry():
            xwin_ref[0:halo] = xwin_ref[Bh_in:Bh_in + halo]

    # New input rows go below the halo, inside the left/right pad strips.
    xwin_ref[halo:halo + Bh_in, pad_l:pad_l + W_in, :] = (
        x_ref[0].astype(xwin_ref.dtype))

    # im2col: fold every (kh, kw) tap into the matmul K dimension.
    # TODO(synk): pcol is K-minor (padded to 128 lanes) and tap writes are
    # Cin-wide masked stores; a lane-dense (K, Mt) layout needs an in-kernel
    # (tH, W_out) -> Mt relayout and is left for a follow-up.
    for kh in range(kH):
        for kw in range(kW):
            patch = xwin_ref[_idx(kh * dH, tH, sH),
                             _idx(kw * dW, W_out, sW), :]      # (tH, W_out, Cin)
            col0 = (kh * kW + kw) * Cin
            pcol_ref[:, col0:col0 + Cin] = patch.reshape(Mt, Cin)

    # Single MXU matmul, result lane-dense along Mt, f32 accumulation.
    # TODO(synk): for tiny Cout/Cin the MXU is under-utilized; a
    # matmul_push_rhs weight-stationary variant could amortize the push.
    acc = lax.dot_general(
        w_ref[...], pcol_ref[...],
        dimension_numbers=(((1,), (1,)), ((), ())),
        preferred_element_type=jnp.float32)      # (Cout_blk, Mt)
    acc = acc + b_ref[...]                       # f32 bias epilogue
    o_ref[0] = acc.astype(o_ref.dtype)


def padded_conv2d(x_nchw, weight_oihw, bias, *, kernel_size, stride=(1, 1),
                  dilation=(1, 1), groups=1, pad_value=0.0,
                  compute_dtype=jnp.bfloat16, out_dtype=None, mt_cap=2048):
    """Pallas equivalent of Padded_Conv2d.forward (NCHW in, NCHW out)."""
    assert groups == 1  # TODO(synk): grouped conv not implemented (module default groups=1)

    kH, kW = _to_pair(kernel_size)
    sH, sW = _to_pair(stride)
    dH, dW = _to_pair(dilation)

    N, Cin, H, W = x_nchw.shape
    Cout = weight_oihw.shape[0]
    out_dtype = x_nchw.dtype if out_dtype is None else out_dtype

    # ConstantPad2d(padding=(left, right, top, bottom=0)):
    pad_l = (kW // 2) * dW
    pad_r = (kW - kW // 2 - 1) * dW
    pad_t = (kH - 1) * dH
    halo = pad_t                        # H halo carried between H tiles
    W_pad = W + pad_l + pad_r
    H_pad = H + pad_t

    H_out = (H_pad - dH * (kH - 1) - 1) // sH + 1
    W_out = (W_pad - dW * (kW - 1) - 1) // sW + 1
    K_total = kH * kW * Cin

    # v7x megacore: guarantee a >= 2-wide "parallel" axis when batch == 1 by
    # splitting Cout across a second parallel grid axis (needs Cout_blk % 8).
    CS = 2 if (N == 1 and Cout % 16 == 0) else 1
    Cout_blk = Cout // CS

    # Per-generation VMEM budget (v5e/v6e: 128 MiB, v7x: 64 MiB) with headroom.
    try:
        info = pltpu.get_tpu_info()
        phys = int(getattr(info, "vmem_capacity_bytes", 0)) or (64 << 20)
    except Exception:  # pragma: no cover - conservative fallback
        phys = 64 << 20
    budget = int(phys * 0.8)

    def est_bytes(tH_, Bh_):
        Mt_ = tH_ * W_out
        e = (2 * _tile_bytes((1, Bh_, W, Cin), compute_dtype)       # in (2-buf)
             + 2 * _tile_bytes((1, Cout_blk, Mt_), out_dtype)       # out (2-buf)
             + 2 * (_tile_bytes((Cout_blk, K_total), compute_dtype)
                    + _tile_bytes((Cout_blk, 1), jnp.float32))      # w, b
             + _tile_bytes((halo + Bh_, W_pad, Cin), compute_dtype) # window
             + _tile_bytes((Mt_, K_total), compute_dtype)           # im2col
             + _tile_bytes((Cout_blk, Mt_), jnp.float32)            # acc temp
             + _tile_bytes((tH_, W_out, Cin), compute_dtype))       # patch temp
        return int(1.4 * e)

    # --- H-tile search: LARGEST tile that keeps Mt a multiple of 128 (or the
    # full extent), covers the halo carry, tiles the input exactly and fits
    # the VMEM budget; soft cap at mt_cap lanes.
    cands = [(H_out, H)]                               # full extent, always valid
    if H_out * sH == H:
        for c in range(H_out - 1, 0, -1):
            if H_out % c:
                continue
            if (c * W_out) % 128:
                continue
            if halo > 0 and c * sH < halo:
                continue
            cands.append((c, c * sH))
    valid = [(c, b, est_bytes(c, b)) for (c, b) in cands]
    fitting = [v for v in valid if v[2] <= budget]
    if fitting:
        capped = [v for v in fitting if v[0] * W_out <= mt_cap]
        pick = (max(capped, key=lambda v: v[0]) if capped
                else min(fitting, key=lambda v: v[0]))
    else:
        pick = min(valid, key=lambda v: v[2])
    tH, Bh_in, _ = pick
    num_h_tiles = H_out // tH
    Mt = tH * W_out

    # Wrapper glue: one fused transpose+cast pass (NCHW -> NHWC, compute dtype)
    # and the (tiny) weight flattening to a dense 2-D slab (tap-major).
    x_nhwc = jnp.transpose(x_nchw, (0, 2, 3, 1)).astype(compute_dtype)
    w2 = jnp.transpose(weight_oihw, (0, 2, 3, 1)).reshape(Cout, K_total)
    w2 = w2.astype(compute_dtype)
    b2 = bias.reshape(Cout, 1).astype(jnp.float32)

    kernel = functools.partial(
        _conv_kernel, kH=kH, kW=kW, sH=sH, sW=sW, dH=dH, dW=dW,
        tH=tH, W_out=W_out, Cin=Cin, halo=halo, Bh_in=Bh_in,
        pad_l=pad_l, pad_r=pad_r, W_in=W, W_pad=W_pad,
        num_h_tiles=num_h_tiles, pad_value=float(pad_value))

    out_flat = pl.pallas_call(
        kernel,
        out_shape=jax.ShapeDtypeStruct((N, Cout, H_out * W_out), out_dtype),
        grid_spec=pltpu.PrefetchScalarGridSpec(
            num_scalar_prefetch=0,
            grid=(N, CS, num_h_tiles),
            in_specs=[
                pl.BlockSpec((1, Bh_in, W, Cin), lambda b, cs, t: (b, t, 0, 0)),
                pl.BlockSpec((Cout_blk, K_total), lambda b, cs, t: (cs, 0)),
                pl.BlockSpec((Cout_blk, 1), lambda b, cs, t: (cs, 0)),
            ],
            out_specs=pl.BlockSpec((1, Cout_blk, Mt), lambda b, cs, t: (b, cs, t)),
            scratch_shapes=[
                pltpu.VMEM((halo + Bh_in, W_pad, Cin), compute_dtype),
                pltpu.VMEM((Mt, K_total), compute_dtype),
            ],
        ),
        compiler_params=pltpu.CompilerParams(
            # The H-tile axis MUST stay "arbitrary": the window scratch carries
            # the halo rows between consecutive t steps of one batch element.
            dimension_semantics=("parallel", "parallel", "arbitrary"),
            vmem_limit_bytes=budget),
    )(x_nhwc, w2, b2)

    # Free metadata reshape back to NCHW.
    return out_flat.reshape(N, Cout, H_out, W_out)


def _reference(x_nchw, weight_oihw, bias, *, kernel_size, stride, dilation,
               pad_value, compute_dtype):
    """Pure-JAX reference with the same operand rounding / f32 accumulation."""
    kH, kW = _to_pair(kernel_size)
    sH, sW = _to_pair(stride)
    dH, dW = _to_pair(dilation)
    pad_l = (kW // 2) * dW
    pad_r = (kW - kW // 2 - 1) * dW
    pad_t = (kH - 1) * dH
    x_pad = jnp.pad(x_nchw, ((0, 0), (0, 0), (pad_t, 0), (pad_l, pad_r)),
                    mode="constant", constant_values=pad_value)
    x_pad = x_pad.astype(compute_dtype).astype(jnp.float32)
    w = weight_oihw.astype(compute_dtype).astype(jnp.float32)
    out = lax.conv_general_dilated(
        x_pad, w, window_strides=(sH, sW), padding="VALID",
        rhs_dilation=(dH, dW),
        dimension_numbers=("NCHW", "OIHW", "NCHW"),
        preferred_element_type=jnp.float32)
    return out + bias[None, :, None, None].astype(jnp.float32)


if __name__ == "__main__":
    def run_case(N, Cin, Cout, H, W, ksize, compute_dtype, rtol, atol):
        key = jax.random.PRNGKey(0)
        kx, kw_, kb = jax.random.split(key, 3)
        x = jax.random.normal(kx, (N, Cin, H, W), dtype=jnp.float32)
        fan_in = Cin * ksize * ksize
        bound = 1.0 / (fan_in ** 0.5)
        weight = jax.random.uniform(kw_, (Cout, Cin, ksize, ksize),
                                    minval=-bound, maxval=bound,
                                    dtype=jnp.float32)
        b = jax.random.uniform(kb, (Cout,), minval=-bound, maxval=bound,
                               dtype=jnp.float32)

        out = jax.block_until_ready(
            padded_conv2d(x, weight, b, kernel_size=ksize, stride=(1, 1),
                          dilation=(1, 1), pad_value=0.0,
                          compute_dtype=compute_dtype))
        ref = _reference(x, weight, b, kernel_size=ksize, stride=(1, 1),
                         dilation=(1, 1), pad_value=0.0,
                         compute_dtype=compute_dtype)
        assert out.shape == ref.shape, (out.shape, ref.shape)
        err = float(jnp.max(jnp.abs(out.astype(jnp.float32) - ref)))
        assert jnp.allclose(out.astype(jnp.float32), ref,
                            rtol=rtol, atol=atol), err

    # Shapes implied by the module: NCHW input, Conv2d(in=4, out=8, k=3).
    # 1) Hot path: bf16 MXU operands, f32 accumulate.
    run_case(2, 4, 8, 16, 16, 3, jnp.bfloat16, 1e-2, 1e-2)
    # 2) Exact-parity path: f32 end to end.
    run_case(2, 4, 8, 16, 16, 3, jnp.float32, 1e-4, 1e-4)
    # 3) Exercises the batch==1 Cout-split parallel axis and the H-tiled
    #    halo-carry path (H_out*W_out > mt_cap -> multiple H tiles per image).
    run_case(1, 4, 16, 128, 32, 3, jnp.bfloat16, 1e-2, 1e-2)

    print("KERNEL_OK")
</pallas_src>

<mosaic_0001>
module attributes {stable_mosaic.version = 11 : i64} {
  func.func @_conv_kernel(%arg0: i32, %arg1: i32, %arg2: i32, %arg3: memref<1x16x16x4xbf16, #tpu.memory_space<vmem>>, %arg4: memref<8x36xbf16, #tpu.memory_space<vmem>>, %arg5: memref<8x1xf32, #tpu.memory_space<vmem>>, %arg6: memref<1x8x256xf32, #tpu.memory_space<vmem>>, %arg7: memref<18x18x4xbf16, #tpu.memory_space<vmem>>, %arg8: memref<256x36xbf16, #tpu.memory_space<vmem>>) attributes {dimension_semantics = [#tpu.dimension_semantics<parallel>, #tpu.dimension_semantics<parallel>, #tpu.dimension_semantics<arbitrary>], iteration_bounds = array<i64: 2, 1, 1>, scalar_prefetch = 0 : i64, scratch_operands = 2 : i64, tpu.core_type = #tpu.core_type<tc>, window_params = [{transform_indices = @transform_0, window_bounds = array<i64: 1, 16, 16, 4>}, {transform_indices = @transform_1, window_bounds = array<i64: 8, 36>}, {transform_indices = @transform_2, window_bounds = array<i64: 8, 1>}, {transform_indices = @transform_3, window_bounds = array<i64: 1, 8, 256>}]} {
    %c0_i32 = arith.constant 0 : i32
    %0 = arith.cmpi eq, %arg2, %c0_i32 : i32
    %1 = arith.extui %0 : i1 to i32
    %c0_i32_0 = arith.constant 0 : i32
    %2 = arith.cmpi ne, %1, %c0_i32_0 : i32
    scf.if %2 {
      %cst_51 = arith.constant 0.000000e+00 : bf16
      %42 = vector.broadcast %cst_51 : bf16 to vector<2x18x4xbf16>
      %c0_52 = arith.constant 0 : index
      %c0_53 = arith.constant 0 : index
      %c0_54 = arith.constant 0 : index
      %43 = vector.load %arg7[%c0_52, %c0_53, %c0_54] : memref<18x18x4xbf16, #tpu.memory_space<vmem>>, vector<2x18x4xbf16>
      tpu.vector_store %arg7[%c0_52, %c0_53, %c0_54], %42 {strides = array<i32>} : memref<18x18x4xbf16, #tpu.memory_space<vmem>>, vector<2x18x4xbf16>,
      %cst_55 = arith.constant 0.000000e+00 : bf16
      %44 = vector.broadcast %cst_55 : bf16 to vector<16x1x4xbf16>
      %c2_56 = arith.constant 2 : index
      %c0_57 = arith.constant 0 : index
      %c0_58 = arith.constant 0 : index
      %45 = vector.load %arg7[%c2_56, %c0_57, %c0_58] : memref<18x18x4xbf16, #tpu.memory_space<vmem>>, vector<16x1x4xbf16>
      tpu.vector_store %arg7[%c2_56, %c0_57, %c0_58], %44 {strides = array<i32>} : memref<18x18x4xbf16, #tpu.memory_space<vmem>>, vector<16x1x4xbf16>,
      %cst_59 = arith.constant 0.000000e+00 : bf16
      %46 = vector.broadcast %cst_59 : bf16 to vector<16x1x4xbf16>
      %c2_60 = arith.constant 2 : index
      %c17 = arith.constant 17 : index
      %c0_61 = arith.constant 0 : index
      %47 = vector.load %arg7[%c2_60, %c17, %c0_61] : memref<18x18x4xbf16, #tpu.memory_space<vmem>>, vector<16x1x4xbf16>
      tpu.vector_store %arg7[%c2_60, %c17, %c0_61], %46 {strides = array<i32>} : memref<18x18x4xbf16, #tpu.memory_space<vmem>>, vector<16x1x4xbf16>,
    } else {
    }
    %c0 = arith.constant 0 : index
    %c0_1 = arith.constant 0 : index
    %c0_2 = arith.constant 0 : index
    %c0_3 = arith.constant 0 : index
    %3 = vector.load %arg3[%c0, %c0_1, %c0_2, %c0_3] : memref<1x16x16x4xbf16, #tpu.memory_space<vmem>>, vector<1x16x16x4xbf16>
    %4 = vector.shape_cast %3 : vector<1x16x16x4xbf16> to vector<16x16x4xbf16>
    %c2 = arith.constant 2 : index
    %c1 = arith.constant 1 : index
    %c0_4 = arith.constant 0 : index
    %5 = vector.load %arg7[%c2, %c1, %c0_4] : memref<18x18x4xbf16, #tpu.memory_space<vmem>>, vector<16x16x4xbf16>
    tpu.vector_store %arg7[%c2, %c1, %c0_4], %4 {strides = array<i32>} : memref<18x18x4xbf16, #tpu.memory_space<vmem>>, vector<16x16x4xbf16>,
    %c0_5 = arith.constant 0 : index
    %c0_6 = arith.constant 0 : index
    %c0_7 = arith.constant 0 : index
    %6 = vector.load %arg7[%c0_5, %c0_6, %c0_7] : memref<18x18x4xbf16, #tpu.memory_space<vmem>>, vector<16x16x4xbf16>
    %7 = vector.shape_cast %6 : vector<16x16x4xbf16> to vector<256x4xbf16>
    %c0_8 = arith.constant 0 : index
    %c0_9 = arith.constant 0 : index
    %8 = vector.load %arg8[%c0_8, %c0_9] : memref<256x36xbf16, #tpu.memory_space<vmem>>, vector<256x4xbf16>
    tpu.vector_store %arg8[%c0_8, %c0_9], %7 {strides = array<i32>} : memref<256x36xbf16, #tpu.memory_space<vmem>>, vector<256x4xbf16>,
    %c0_10 = arith.constant 0 : index
    %c1_11 = arith.constant 1 : index
    %c0_12 = arith.constant 0 : index
    %9 = vector.load %arg7[%c0_10, %c1_11, %c0_12] : memref<18x18x4xbf16, #tpu.memory_space<vmem>>, vector<16x16x4xbf16>
    %10 = vector.shape_cast %9 : vector<16x16x4xbf16> to vector<256x4xbf16>
    %c0_13 = arith.constant 0 : index
    %c4 = arith.constant 4 : index
    %11 = vector.load %arg8[%c0_13, %c4] : memref<256x36xbf16, #tpu.memory_space<vmem>>, vector<256x4xbf16>
    tpu.vector_store %arg8[%c0_13, %c4], %10 {strides = array<i32>} : memref<256x36xbf16, #tpu.memory_space<vmem>>, vector<256x4xbf16>,
    %c0_14 = arith.constant 0 : index
    %c2_15 = arith.constant 2 : index
    %c0_16 = arith.constant 0 : index
    %12 = vector.load %arg7[%c0_14, %c2_15, %c0_16] : memref<18x18x4xbf16, #tpu.memory_space<vmem>>, vector<16x16x4xbf16>
    %13 = vector.shape_cast %12 : vector<16x16x4xbf16> to vector<256x4xbf16>
    %c0_17 = arith.constant 0 : index
    %c8 = arith.constant 8 : index
    %14 = vector.load %arg8[%c0_17, %c8] : memref<256x36xbf16, #tpu.memory_space<vmem>>, vector<256x4xbf16>
    tpu.vector_store %arg8[%c0_17, %c8], %13 {strides = array<i32>} : memref<256x36xbf16, #tpu.memory_space<vmem>>, vector<256x4xbf16>,
    %c1_18 = arith.constant 1 : index
    %c0_19 = arith.constant 0 : index
    %c0_20 = arith.constant 0 : index
    %15 = vector.load %arg7[%c1_18, %c0_19, %c0_20] : memref<18x18x4xbf16, #tpu.memory_space<vmem>>, vector<16x16x4xbf16>
    %16 = vector.shape_cast %15 : vector<16x16x4xbf16> to vector<256x4xbf16>
    %c0_21 = arith.constant 0 : index
    %c12 = arith.constant 12 : index
    %17 = vector.load %arg8[%c0_21, %c12] : memref<256x36xbf16, #tpu.memory_space<vmem>>, vector<256x4xbf16>
    tpu.vector_store %arg8[%c0_21, %c12], %16 {strides = array<i32>} : memref<256x36xbf16, #tpu.memory_space<vmem>>, vector<256x4xbf16>,
    %c1_22 = arith.constant 1 : index
    %c1_23 = arith.constant 1 : index
    %c0_24 = arith.constant 0 : index
    %18 = vector.load %arg7[%c1_22, %c1_23, %c0_24] : memref<18x18x4xbf16, #tpu.memory_space<vmem>>, vector<16x16x4xbf16>
    %19 = vector.shape_cast %18 : vector<16x16x4xbf16> to vector<256x4xbf16>
    %c0_25 = arith.constant 0 : index
    %c16 = arith.constant 16 : index
    %20 = vector.load %arg8[%c0_25, %c16] : memref<256x36xbf16, #tpu.memory_space<vmem>>, vector<256x4xbf16>
    tpu.vector_store %arg8[%c0_25, %c16], %19 {strides = array<i32>} : memref<256x36xbf16, #tpu.memory_space<vmem>>, vector<256x4xbf16>,
    %c1_26 = arith.constant 1 : index
    %c2_27 = arith.constant 2 : index
    %c0_28 = arith.constant 0 : index
    %21 = vector.load %arg7[%c1_26, %c2_27, %c0_28] : memref<18x18x4xbf16, #tpu.memory_space<vmem>>, vector<16x16x4xbf16>
    %22 = vector.shape_cast %21 : vector<16x16x4xbf16> to vector<256x4xbf16>
    %c0_29 = arith.constant 0 : index
    %c20 = arith.constant 20 : index
    %23 = vector.load %arg8[%c0_29, %c20] : memref<256x36xbf16, #tpu.memory_space<vmem>>, vector<256x4xbf16>
    tpu.vector_store %arg8[%c0_29, %c20], %22 {strides = array<i32>} : memref<256x36xbf16, #tpu.memory_space<vmem>>, vector<256x4xbf16>,
    %c2_30 = arith.constant 2 : index
    %c0_31 = arith.constant 0 : index
    %c0_32 = arith.constant 0 : index
    %24 = vector.load %arg7[%c2_30, %c0_31, %c0_32] : memref<18x18x4xbf16, #tpu.memory_space<vmem>>, vector<16x16x4xbf16>
    %25 = vector.shape_cast %24 : vector<16x16x4xbf16> to vector<256x4xbf16>
    %c0_33 = arith.constant 0 : index
    %c24 = arith.constant 24 : index
    %26 = vector.load %arg8[%c0_33, %c24] : memref<256x36xbf16, #tpu.memory_space<vmem>>, vector<256x4xbf16>
    tpu.vector_store %arg8[%c0_33, %c24], %25 {strides = array<i32>} : memref<256x36xbf16, #tpu.memory_space<vmem>>, vector<256x4xbf16>,
    %c2_34 = arith.constant 2 : index
    %c1_35 = arith.constant 1 : index
    %c0_36 = arith.constant 0 : index
    %27 = vector.load %arg7[%c2_34, %c1_35, %c0_36] : memref<18x18x4xbf16, #tpu.memory_space<vmem>>, vector<16x16x4xbf16>
    %28 = vector.shape_cast %27 : vector<16x16x4xbf16> to vector<256x4xbf16>
    %c0_37 = arith.constant 0 : index
    %c28 = arith.constant 28 : index
    %29 = vector.load %arg8[%c0_37, %c28] : memref<256x36xbf16, #tpu.memory_space<vmem>>, vector<256x4xbf16>
    tpu.vector_store %arg8[%c0_37, %c28], %28 {strides = array<i32>} : memref<256x36xbf16, #tpu.memory_space<vmem>>, vector<256x4xbf16>,
    %c2_38 = arith.constant 2 : index
    %c2_39 = arith.constant 2 : index
    %c0_40 = arith.constant 0 : index
    %30 = vector.load %arg7[%c2_38, %c2_39, %c0_40] : memref<18x18x4xbf16, #tpu.memory_space<vmem>>, vector<16x16x4xbf16>
    %31 = vector.shape_cast %30 : vector<16x16x4xbf16> to vector<256x4xbf16>
    %c0_41 = arith.constant 0 : index
    %c32 = arith.constant 32 : index
    %32 = vector.load %arg8[%c0_41, %c32] : memref<256x36xbf16, #tpu.memory_space<vmem>>, vector<256x4xbf16>
    tpu.vector_store %arg8[%c0_41, %c32], %31 {strides = array<i32>} : memref<256x36xbf16, #tpu.memory_space<vmem>>, vector<256x4xbf16>,
    %c0_42 = arith.constant 0 : index
    %c0_43 = arith.constant 0 : index
    %33 = vector.load %arg4[%c0_42, %c0_43] : memref<8x36xbf16, #tpu.memory_space<vmem>>, vector<8x36xbf16>
    %c0_44 = arith.constant 0 : index
    %c0_45 = arith.constant 0 : index
    %34 = vector.load %arg8[%c0_44, %c0_45] : memref<256x36xbf16, #tpu.memory_space<vmem>>, vector<256x36xbf16>
    %cst = arith.constant dense<0.000000e+00> : vector<8x256xf32>
    %35 = tpu.matmul %33, %34, %cst {dimension_numbers = #tpu.dot_dimension_numbers<[1], [1], [0], [0], [0, 0, 1, 0], [], []>} : vector<8x36xbf16>, vector<256x36xbf16>, vector<8x256xf32> -> vector<8x256xf32>
    %c0_46 = arith.constant 0 : index
    %c0_47 = arith.constant 0 : index
    %36 = vector.load %arg5[%c0_46, %c0_47] : memref<8x1xf32, #tpu.memory_space<vmem>>, vector<8x1xf32>
    %37 = vector.broadcast %36 : vector<8x1xf32> to vector<8x256xf32>
    %38 = arith.addf %35, %37 : vector<8x256xf32>
    %c0_48 = arith.constant 0 : index
    %c0_49 = arith.constant 0 : index
    %c0_50 = arith.constant 0 : index
    %39 = vector.load %arg6[%c0_48, %c0_49, %c0_50] : memref<1x8x256xf32, #tpu.memory_space<vmem>>, vector<1x8x256xf32>
    %40 = vector.shape_cast %39 : vector<1x8x256xf32> to vector<8x256xf32>
    %41 = vector.shape_cast %38 : vector<8x256xf32> to vector<1x8x256xf32>
    tpu.vector_store %arg6[%c0_48, %c0_49, %c0_50], %41 {strides = array<i32>} : memref<1x8x256xf32, #tpu.memory_space<vmem>>, vector<1x8x256xf32>,
    return
  }
  func.func @transform_0(%arg0: i32, %arg1: i32, %arg2: i32) -> (i32, i32, i32, i32) {
    %c0_i32 = arith.constant 0 : i32
    %c0_i32_0 = arith.constant 0 : i32
    %c0_i32_1 = arith.constant 0 : i32
    return %arg0, %arg2, %c0_i32, %c0_i32_0 : i32, i32, i32, i32
  }
  func.func @transform_1(%arg0: i32, %arg1: i32, %arg2: i32) -> (i32, i32) {
    %c0_i32 = arith.constant 0 : i32
    %c0_i32_0 = arith.constant 0 : i32
    return %arg1, %c0_i32 : i32, i32
  }
  func.func @transform_2(%arg0: i32, %arg1: i32, %arg2: i32) -> (i32, i32) {
    %c0_i32 = arith.constant 0 : i32
    %c0_i32_0 = arith.constant 0 : i32
    return %arg1, %c0_i32 : i32, i32
  }
  func.func @transform_3(%arg0: i32, %arg1: i32, %arg2: i32) -> (i32, i32, i32) {
    %c0_i32 = arith.constant 0 : i32
    return %arg0, %arg1, %arg2 : i32, i32, i32
  }
}

</mosaic_0001>

<llo_original>
// kernel: tpu_custom_call.1
$region0: #{tpu_custom_call.1}
  #allocation0 [shape = 'u32[]', space=smem, size = 0x4, offset = 0x4, fixed_abs, tag = 'smem constant byte address 0x4 - core index']
  #allocation1 [shape = 'u32[144,128]{1,0:T(1,128)}', space=vmem, size = 0x12000, scoped, tag = 'internal scratch']
  #allocation2 [shape = 'bf16[18,18,4]{2,1,0:T(8,128)(2,1)}', space=vmem, size = 0x1b000, scoped, tag = 'scratch operand']
  #allocation3 [shape = 'bf16[256,36]{1,0:T(8,128)(2,1)}', space=vmem, size = 0x10000, scoped, tag = 'scratch operand']
  %s0 = inlined_call_operand.vmem [shape: bf16[2,16,16,4], index: 0, kind: input, shape index: {}]
  %s1 = inlined_call_operand.vmem [shape: bf16[8,36], index: 1, kind: input, shape index: {}]
  %s2 = inlined_call_operand.vmem [shape: f32[8,1], index: 2, kind: input, shape index: {}]
  %s3 = inlined_call_operand.hbm [shape: f32[2,8,256], index: 3, kind: output, shape index: {}]
  %s4 = sld [smem:[#allocation0]]
  $region49: #{tpu_custom_call.1} parent=0
    _
  %s6 = ssub.s32 1, %s4
  %s7 = scalar_select 0, %s6, %s4
  $region1: #{tpu_custom_call.1} parent=0
    #allocation4 [shape = 'u8[16384]{0}', space=vmem, size = 0x4000, scoped, tag = 'output window, operand 0']
    #allocation5 [shape = 's32[2]{0}', space=sflag, size = 0x8, scoped, tag = 'scoped memory for tpu_custom_call.1']
    %8 = vsyncpa [#allocation5], 0
    %s9 = scalar_lea.sflag [#allocation5], 1
    %10 = vsyncpa %s9, 0
    loop: start=0, step=1, limit=4
    $region2: #{tpu_custom_call.1} parent=1 // loop_pre_header
      _
    $region3: #{tpu_custom_call.1} parent=1 // loop_header
      %s12 = sphi 0, %s16
      %p13 = scmp.ge.s32.totalorder %s12, 4
      %s19 = sphi 0, %s38
      %s20 = sphi 0, %s34
      %s21 = sphi 0, %s30
      %s22 = sphi 0, %s19
      %s23 = sphi 0, %s20
      %s24 = sphi 0, %s21
      %s25 = sphi 0, %s22
      %s26 = sphi 0, %s23
      %s27 = sphi 0, %s24
      %s43 = sphi 0, %s45
      %s46 = sphi 0, %s43
      %s47 = sphi 0, %s46
      %s63 = sphi 0, %s47
      %s69 = sphi 0, %s71
      %s72 = sphi 0, %s69
      %s73 = sphi 0, %s72
      %s89 = sphi 0, %s73
      %s95 = sphi 0, %s97
      %s98 = sphi 0, %s95
      %s99 = sphi 0, %s98
      %s115 = sphi 0, %s99
      %s125 = sphi 0, %s127
      %s128 = sphi 0, %s125
      %s129 = sphi 0, %s128
      %s145 = sphi 0, %s129
    $region4: #{tpu_custom_call.1} parent=1 // loop_header_branch
      %15 = sbr.rel (%p13) target = $region8
    $region5: #{tpu_custom_call.1} parent=1 // loop_body
      %s17 = ssub.s32 %s12, 1
      %s18 = ssub.s32 %s12, 2
      %s28 = sadd.s32 1, %s21
      %p29 = scmp.ge.s32.totalorder %s28, 1
      %s30 = scalar_select %p29, 0, %s28
      %s31 = sadd.s32 1, %s20
      %s32 = scalar_select %p29, %s31, %s20
      %p33 = scmp.ge.s32.totalorder %s32, 1
      %s34 = scalar_select %p33, 0, %s32
      %s35 = sadd.s32 1, %s19
      %s36 = scalar_select %p33, %s35, %s19
      %p37 = scmp.ge.s32.totalorder %s36, 2
      %s38 = scalar_select %p37, 0, %s36
      %s39 = ssub.s32 %s19, %s38
      %s40 = ssub.s32 %s21, %s30
      %s41 = sor.u32 %s39, %s40
      %p42 = scmp.eq.s32.totalorder %s41, 0
      %s44 = sadd.s32 %s43, 1
      %s45 = scalar_select %p42, %s43, %s44
      %p48 = pneg %p42
      %p49 = scmp.eq.s32.totalorder %s12, 1
      %p50 = por %p48, %p49
      %p51 = scmp.ne.s32.totalorder %s43, %s46
      %p52 = scmp.eq.s32.totalorder %s12, 0
      %p53 = por %p51, %p52
      %p54 = scmp.ne.s32.totalorder %s43, %s46
      %p55 = scmp.eq.s32.totalorder %s17, 1
      %p56 = por %p54, %p55
      %p57 = scmp.ne.s32.totalorder %s46, %s47
      %p58 = scmp.eq.s32.totalorder %s17, 0
      %p59 = por %p57, %p58
      %p60 = scmp.ne.s32.totalorder %s46, %s47
      %p61 = scmp.eq.s32.totalorder %s18, 1
      %p62 = por %p60, %p61
      %p64 = scmp.ne.s32.totalorder %s47, %s63
      %p65 = scmp.eq.s32.totalorder %s18, 0
      %p66 = por %p64, %p65
      %s67 = ssub.s32 %s20, %s34
      %p68 = scmp.eq.s32.totalorder %s67, 0
      %s70 = sadd.s32 %s69, 1
      %s71 = scalar_select %p68, %s69, %s70
      %p74 = pneg %p68
      %p75 = scmp.eq.s32.totalorder %s12, 1
      %p76 = por %p74, %p75
      %p77 = scmp.ne.s32.totalorder %s69, %s72
      %p78 = scmp.eq.s32.totalorder %s12, 0
      %p79 = por %p77, %p78
      %p80 = scmp.ne.s32.totalorder %s69, %s72
      %p81 = scmp.eq.s32.totalorder %s17, 1
      %p82 = por %p80, %p81
      %p83 = scmp.ne.s32.totalorder %s72, %s73
      %p84 = scmp.eq.s32.totalorder %s17, 0
      %p85 = por %p83, %p84
      %p86 = scmp.ne.s32.totalorder %s72, %s73
      %p87 = scmp.eq.s32.totalorder %s18, 1
      %p88 = por %p86, %p87
      %p90 = scmp.ne.s32.totalorder %s73, %s89
      %p91 = scmp.eq.s32.totalorder %s18, 0
      %p92 = por %p90, %p91
      %s93 = ssub.s32 %s20, %s34
      %p94 = scmp.eq.s32.totalorder %s93, 0
      %s96 = sadd.s32 %s95, 1
      %s97 = scalar_select %p94, %s95, %s96
      %p100 = pneg %p94
      %p101 = scmp.eq.s32.totalorder %s12, 1
      %p102 = por %p100, %p101
      %p103 = scmp.ne.s32.totalorder %s95, %s98
      %p104 = scmp.eq.s32.totalorder %s12, 0
      %p105 = por %p103, %p104
      %p106 = scmp.ne.s32.totalorder %s95, %s98
      %p107 = scmp.eq.s32.totalorder %s17, 1
      %p108 = por %p106, %p107
      %p109 = scmp.ne.s32.totalorder %s98, %s99
      %p110 = scmp.eq.s32.totalorder %s17, 0
      %p111 = por %p109, %p110
      %p112 = scmp.ne.s32.totalorder %s98, %s99
      %p113 = scmp.eq.s32.totalorder %s18, 1
      %p114 = por %p112, %p113
      %p116 = scmp.ne.s32.totalorder %s99, %s115
      %p117 = scmp.eq.s32.totalorder %s18, 0
      %p118 = por %p116, %p117
      %s119 = ssub.s32 %s19, %s38
      %s120 = ssub.s32 %s20, %s34
      %s121 = sor.u32 %s119, %s120
      %s122 = ssub.s32 %s21, %s30
      %s123 = sor.u32 %s121, %s122
      %p124 = scmp.eq.s32.totalorder %s123, 0
      %s126 = sadd.s32 %s125, 1
      %s127 = scalar_select %p124, %s125, %s126
      %p130 = pneg %p124
      %p131 = scmp.eq.s32.totalorder %s12, 1
      %p132 = por %p130, %p131
      %p133 = scmp.ne.s32.totalorder %s125, %s128
      %p134 = scmp.eq.s32.totalorder %s12, 0
      %p135 = por %p133, %p134
      %p136 = scmp.ne.s32.totalorder %s125, %s128
      %p137 = scmp.eq.s32.totalorder %s17, 1
      %p138 = por %p136, %p137
      %p139 = scmp.ne.s32.totalorder %s128, %s129
      %p140 = scmp.eq.s32.totalorder %s17, 0
      %p141 = por %p139, %p140
      %p142 = scmp.ne.s32.totalorder %s128, %s129
      %p143 = scmp.eq.s32.totalorder %s18, 1
      %p144 = por %p142, %p143
      %p146 = scmp.ne.s32.totalorder %s129, %s145
      %p147 = scmp.eq.s32.totalorder %s18, 0
      %p148 = por %p146, %p147
      %p149 = scmp.le.s32.totalorder 1, %s12
      %p150 = scmp.lt.s32.totalorder %s12, 3
      %p151 = pnand %p149, %p150
      %p152 = pneg %p151
      // Predicated region
      $region9: #{tpu_custom_call.1} parent=5 // pred_check
        _
      $region10: #{tpu_custom_call.1} parent=5 // pred_check_branch
        %154 = sbr.rel (%p151) target = $region12
      $region11: #{tpu_custom_call.1} parent=5 // pred_region
        %s155 = ssub.s32 %s12, 1
        // Predicated region
        $region13: #{tpu_custom_call.1} parent=11 // pred_check
          %p156 = pneg %p85
        $region14: #{tpu_custom_call.1} parent=11 // pred_check_branch
          %158 = sbr.rel (%p156) target = $region16
        $region15: #{tpu_custom_call.1} parent=11 // pred_region
          %p159 = scmp.lt.s32.totalorder %s23, 0
          %s160 = scalar_select %p159, %s23, 0
          %s161 = smul.addr %s160, 4
          %s162 = scalar_lea.vmem %s1, %s161
        $region16: #{tpu_custom_call.1} parent=11 // pred_fallthru
          _
        // Predicated region
        $region17: #{tpu_custom_call.1} parent=11 // pred_check
          %p163 = pneg %p111
        $region18: #{tpu_custom_call.1} parent=11 // pred_check_branch
          %165 = sbr.rel (%p163) target = $region20
        $region19: #{tpu_custom_call.1} parent=11 // pred_region
          %p166 = scmp.lt.s32.totalorder %s23, 0
          %s167 = scalar_select %p166, %s23, 0
          %s168 = smul.addr %s167, 8
          %s169 = scalar_lea.vmem %s2, %s168
        $region20: #{tpu_custom_call.1} parent=11 // pred_fallthru
          _
      $region12: #{tpu_custom_call.1} parent=5 // pred_fallthru
        _
      %p170 = scmp.lt.s32.totalorder %s12, 2
      // Predicated region
      $region21: #{tpu_custom_call.1} parent=5 // pred_check
        %p171 = pneg %p170
      $region22: #{tpu_custom_call.1} parent=5 // pred_check_branch
        %173 = sbr.rel (%p171) target = $region24
      $region23: #{tpu_custom_call.1} parent=5 // pred_region
        // Predicated region
        $region25: #{tpu_custom_call.1} parent=23 // pred_check
          %p174 = pneg %p53
        $region26: #{tpu_custom_call.1} parent=23 // pred_check_branch
          %176 = sbr.rel (%p174) target = $region28
        $region27: #{tpu_custom_call.1} parent=23 // pred_region
          %s177 = smul.u32 16, %s21
          %p178 = scmp.lt.s32.totalorder %s19, 1
          %s179 = scalar_select %p178, %s19, 1
          %p180 = scmp.lt.s32.totalorder %s177, 15
          %s181 = scalar_select %p180, %s177, 15
          %s182 = smul.addr %s181, 2
          %s183 = smul.addr %s179, 32
          %s184 = sadd.s32 %s182, %s183
          %s185 = smul.addr %s184, 4
          %s186 = scalar_lea.vmem %s0, %s185
          %s187 = smul.u32 16, %s21
        $region28: #{tpu_custom_call.1} parent=23 // pred_fallthru
          _
      $region24: #{tpu_custom_call.1} parent=5 // pred_fallthru
        _
      %p188 = scmp.le.s32.totalorder 1, %s12
      %p189 = scmp.lt.s32.totalorder %s12, 3
      %p190 = pnand %p188, %p189
      %p191 = pneg %p190
      // Predicated region
      $region29: #{tpu_custom_call.1} parent=5 // pred_check
        _
      $region30: #{tpu_custom_call.1} parent=5 // pred_check_branch
        %193 = sbr.rel (%p190) target = $region32
      $region31: #{tpu_custom_call.1} parent=5 // pred_region
        %s194 = ssub.s32 %s12, 1
        %s195 = smul.u32 16, %s24
        %p196 = scmp.lt.s32.totalorder %s22, 1
        %s197 = scalar_select %p196, %s22, 1
        %p198 = scmp.lt.s32.totalorder %s195, 15
        %s199 = scalar_select %p198, %s195, 15
        %s200 = smul.addr %s199, 2
        %s201 = smul.addr %s197, 32
        %s202 = sadd.s32 %s200, %s201
        %s203 = smul.addr %s202, 4
        %s204 = scalar_lea.vmem %s0, %s203
        %p205 = pneg %p59
        %p206 = pneg %p56
        %p207 = scmp.lt.s32.totalorder %s23, 0
        %s208 = scalar_select %p207, %s23, 0
        %s209 = smul.addr %s208, 4
        %s210 = scalar_lea.vmem %s1, %s209
        %p211 = pneg %p85
        %p212 = pneg %p82
        %p213 = scmp.lt.s32.totalorder %s23, 0
        %s214 = scalar_select %p213, %s23, 0
        %s215 = smul.addr %s214, 8
        %s216 = scalar_lea.vmem %s2, %s215
        %p217 = pneg %p111
        %p218 = pneg %p108
        %p219 = pneg %p141
        %p220 = pneg %p138
        %s221 = sand.u32 %s128, 1
        %s222 = scalar_lea.sflag [#allocation5], %s221
        %s223 = sand.u32 %s128, 1
        %s224 = smul.addr %s223, 16
        %s225 = scalar_lea.vmem [#allocation4], %s224
        %s226 = smul.u32 16, %s24
        %p227 = scmp.lt.s32.totalorder %s22, 1
        %s228 = scalar_select %p227, %s22, 1
        %p229 = scmp.lt.s32.totalorder %s226, 15
        %s230 = scalar_select %p229, %s226, 15
        %s231 = smul.addr %s230, 2
        %s232 = smul.addr %s228, 32
        %s233 = sadd.s32 %s231, %s232
        %s234 = smul.addr %s233, 4
        %s235 = scalar_lea.vmem %s0, %s234
        %s236 = smul.u32 16, %s24
        %p237 = scmp.lt.s32.totalorder %s23, 0
        %s238 = scalar_select %p237, %s23, 0
        %s239 = smul.addr %s238, 4
        %s240 = scalar_lea.vmem %s1, %s239
        %p241 = scmp.lt.s32.totalorder %s23, 0
        %s242 = scalar_select %p241, %s23, 0
        %s243 = smul.addr %s242, 8
        %s244 = scalar_lea.vmem %s2, %s243
        %s245 = smul.u32 2, %s24
        %p247 = scmp.eq.s32.totalorder %s24, 0
        // Predicated region
        $region33: #{tpu_custom_call.1} parent=31 // pred_check
          %p248 = pneg %p247
        $region34: #{tpu_custom_call.1} parent=31 // pred_check_branch
          %250 = sbr.rel (%p248) target = $region36
        $region35: #{tpu_custom_call.1} parent=31 // pred_region
          %vm251 = vcmask 27648
          %252 = vst.msk [vmem:[#allocation2] sm:$0xf] %vm251, 0
          %253 = vst.msk [vmem:[#allocation2 + $0x4] sm:$0xf] %vm251, 0
          %vm254 = vcmask 24576
          %255 = vst.msk [vmem:[#allocation2 + $0x8] sm:$0x1] %vm254, 0
          %256 = vst.msk [vmem:[#allocation2 + $0xc] sm:$0xf] %vm251, 0
          %257 = vst.msk [vmem:[#allocation2 + $0x10] sm:$0xf] %vm251, 0
          %258 = vst.msk [vmem:[#allocation2 + $0x14] sm:$0x1] %vm254, 0
          %s259 = scalar_lea.vmem [#allocation2], 24
          %vm260 = vcmask 24576
          %vm261 = vsmask.f32 256
          %vm262 = vmand %vm260, %vm261
          %v263 = vld [vmem:[%s259] sm:$0x1]
          %v264 = vsel %vm262, 0, %v263
          %265 = vst [vmem:[%s259] sm:$0x1] %v264
          %v266 = vld [vmem:[%s259 + $0xc] sm:$0x1]
          %v267 = vsel %vm262, 0, %v266
          %268 = vst [vmem:[%s259 + $0xc] sm:$0x1] %v267
          %v269 = vld [vmem:[%s259 + $0x18] sm:$0x1]
          %v270 = vsel %vm262, 0, %v269
          %271 = vst [vmem:[%s259 + $0x18] sm:$0x1] %v270
          %v272 = vld [vmem:[%s259 + $0x24] sm:$0x1]
          %v273 = vsel %vm262, 0, %v272
          %274 = vst [vmem:[%s259 + $0x24] sm:$0x1] %v273
          %v275 = vld [vmem:[%s259 + $0x30] sm:$0x1]
          %v276 = vsel %vm262, 0, %v275
          %277 = vst [vmem:[%s259 + $0x30] sm:$0x1] %v276
          %v278 = vld [vmem:[%s259 + $0x3c] sm:$0x1]
          %v279 = vsel %vm262, 0, %v278
          %280 = vst [vmem:[%s259 + $0x3c] sm:$0x1] %v279
          %v281 = vld [vmem:[%s259 + $0x48] sm:$0x1]
          %v282 = vsel %vm262, 0, %v281
          %283 = vst [vmem:[%s259 + $0x48] sm:$0x1] %v282
          %v284 = vld [vmem:[%s259 + $0x54] sm:$0x1]
          %v285 = vsel %vm262, 0, %v284
          %286 = vst [vmem:[%s259 + $0x54] sm:$0x1] %v285
          %v287 = vld [vmem:[%s259 + $0x60] sm:$0x1]
          %v288 = vsel %vm262, 0, %v287
          %289 = vst [vmem:[%s259 + $0x60] sm:$0x1] %v288
          %v290 = vld [vmem:[%s259 + $0x6c] sm:$0x1]
          %v291 = vsel %vm262, 0, %v290
          %292 = vst [vmem:[%s259 + $0x6c] sm:$0x1] %v291
          %v293 = vld [vmem:[%s259 + $0x78] sm:$0x1]
          %v294 = vsel %vm262, 0, %v293
          %295 = vst [vmem:[%s259 + $0x78] sm:$0x1] %v294
          %v296 = vld [vmem:[%s259 + $0x84] sm:$0x1]
          %v297 = vsel %vm262, 0, %v296
          %298 = vst [vmem:[%s259 + $0x84] sm:$0x1] %v297
          %v299 = vld [vmem:[%s259 + $0x90] sm:$0x1]
          %v300 = vsel %vm262, 0, %v299
          %301 = vst [vmem:[%s259 + $0x90] sm:$0x1] %v300
          %v302 = vld [vmem:[%s259 + $0x9c] sm:$0x1]
          %v303 = vsel %vm262, 0, %v302
          %304 = vst [vmem:[%s259 + $0x9c] sm:$0x1] %v303
          %v305 = vld [vmem:[%s259 + $0xa8] sm:$0x1]
          %v306 = vsel %vm262, 0, %v305
          %307 = vst [vmem:[%s259 + $0xa8] sm:$0x1] %v306
          %v308 = vld [vmem:[%s259 + $0xb4] sm:$0x1]
          %v309 = vsel %vm262, 0, %v308
          %310 = vst [vmem:[%s259 + $0xb4] sm:$0x1] %v309
          %vm311 = vsmask.f32 7938
          %vm312 = vmand %vm260, %vm311
          %v313 = vld [vmem:[%s259 + $0x8] sm:$0x1]
          %v314 = vsel %vm312, 0, %v313
          %315 = vst [vmem:[%s259 + $0x8] sm:$0x1] %v314
          %v316 = vld [vmem:[%s259 + $0x14] sm:$0x1]
          %v317 = vsel %vm312, 0, %v316
          %318 = vst [vmem:[%s259 + $0x14] sm:$0x1] %v317
          %v319 = vld [vmem:[%s259 + $0x20] sm:$0x1]
          %v320 = vsel %vm312, 0, %v319
          %321 = vst [vmem:[%s259 + $0x20] sm:$0x1] %v320
          %v322 = vld [vmem:[%s259 + $0x2c] sm:$0x1]
          %v323 = vsel %vm312, 0, %v322
          %324 = vst [vmem:[%s259 + $0x2c] sm:$0x1] %v323
          %v325 = vld [vmem:[%s259 + $0x38] sm:$0x1]
          %v326 = vsel %vm312, 0, %v325
          %327 = vst [vmem:[%s259 + $0x38] sm:$0x1] %v326
          %v328 = vld [vmem:[%s259 + $0x44] sm:$0x1]
          %v329 = vsel %vm312, 0, %v328
          %330 = vst [vmem:[%s259 + $0x44] sm:$0x1] %v329
          %v331 = vld [vmem:[%s259 + $0x50] sm:$0x1]
          %v332 = vsel %vm312, 0, %v331
          %333 = vst [vmem:[%s259 + $0x50] sm:$0x1] %v332
          %v334 = vld [vmem:[%s259 + $0x5c] sm:$0x1]
          %v335 = vsel %vm312, 0, %v334
          %336 = vst [vmem:[%s259 + $0x5c] sm:$0x1] %v335
          %v337 = vld [vmem:[%s259 + $0x68] sm:$0x1]
          %v338 = vsel %vm312, 0, %v337
          %339 = vst [vmem:[%s259 + $0x68] sm:$0x1] %v338
          %v340 = vld [vmem:[%s259 + $0x74] sm:$0x1]
          %v341 = vsel %vm312, 0, %v340
          %342 = vst [vmem:[%s259 + $0x74] sm:$0x1] %v341
          %v343 = vld [vmem:[%s259 + $0x80] sm:$0x1]
          %v344 = vsel %vm312, 0, %v343
          %345 = vst [vmem:[%s259 + $0x80] sm:$0x1] %v344
          %v346 = vld [vmem:[%s259 + $0x8c] sm:$0x1]
          %v347 = vsel %vm312, 0, %v346
          %348 = vst [vmem:[%s259 + $0x8c] sm:$0x1] %v347
          %v349 = vld [vmem:[%s259 + $0x98] sm:$0x1]
          %v350 = vsel %vm312, 0, %v349
          %351 = vst [vmem:[%s259 + $0x98] sm:$0x1] %v350
          %v352 = vld [vmem:[%s259 + $0xa4] sm:$0x1]
          %v353 = vsel %vm312, 0, %v352
          %354 = vst [vmem:[%s259 + $0xa4] sm:$0x1] %v353
          %v355 = vld [vmem:[%s259 + $0xb0] sm:$0x1]
          %v356 = vsel %vm312, 0, %v355
          %357 = vst [vmem:[%s259 + $0xb0] sm:$0x1] %v356
          %v358 = vld [vmem:[%s259 + $0xbc] sm:$0x1]
          %v359 = vsel %vm312, 0, %v358
          %360 = vst [vmem:[%s259 + $0xbc] sm:$0x1] %v359
        $region36: #{tpu_custom_call.1} parent=31 // pred_fallthru
          _
        %v361 = vld [vmem:[%s235] sm:$0xf]
        %v362 = vld [vmem:[%s235 + $0x4] sm:$0xf]
        %v363 = vld [vmem:[%s235 + $0x8] sm:$0xf]
        %v364 = vld [vmem:[%s235 + $0xc] sm:$0xf]
        %v365 = vld [vmem:[%s235 + $0x10] sm:$0xf]
        %v366 = vld [vmem:[%s235 + $0x14] sm:$0xf]
        %v367 = vld [vmem:[%s235 + $0x18] sm:$0xf]
        %v368 = vld [vmem:[%s235 + $0x1c] sm:$0xf]
        %v369 = vld [vmem:[%s235 + $0x20] sm:$0xf]
        %v370 = vld [vmem:[%s235 + $0x24] sm:$0xf]
        %v371 = vld [vmem:[%s235 + $0x28] sm:$0xf]
        %v372 = vld [vmem:[%s235 + $0x2c] sm:$0xf]
        %v373 = vld [vmem:[%s235 + $0x30] sm:$0xf]
        %v374 = vld [vmem:[%s235 + $0x34] sm:$0xf]
        %v375 = vld [vmem:[%s235 + $0x38] sm:$0xf]
        %v376 = vld [vmem:[%s235 + $0x3c] sm:$0xf]
        %v377 = vld [vmem:[%s235 + $0x40] sm:$0xf]
        %v378 = vld [vmem:[%s235 + $0x44] sm:$0xf]
        %v379 = vld [vmem:[%s235 + $0x48] sm:$0xf]
        %v380 = vld [vmem:[%s235 + $0x4c] sm:$0xf]
        %v381 = vld [vmem:[%s235 + $0x50] sm:$0xf]
        %v382 = vld [vmem:[%s235 + $0x54] sm:$0xf]
        %v383 = vld [vmem:[%s235 + $0x58] sm:$0xf]
        %v384 = vld [vmem:[%s235 + $0x5c] sm:$0xf]
        %v385 = vld [vmem:[%s235 + $0x60] sm:$0xf]
        %v386 = vld [vmem:[%s235 + $0x64] sm:$0xf]
        %v387 = vld [vmem:[%s235 + $0x68] sm:$0xf]
        %v388 = vld [vmem:[%s235 + $0x6c] sm:$0xf]
        %v389 = vld [vmem:[%s235 + $0x70] sm:$0xf]
        %v390 = vld [vmem:[%s235 + $0x74] sm:$0xf]
        %v391 = vld [vmem:[%s235 + $0x78] sm:$0xf]
        %v392 = vld [vmem:[%s235 + $0x7c] sm:$0xf]
        %vm393 = vsmask.f32 256
        %vm394 = vsmask.f32 4368
        %vm395 = vmor %vm393, %vm394
        %v397 = vshrl.u32 %v361, 16
        %v399 = vrot.slane %v397, 7
        %v400 = vshll.u32 %v361, 16
        %v402 = vor.u32 %v399, %v400
        %v403 = vrot.slane %v399, 4
        %v405 = vshrl.u32 %v362, 16
        %v407 = vrot.slane %v405, 7
        %v408 = vshll.u32 %v362, 16
        %v410 = vor.u32 %v407, %v408
        %v411 = vsel %vm395, %v403, %v410
        %v412 = vrot.slane %v407, 4
        %v414 = vshrl.u32 %v363, 16
        %v416 = vrot.slane %v414, 7
        %v417 = vshll.u32 %v363, 16
        %v419 = vor.u32 %v416, %v417
        %v420 = vrot.slane %v416, 4
        %v422 = vshrl.u32 %v364, 16
        %v424 = vrot.slane %v422, 7
        %v425 = vshll.u32 %v364, 16
        %v427 = vor.u32 %v424, %v425
        %v428 = vsel %vm395, %v420, %v427
        %v429 = vrot.slane %v424, 4
        %v431 = vshrl.u32 %v365, 16
        %v433 = vrot.slane %v431, 7
        %v434 = vshll.u32 %v365, 16
        %v436 = vor.u32 %v433, %v434
        %v437 = vrot.slane %v433, 4
        %v439 = vshrl.u32 %v366, 16
        %v441 = vrot.slane %v439, 7
        %v442 = vshll.u32 %v366, 16
        %v444 = vor.u32 %v441, %v442
        %v445 = vsel %vm395, %v437, %v444
        %v446 = vrot.slane %v441, 4
        %v448 = vshrl.u32 %v367, 16
        %v450 = vrot.slane %v448, 7
        %v451 = vshll.u32 %v367, 16
        %v453 = vor.u32 %v450, %v451
        %v454 = vrot.slane %v450, 4
        %v456 = vshrl.u32 %v368, 16
        %v458 = vrot.slane %v456, 7
        %v459 = vshll.u32 %v368, 16
        %v461 = vor.u32 %v458, %v459
        %v462 = vsel %vm395, %v454, %v461
        %v463 = vrot.slane %v458, 4
        %v465 = vshrl.u32 %v369, 16
        %v467 = vrot.slane %v465, 7
        %v468 = vshll.u32 %v369, 16
        %v470 = vor.u32 %v467, %v468
        %v471 = vrot.slane %v467, 4
        %v473 = vshrl.u32 %v370, 16
        %v475 = vrot.slane %v473, 7
        %v476 = vshll.u32 %v370, 16
        %v478 = vor.u32 %v475, %v476
        %v479 = vsel %vm395, %v471, %v478
        %v480 = vrot.slane %v475, 4
        %v482 = vshrl.u32 %v371, 16
        %v484 = vrot.slane %v482, 7
        %v485 = vshll.u32 %v371, 16
        %v487 = vor.u32 %v484, %v485
        %v488 = vrot.slane %v484, 4
        %v490 = vshrl.u32 %v372, 16
        %v492 = vrot.slane %v490, 7
        %v493 = vshll.u32 %v372, 16
        %v495 = vor.u32 %v492, %v493
        %v496 = vsel %vm395, %v488, %v495
        %v497 = vrot.slane %v492, 4
        %v499 = vshrl.u32 %v373, 16
        %v501 = vrot.slane %v499, 7
        %v502 = vshll.u32 %v373, 16
        %v504 = vor.u32 %v501, %v502
        %v505 = vrot.slane %v501, 4
        %v507 = vshrl.u32 %v374, 16
        %v509 = vrot.slane %v507, 7
        %v510 = vshll.u32 %v374, 16
        %v512 = vor.u32 %v509, %v510
        %v513 = vsel %vm395, %v505, %v512
        %v514 = vrot.slane %v509, 4
        %v516 = vshrl.u32 %v375, 16
        %v518 = vrot.slane %v516, 7
        %v519 = vshll.u32 %v375, 16
        %v521 = vor.u32 %v518, %v519
        %v522 = vrot.slane %v518, 4
        %v524 = vshrl.u32 %v376, 16
        %v526 = vrot.slane %v524, 7
        %v527 = vshll.u32 %v376, 16
        %v529 = vor.u32 %v526, %v527
        %v530 = vsel %vm395, %v522, %v529
        %v531 = vrot.slane %v526, 4
        %v533 = vshrl.u32 %v377, 16
        %v535 = vrot.slane %v533, 7
        %v536 = vshll.u32 %v377, 16
        %v538 = vor.u32 %v535, %v536
        %v539 = vrot.slane %v535, 4
        %v541 = vshrl.u32 %v378, 16
        %v543 = vrot.slane %v541, 7
        %v544 = vshll.u32 %v378, 16
        %v546 = vor.u32 %v543, %v544
        %v547 = vsel %vm395, %v539, %v546
        %v548 = vrot.slane %v543, 4
        %v550 = vshrl.u32 %v379, 16
        %v552 = vrot.slane %v550, 7
        %v553 = vshll.u32 %v379, 16
        %v555 = vor.u32 %v552, %v553
        %v556 = vrot.slane %v552, 4
        %v558 = vshrl.u32 %v380, 16
        %v560 = vrot.slane %v558, 7
        %v561 = vshll.u32 %v380, 16
        %v563 = vor.u32 %v560, %v561
        %v564 = vsel %vm395, %v556, %v563
        %v565 = vrot.slane %v560, 4
        %v567 = vshrl.u32 %v381, 16
        %v569 = vrot.slane %v567, 7
        %v570 = vshll.u32 %v381, 16
        %v572 = vor.u32 %v569, %v570
        %v573 = vrot.slane %v569, 4
        %v575 = vshrl.u32 %v382, 16
        %v577 = vrot.slane %v575, 7
        %v578 = vshll.u32 %v382, 16
        %v580 = vor.u32 %v577, %v578
        %v581 = vsel %vm395, %v573, %v580
        %v582 = vrot.slane %v577, 4
        %v584 = vshrl.u32 %v383, 16
        %v586 = vrot.slane %v584, 7
        %v587 = vshll.u32 %v383, 16
        %v589 = vor.u32 %v586, %v587
        %v590 = vrot.slane %v586, 4
        %v592 = vshrl.u32 %v384, 16
        %v594 = vrot.slane %v592, 7
        %v595 = vshll.u32 %v384, 16
        %v597 = vor.u32 %v594, %v595
        %v598 = vsel %vm395, %v590, %v597
        %v599 = vrot.slane %v594, 4
        %v601 = vshrl.u32 %v385, 16
        %v603 = vrot.slane %v601, 7
        %v604 = vshll.u32 %v385, 16
        %v606 = vor.u32 %v603, %v604
        %v607 = vrot.slane %v603, 4
        %v609 = vshrl.u32 %v386, 16
        %v611 = vrot.slane %v609, 7
        %v612 = vshll.u32 %v386, 16
        %v614 = vor.u32 %v611, %v612
        %v615 = vsel %vm395, %v607, %v614
        %v616 = vrot.slane %v611, 4
        %v618 = vshrl.u32 %v387, 16
        %v620 = vrot.slane %v618, 7
        %v621 = vshll.u32 %v387, 16
        %v623 = vor.u32 %v620, %v621
        %v624 = vrot.slane %v620, 4
        %v626 = vshrl.u32 %v388, 16
        %v628 = vrot.slane %v626, 7
        %v629 = vshll.u32 %v388, 16
        %v631 = vor.u32 %v628, %v629
        %v632 = vsel %vm395, %v624, %v631
        %v633 = vrot.slane %v628, 4
        %v635 = vshrl.u32 %v389, 16
        %v637 = vrot.slane %v635, 7
        %v638 = vshll.u32 %v389, 16
        %v640 = vor.u32 %v637, %v638
        %v641 = vrot.slane %v637, 4
        %v643 = vshrl.u32 %v390, 16
        %v645 = vrot.slane %v643, 7
        %v646 = vshll.u32 %v390, 16
        %v648 = vor.u32 %v645, %v646
        %v649 = vsel %vm395, %v641, %v648
        %v650 = vrot.slane %v645, 4
        %v652 = vshrl.u32 %v391, 16
        %v654 = vrot.slane %v652, 7
        %v655 = vshll.u32 %v391, 16
        %v657 = vor.u32 %v654, %v655
        %v658 = vrot.slane %v654, 4
        %v660 = vshrl.u32 %v392, 16
        %v662 = vrot.slane %v660, 7
        %v663 = vshll.u32 %v392, 16
        %v665 = vor.u32 %v662, %v663
        %v666 = vsel %vm395, %v658, %v665
        %v667 = vrot.slane %v662, 4
        %s716 = scalar_lea.vmem [#allocation2], 24
        %vm717 = vcmask 27648
        %vm718 = vsmask.f32 7938
        %vm719 = vmand %vm717, %vm718
        %v720 = vld [vmem:[%s716] sm:$0xf]
        %v721 = vsel %vm719, %v402, %v720
        %722 = vst [vmem:[%s716] sm:$0xf] %v721
        %vm723 = vcmask 27648
        %724 = vst.msk [vmem:[%s716 + $0x4] sm:$0xf] %vm723, %v411
        %vm725 = vcmask 24576
        %vm726 = vmand %vm725, %vm393
        %v727 = vld [vmem:[%s716 + $0x8] sm:$0x1]
        %v728 = vsel %vm726, %v412, %v727
        %729 = vst [vmem:[%s716 + $0x8] sm:$0x1] %v728
        %v730 = vld [vmem:[%s716 + $0xc] sm:$0xf]
        %v731 = vsel %vm719, %v419, %v730
        %732 = vst [vmem:[%s716 + $0xc] sm:$0xf] %v731
        %733 = vst.msk [vmem:[%s716 + $0x10] sm:$0xf] %vm723, %v428
        %v734 = vld [vmem:[%s716 + $0x14] sm:$0x1]
        %v735 = vsel %vm726, %v429, %v734
        %736 = vst [vmem:[%s716 + $0x14] sm:$0x1] %v735
        %v737 = vld [vmem:[%s716 + $0x18] sm:$0xf]
        %v738 = vsel %vm719, %v436, %v737
        %739 = vst [vmem:[%s716 + $0x18] sm:$0xf] %v738
        %740 = vst.msk [vmem:[%s716 + $0x1c] sm:$0xf] %vm723, %v445
        %v741 = vld [vmem:[%s716 + $0x20] sm:$0x1]
        %v742 = vsel %vm726, %v446, %v741
        %743 = vst [vmem:[%s716 + $0x20] sm:$0x1] %v742
        %v744 = vld [vmem:[%s716 + $0x24] sm:$0xf]
        %v745 = vsel %vm719, %v453, %v744
        %746 = vst [vmem:[%s716 + $0x24] sm:$0xf] %v745
        %747 = vst.msk [vmem:[%s716 + $0x28] sm:$0xf] %vm723, %v462
        %v748 = vld [vmem:[%s716 + $0x2c] sm:$0x1]
        %v749 = vsel %vm726, %v463, %v748
        %750 = vst [vmem:[%s716 + $0x2c] sm:$0x1] %v749
        %v751 = vld [vmem:[%s716 + $0x30] sm:$0xf]
        %v752 = vsel %vm719, %v470, %v751
        %753 = vst [vmem:[%s716 + $0x30] sm:$0xf] %v752
        %754 = vst.msk [vmem:[%s716 + $0x34] sm:$0xf] %vm723, %v479
        %v755 = vld [vmem:[%s716 + $0x38] sm:$0x1]
        %v756 = vsel %vm726, %v480, %v755
        %757 = vst [vmem:[%s716 + $0x38] sm:$0x1] %v756
        %v758 = vld [vmem:[%s716 + $0x3c] sm:$0xf]
        %v759 = vsel %vm719, %v487, %v758
        %760 = vst [vmem:[%s716 + $0x3c] sm:$0xf] %v759
        %761 = vst.msk [vmem:[%s716 + $0x40] sm:$0xf] %vm723, %v496
        %v762 = vld [vmem:[%s716 + $0x44] sm:$0x1]
        %v763 = vsel %vm726, %v497, %v762
        %764 = vst [vmem:[%s716 + $0x44] sm:$0x1] %v763
        %v765 = vld [vmem:[%s716 + $0x48] sm:$0xf]
        %v766 = vsel %vm719, %v504, %v765
        %767 = vst [vmem:[%s716 + $0x48] sm:$0xf] %v766
        %768 = vst.msk [vmem:[%s716 + $0x4c] sm:$0xf] %vm723, %v513
        %v769 = vld [vmem:[%s716 + $0x50] sm:$0x1]
        %v770 = vsel %vm726, %v514, %v769
        %771 = vst [vmem:[%s716 + $0x50] sm:$0x1] %v770
        %v772 = vld [vmem:[%s716 + $0x54] sm:$0xf]
        %v773 = vsel %vm719, %v521, %v772
        %774 = vst [vmem:[%s716 + $0x54] sm:$0xf] %v773
        %775 = vst.msk [vmem:[%s716 + $0x58] sm:$0xf] %vm723, %v530
        %v776 = vld [vmem:[%s716 + $0x5c] sm:$0x1]
        %v777 = vsel %vm726, %v531, %v776
        %778 = vst [vmem:[%s716 + $0x5c] sm:$0x1] %v777
        %v779 = vld [vmem:[%s716 + $0x60] sm:$0xf]
        %v780 = vsel %vm719, %v538, %v779
        %781 = vst [vmem:[%s716 + $0x60] sm:$0xf] %v780
        %782 = vst.msk [vmem:[%s716 + $0x64] sm:$0xf] %vm723, %v547
        %v783 = vld [vmem:[%s716 + $0x68] sm:$0x1]
        %v784 = vsel %vm726, %v548, %v783
        %785 = vst [vmem:[%s716 + $0x68] sm:$0x1] %v784
        %v786 = vld [vmem:[%s716 + $0x6c] sm:$0xf]
        %v787 = vsel %vm719, %v555, %v786
        %788 = vst [vmem:[%s716 + $0x6c] sm:$0xf] %v787
        %789 = vst.msk [vmem:[%s716 + $0x70] sm:$0xf] %vm723, %v564
        %v790 = vld [vmem:[%s716 + $0x74] sm:$0x1]
        %v791 = vsel %vm726, %v565, %v790
        %792 = vst [vmem:[%s716 + $0x74] sm:$0x1] %v791
        %v793 = vld [vmem:[%s716 + $0x78] sm:$0xf]
        %v794 = vsel %vm719, %v572, %v793
        %795 = vst [vmem:[%s716 + $0x78] sm:$0xf] %v794
        %796 = vst.msk [vmem:[%s716 + $0x7c] sm:$0xf] %vm723, %v581
        %v797 = vld [vmem:[%s716 + $0x80] sm:$0x1]
        %v798 = vsel %vm726, %v582, %v797
        %799 = vst [vmem:[%s716 + $0x80] sm:$0x1] %v798
        %v800 = vld [vmem:[%s716 + $0x84] sm:$0xf]
        %v801 = vsel %vm719, %v589, %v800
        %802 = vst [vmem:[%s716 + $0x84] sm:$0xf] %v801
        %803 = vst.msk [vmem:[%s716 + $0x88] sm:$0xf] %vm723, %v598
        %v804 = vld [vmem:[%s716 + $0x8c] sm:$0x1]
        %v805 = vsel %vm726, %v599, %v804
        %806 = vst [vmem:[%s716 + $0x8c] sm:$0x1] %v805
        %v807 = vld [vmem:[%s716 + $0x90] sm:$0xf]
        %v808 = vsel %vm719, %v606, %v807
        %809 = vst [vmem:[%s716 + $0x90] sm:$0xf] %v808
        %810 = vst.msk [vmem:[%s716 + $0x94] sm:$0xf] %vm723, %v615
        %v811 = vld [vmem:[%s716 + $0x98] sm:$0x1]
        %v812 = vsel %vm726, %v616, %v811
        %813 = vst [vmem:[%s716 + $0x98] sm:$0x1] %v812
        %v814 = vld [vmem:[%s716 + $0x9c] sm:$0xf]
        %v815 = vsel %vm719, %v623, %v814
        %816 = vst [vmem:[%s716 + $0x9c] sm:$0xf] %v815
        %817 = vst.msk [vmem:[%s716 + $0xa0] sm:$0xf] %vm723, %v632
        %v818 = vld [vmem:[%s716 + $0xa4] sm:$0x1]
        %v819 = vsel %vm726, %v633, %v818
        %820 = vst [vmem:[%s716 + $0xa4] sm:$0x1] %v819
        %v821 = vld [vmem:[%s716 + $0xa8] sm:$0xf]
        %v822 = vsel %vm719, %v640, %v821
        %823 = vst [vmem:[%s716 + $0xa8] sm:$0xf] %v822
        %824 = vst.msk [vmem:[%s716 + $0xac] sm:$0xf] %vm723, %v649
        %v825 = vld [vmem:[%s716 + $0xb0] sm:$0x1]
        %v826 = vsel %vm726, %v650, %v825
        %827 = vst [vmem:[%s716 + $0xb0] sm:$0x1] %v826
        %v828 = vld [vmem:[%s716 + $0xb4] sm:$0xf]
        %v829 = vsel %vm719, %v657, %v828
        %830 = vst [vmem:[%s716 + $0xb4] sm:$0xf] %v829
        %831 = vst.msk [vmem:[%s716 + $0xb8] sm:$0xf] %vm723, %v666
        %v832 = vld [vmem:[%s716 + $0xbc] sm:$0x1]
        %v833 = vsel %vm726, %v667, %v832
        %834 = vst [vmem:[%s716 + $0xbc] sm:$0x1] %v833
        %v835 = vld [vmem:[#allocation2] sm:$0xf]
        %v836 = vld [vmem:[#allocation2 + $0x4] sm:$0xf]
        %v837 = vld [vmem:[#allocation2 + $0xc] sm:$0xf]
        %v838 = vld [vmem:[#allocation2 + $0x10] sm:$0xf]
        %v839 = vld [vmem:[#allocation2 + $0x18] sm:$0xf]
        %v840 = vld [vmem:[#allocation2 + $0x1c] sm:$0xf]
        %v841 = vld [vmem:[#allocation2 + $0x24] sm:$0xf]
        %v842 = vld [vmem:[#allocation2 + $0x28] sm:$0xf]
        %v843 = vld [vmem:[#allocation2 + $0x30] sm:$0xf]
        %v844 = vld [vmem:[#allocation2 + $0x34] sm:$0xf]
        %v845 = vld [vmem:[#allocation2 + $0x3c] sm:$0xf]
        %v846 = vld [vmem:[#allocation2 + $0x40] sm:$0xf]
        %v847 = vld [vmem:[#allocation2 + $0x48] sm:$0xf]
        %v848 = vld [vmem:[#allocation2 + $0x4c] sm:$0xf]
        %v849 = vld [vmem:[#allocation2 + $0x54] sm:$0xf]
        %v850 = vld [vmem:[#allocation2 + $0x58] sm:$0xf]
        %v851 = vld [vmem:[#allocation2 + $0x60] sm:$0xf]
        %v852 = vld [vmem:[#allocation2 + $0x64] sm:$0xf]
        %v853 = vld [vmem:[#allocation2 + $0x6c] sm:$0xf]
        %v854 = vld [vmem:[#allocation2 + $0x70] sm:$0xf]
        %v855 = vld [vmem:[#allocation2 + $0x78] sm:$0xf]
        %v856 = vld [vmem:[#allocation2 + $0x7c] sm:$0xf]
        %v857 = vld [vmem:[#allocation2 + $0x84] sm:$0xf]
        %v858 = vld [vmem:[#allocation2 + $0x88] sm:$0xf]
        %v859 = vld [vmem:[#allocation2 + $0x90] sm:$0xf]
        %v860 = vld [vmem:[#allocation2 + $0x94] sm:$0xf]
        %v861 = vld [vmem:[#allocation2 + $0x9c] sm:$0xf]
        %v862 = vld [vmem:[#allocation2 + $0xa0] sm:$0xf]
        %v863 = vld [vmem:[#allocation2 + $0xa8] sm:$0xf]
        %v864 = vld [vmem:[#allocation2 + $0xac] sm:$0xf]
        %v865 = vld [vmem:[#allocation2 + $0xb4] sm:$0xf]
        %v866 = vld [vmem:[#allocation2 + $0xb8] sm:$0xf]
        %867 = vst.msk [vmem:[#allocation3] sm:$0xf] %vm723, %v835
        %868 = vst.msk [vmem:[#allocation3 + $0x4] sm:$0xf] %vm723, %v836
        %869 = vst.msk [vmem:[#allocation3 + $0x8] sm:$0xf] %vm723, %v837
        %870 = vst.msk [vmem:[#allocation3 + $0xc] sm:$0xf] %vm723, %v838
        %871 = vst.msk [vmem:[#allocation3 + $0x10] sm:$0xf] %vm723, %v839
        %872 = vst.msk [vmem:[#allocation3 + $0x14] sm:$0xf] %vm723, %v840
        %873 = vst.msk [vmem:[#allocation3 + $0x18] sm:$0xf] %vm723, %v841
        %874 = vst.msk [vmem:[#allocation3 + $0x1c] sm:$0xf] %vm723, %v842
        %875 = vst.msk [vmem:[#allocation3 + $0x20] sm:$0xf] %vm723, %v843
        %876 = vst.msk [vmem:[#allocation3 + $0x24] sm:$0xf] %vm723, %v844
        %877 = vst.msk [vmem:[#allocation3 + $0x28] sm:$0xf] %vm723, %v845
        %878 = vst.msk [vmem:[#allocation3 + $0x2c] sm:$0xf] %vm723, %v846
        %879 = vst.msk [vmem:[#allocation3 + $0x30] sm:$0xf] %vm723, %v847
        %880 = vst.msk [vmem:[#allocation3 + $0x34] sm:$0xf] %vm723, %v848
        %881 = vst.msk [vmem:[#allocation3 + $0x38] sm:$0xf] %vm723, %v849
        %882 = vst.msk [vmem:[#allocation3 + $0x3c] sm:$0xf] %vm723, %v850
        %883 = vst.msk [vmem:[#allocation3 + $0x40] sm:$0xf] %vm723, %v851
        %884 = vst.msk [vmem:[#allocation3 + $0x44] sm:$0xf] %vm723, %v852
        %885 = vst.msk [vmem:[#allocation3 + $0x48] sm:$0xf] %vm723, %v853
        %886 = vst.msk [vmem:[#allocation3 + $0x4c] sm:$0xf] %vm723, %v854
        %887 = vst.msk [vmem:[#allocation3 + $0x50] sm:$0xf] %vm723, %v855
        %888 = vst.msk [vmem:[#allocation3 + $0x54] sm:$0xf] %vm723, %v856
        %889 = vst.msk [vmem:[#allocation3 + $0x58] sm:$0xf] %vm723, %v857
        %890 = vst.msk [vmem:[#allocation3 + $0x5c] sm:$0xf] %vm723, %v858
        %891 = vst.msk [vmem:[#allocation3 + $0x60] sm:$0xf] %vm723, %v859
        %892 = vst.msk [vmem:[#allocation3 + $0x64] sm:$0xf] %vm723, %v860
        %893 = vst.msk [vmem:[#allocation3 + $0x68] sm:$0xf] %vm723, %v861
        %894 = vst.msk [vmem:[#allocation3 + $0x6c] sm:$0xf] %vm723, %v862
        %895 = vst.msk [vmem:[#allocation3 + $0x70] sm:$0xf] %vm723, %v863
        %896 = vst.msk [vmem:[#allocation3 + $0x74] sm:$0xf] %vm723, %v864
        %897 = vst.msk [vmem:[#allocation3 + $0x78] sm:$0xf] %vm723, %v865
        %898 = vst.msk [vmem:[#allocation3 + $0x7c] sm:$0xf] %vm723, %v866
        %v899 = vld [vmem:[#allocation2] sm:$0xf]
        %v900 = vld [vmem:[#allocation2 + $0x4] sm:$0xf]
        %v901 = vld [vmem:[#allocation2 + $0x8] sm:$0x1]
        %v902 = vld [vmem:[#allocation2 + $0xc] sm:$0xf]
        %v903 = vld [vmem:[#allocation2 + $0x10] sm:$0xf]
        %v904 = vld [vmem:[#allocation2 + $0x14] sm:$0x1]
        %v905 = vld [vmem:[#allocation2 + $0x18] sm:$0xf]
        %v906 = vld [vmem:[#allocation2 + $0x1c] sm:$0xf]
        %v907 = vld [vmem:[#allocation2 + $0x20] sm:$0x1]
        %v908 = vld [vmem:[#allocation2 + $0x24] sm:$0xf]
        %v909 = vld [vmem:[#allocation2 + $0x28] sm:$0xf]
        %v910 = vld [vmem:[#allocation2 + $0x2c] sm:$0x1]
        %v911 = vld [vmem:[#allocation2 + $0x30] sm:$0xf]
        %v912 = vld [vmem:[#allocation2 + $0x34] sm:$0xf]
        %v913 = vld [vmem:[#allocation2 + $0x38] sm:$0x1]
        %v914 = vld [vmem:[#allocation2 + $0x3c] sm:$0xf]
        %v915 = vld [vmem:[#allocation2 + $0x40] sm:$0xf]
        %v916 = vld [vmem:[#allocation2 + $0x44] sm:$0x1]
        %v917 = vld [vmem:[#allocation2 + $0x48] sm:$0xf]
        %v918 = vld [vmem:[#allocation2 + $0x4c] sm:$0xf]
        %v919 = vld [vmem:[#allocation2 + $0x50] sm:$0x1]
        %v920 = vld [vmem:[#allocation2 + $0x54] sm:$0xf]
        %v921 = vld [vmem:[#allocation2 + $0x58] sm:$0xf]
        %v922 = vld [vmem:[#allocation2 + $0x5c] sm:$0x1]
        %v923 = vld [vmem:[#allocation2 + $0x60] sm:$0xf]
        %v924 = vld [vmem:[#allocation2 + $0x64] sm:$0xf]
        %v925 = vld [vmem:[#allocation2 + $0x68] sm:$0x1]
        %v926 = vld [vmem:[#allocation2 + $0x6c] sm:$0xf]
        %v927 = vld [vmem:[#allocation2 + $0x70] sm:$0xf]
        %v928 = vld [vmem:[#allocation2 + $0x74] sm:$0x1]
        %v929 = vld [vmem:[#allocation2 + $0x78] sm:$0xf]
        %v930 = vld [vmem:[#allocation2 + $0x7c] sm:$0xf]
        %v931 = vld [vmem:[#allocation2 + $0x80] sm:$0x1]
        %v932 = vld [vmem:[#allocation2 + $0x84] sm:$0xf]
        %v933 = vld [vmem:[#allocation2 + $0x88] sm:$0xf]
        %v934 = vld [vmem:[#allocation2 + $0x8c] sm:$0x1]
        %v935 = vld [vmem:[#allocation2 + $0x90] sm:$0xf]
        %v936 = vld [vmem:[#allocation2 + $0x94] sm:$0xf]
        %v937 = vld [vmem:[#allocation2 + $0x98] sm:$0x1]
        %v938 = vld [vmem:[#allocation2 + $0x9c] sm:$0xf]
        %v939 = vld [vmem:[#allocation2 + $0xa0] sm:$0xf]
        %v940 = vld [vmem:[#allocation2 + $0xa4] sm:$0x1]
        %v941 = vld [vmem:[#allocation2 + $0xa8] sm:$0xf]
        %v942 = vld [vmem:[#allocation2 + $0xac] sm:$0xf]
        %v943 = vld [vmem:[#allocation2 + $0xb0] sm:$0x1]
        %v944 = vld [vmem:[#allocation2 + $0xb4] sm:$0xf]
        %v945 = vld [vmem:[#allocation2 + $0xb8] sm:$0xf]
        %v946 = vld [vmem:[#allocation2 + $0xbc] sm:$0x1]
        %vm947 = vsmask.f32 3328
        %vm948 = vsmask.f32 7440
        %vm949 = vmor %vm947, %vm948
        %v951 = vshrl.u32 %v899, 16
        %v953 = vrot.slane %v951, 4
        %v954 = vshll.u32 %v899, 16
        %v956 = vrot.slane %v954, 5
        %v957 = vor.u32 %v953, %v956
        %v958 = vrot.slane %v957, 4
        %v960 = vshll.u32 %v900, 16
        %v962 = vrot.slane %v960, 5
        %v963 = vsel %vm949, %v958, %v962
        %v964 = vshrl.u32 %v900, 16
        %v966 = vrot.slane %v964, 4
        %v967 = vor.u32 %v966, %v962
        %v968 = vrot.slane %v967, 4
        %v970 = vshll.u32 %v901, 16
        %v972 = vrot.slane %v970, 5
        %v973 = vsel %vm949, %v968, %v972
        %v975 = vshrl.u32 %v902, 16
        %v977 = vrot.slane %v975, 4
        %v978 = vshll.u32 %v902, 16
        %v980 = vrot.slane %v978, 5
        %v981 = vor.u32 %v977, %v980
        %v982 = vrot.slane %v981, 4
        %v984 = vshll.u32 %v903, 16
        %v986 = vrot.slane %v984, 5
        %v987 = vsel %vm949, %v982, %v986
        %v988 = vshrl.u32 %v903, 16
        %v990 = vrot.slane %v988, 4
        %v991 = vor.u32 %v990, %v986
        %v992 = vrot.slane %v991, 4
        %v994 = vshll.u32 %v904, 16
        %v996 = vrot.slane %v994, 5
        %v997 = vsel %vm949, %v992, %v996
        %v999 = vshrl.u32 %v905, 16
        %v1001 = vrot.slane %v999, 4
        %v1002 = vshll.u32 %v905, 16
        %v1004 = vrot.slane %v1002, 5
        %v1005 = vor.u32 %v1001, %v1004
        %v1006 = vrot.slane %v1005, 4
        %v1008 = vshll.u32 %v906, 16
        %v1010 = vrot.slane %v1008, 5
        %v1011 = vsel %vm949, %v1006, %v1010
        %v1012 = vshrl.u32 %v906, 16
        %v1014 = vrot.slane %v1012, 4
        %v1015 = vor.u32 %v1014, %v1010
        %v1016 = vrot.slane %v1015, 4
        %v1018 = vshll.u32 %v907, 16
        %v1020 = vrot.slane %v1018, 5
        %v1021 = vsel %vm949, %v1016, %v1020
        %v1023 = vshrl.u32 %v908, 16
        %v1025 = vrot.slane %v1023, 4
        %v1026 = vshll.u32 %v908, 16
        %v1028 = vrot.slane %v1026, 5
        %v1029 = vor.u32 %v1025, %v1028
        %v1030 = vrot.slane %v1029, 4
        %v1032 = vshll.u32 %v909, 16
        %v1034 = vrot.slane %v1032, 5
        %v1035 = vsel %vm949, %v1030, %v1034
        %v1036 = vshrl.u32 %v909, 16
        %v1038 = vrot.slane %v1036, 4
        %v1039 = vor.u32 %v1038, %v1034
        %v1040 = vrot.slane %v1039, 4
        %v1042 = vshll.u32 %v910, 16
        %v1044 = vrot.slane %v1042, 5
        %v1045 = vsel %vm949, %v1040, %v1044
        %v1047 = vshrl.u32 %v911, 16
        %v1049 = vrot.slane %v1047, 4
        %v1050 = vshll.u32 %v911, 16
        %v1052 = vrot.slane %v1050, 5
        %v1053 = vor.u32 %v1049, %v1052
        %v1054 = vrot.slane %v1053, 4
        %v1056 = vshll.u32 %v912, 16
        %v1058 = vrot.slane %v1056, 5
        %v1059 = vsel %vm949, %v1054, %v1058
        %v1060 = vshrl.u32 %v912, 16
        %v1062 = vrot.slane %v1060, 4
        %v1063 = vor.u32 %v1062, %v1058
        %v1064 = vrot.slane %v1063, 4
        %v1066 = vshll.u32 %v913, 16
        %v1068 = vrot.slane %v1066, 5
        %v1069 = vsel %vm949, %v1064, %v1068
        %v1071 = vshrl.u32 %v914, 16
        %v1073 = vrot.slane %v1071, 4
        %v1074 = vshll.u32 %v914, 16
        %v1076 = vrot.slane %v1074, 5
        %v1077 = vor.u32 %v1073, %v1076
        %v1078 = vrot.slane %v1077, 4
        %v1080 = vshll.u32 %v915, 16
        %v1082 = vrot.slane %v1080, 5
        %v1083 = vsel %vm949, %v1078, %v1082
        %v1084 = vshrl.u32 %v915, 16
        %v1086 = vrot.slane %v1084, 4
        %v1087 = vor.u32 %v1086, %v1082
        %v1088 = vrot.slane %v1087, 4
        %v1090 = vshll.u32 %v916, 16
        %v1092 = vrot.slane %v1090, 5
        %v1093 = vsel %vm949, %v1088, %v1092
        %v1095 = vshrl.u32 %v917, 16
        %v1097 = vrot.slane %v1095, 4
        %v1098 = vshll.u32 %v917, 16
        %v1100 = vrot.slane %v1098, 5
        %v1101 = vor.u32 %v1097, %v1100
        %v1102 = vrot.slane %v1101, 4
        %v1104 = vshll.u32 %v918, 16
        %v1106 = vrot.slane %v1104, 5
        %v1107 = vsel %vm949, %v1102, %v1106
        %v1108 = vshrl.u32 %v918, 16
        %v1110 = vrot.slane %v1108, 4
        %v1111 = vor.u32 %v1110, %v1106
        %v1112 = vrot.slane %v1111, 4
        %v1114 = vshll.u32 %v919, 16
        %v1116 = vrot.slane %v1114, 5
        %v1117 = vsel %vm949, %v1112, %v1116
        %v1119 = vshrl.u32 %v920, 16
        %v1121 = vrot.slane %v1119, 4
        %v1122 = vshll.u32 %v920, 16
        %v1124 = vrot.slane %v1122, 5
        %v1125 = vor.u32 %v1121, %v1124
        %v1126 = vrot.slane %v1125, 4
        %v1128 = vshll.u32 %v921, 16
        %v1130 = vrot.slane %v1128, 5
        %v1131 = vsel %vm949, %v1126, %v1130
        %v1132 = vshrl.u32 %v921, 16
        %v1134 = vrot.slane %v1132, 4
        %v1135 = vor.u32 %v1134, %v1130
        %v1136 = vrot.slane %v1135, 4
        %v1138 = vshll.u32 %v922, 16
        %v1140 = vrot.slane %v1138, 5
        %v1141 = vsel %vm949, %v1136, %v1140
        %v1143 = vshrl.u32 %v923, 16
        %v1145 = vrot.slane %v1143, 4
        %v1146 = vshll.u32 %v923, 16
        %v1148 = vrot.slane %v1146, 5
        %v1149 = vor.u32 %v1145, %v1148
        %v1150 = vrot.slane %v1149, 4
        %v1152 = vshll.u32 %v924, 16
        %v1154 = vrot.slane %v1152, 5
        %v1155 = vsel %vm949, %v1150, %v1154
        %v1156 = vshrl.u32 %v924, 16
        %v1158 = vrot.slane %v1156, 4
        %v1159 = vor.u32 %v1158, %v1154
        %v1160 = vrot.slane %v1159, 4
        %v1162 = vshll.u32 %v925, 16
        %v1164 = vrot.slane %v1162, 5
        %v1165 = vsel %vm949, %v1160, %v1164
        %v1167 = vshrl.u32 %v926, 16
        %v1169 = vrot.slane %v1167, 4
        %v1170 = vshll.u32 %v926, 16
        %v1172 = vrot.slane %v1170, 5
        %v1173 = vor.u32 %v1169, %v1172
        %v1174 = vrot.slane %v1173, 4
        %v1176 = vshll.u32 %v927, 16
        %v1178 = vrot.slane %v1176, 5
        %v1179 = vsel %vm949, %v1174, %v1178
        %v1180 = vshrl.u32 %v927, 16
        %v1182 = vrot.slane %v1180, 4
        %v1183 = vor.u32 %v1182, %v1178
        %v1184 = vrot.slane %v1183, 4
        %v1186 = vshll.u32 %v928, 16
        %v1188 = vrot.slane %v1186, 5
        %v1189 = vsel %vm949, %v1184, %v1188
        %v1191 = vshrl.u32 %v929, 16
        %v1193 = vrot.slane %v1191, 4
        %v1194 = vshll.u32 %v929, 16
        %v1196 = vrot.slane %v1194, 5
        %v1197 = vor.u32 %v1193, %v1196
        %v1198 = vrot.slane %v1197, 4
        %v1200 = vshll.u32 %v930, 16
        %v1202 = vrot.slane %v1200, 5
        %v1203 = vsel %vm949, %v1198, %v1202
        %v1204 = vshrl.u32 %v930, 16
        %v1206 = vrot.slane %v1204, 4
        %v1207 = vor.u32 %v1206, %v1202
        %v1208 = vrot.slane %v1207, 4
        %v1210 = vshll.u32 %v931, 16
        %v1212 = vrot.slane %v1210, 5
        %v1213 = vsel %vm949, %v1208, %v1212
        %v1215 = vshrl.u32 %v932, 16
        %v1217 = vrot.slane %v1215, 4
        %v1218 = vshll.u32 %v932, 16
        %v1220 = vrot.slane %v1218, 5
        %v1221 = vor.u32 %v1217, %v1220
        %v1222 = vrot.slane %v1221, 4
        %v1224 = vshll.u32 %v933, 16
        %v1226 = vrot.slane %v1224, 5
        %v1227 = vsel %vm949, %v1222, %v1226
        %v1228 = vshrl.u32 %v933, 16
        %v1230 = vrot.slane %v1228, 4
        %v1231 = vor.u32 %v1230, %v1226
        %v1232 = vrot.slane %v1231, 4
        %v1234 = vshll.u32 %v934, 16
        %v1236 = vrot.slane %v1234, 5
        %v1237 = vsel %vm949, %v1232, %v1236
        %v1239 = vshrl.u32 %v935, 16
        %v1241 = vrot.slane %v1239, 4
        %v1242 = vshll.u32 %v935, 16
        %v1244 = vrot.slane %v1242, 5
        %v1245 = vor.u32 %v1241, %v1244
        %v1246 = vrot.slane %v1245, 4
        %v1248 = vshll.u32 %v936, 16
        %v1250 = vrot.slane %v1248, 5
        %v1251 = vsel %vm949, %v1246, %v1250
        %v1252 = vshrl.u32 %v936, 16
        %v1254 = vrot.slane %v1252, 4
        %v1255 = vor.u32 %v1254, %v1250
        %v1256 = vrot.slane %v1255, 4
        %v1258 = vshll.u32 %v937, 16
        %v1260 = vrot.slane %v1258, 5
        %v1261 = vsel %vm949, %v1256, %v1260
        %v1263 = vshrl.u32 %v938, 16
        %v1265 = vrot.slane %v1263, 4
        %v1266 = vshll.u32 %v938, 16
        %v1268 = vrot.slane %v1266, 5
        %v1269 = vor.u32 %v1265, %v1268
        %v1270 = vrot.slane %v1269, 4
        %v1272 = vshll.u32 %v939, 16
        %v1274 = vrot.slane %v1272, 5
        %v1275 = vsel %vm949, %v1270, %v1274
        %v1276 = vshrl.u32 %v939, 16
        %v1278 = vrot.slane %v1276, 4
        %v1279 = vor.u32 %v1278, %v1274
        %v1280 = vrot.slane %v1279, 4
        %v1282 = vshll.u32 %v940, 16
        %v1284 = vrot.slane %v1282, 5
        %v1285 = vsel %vm949, %v1280, %v1284
        %v1287 = vshrl.u32 %v941, 16
        %v1289 = vrot.slane %v1287, 4
        %v1290 = vshll.u32 %v941, 16
        %v1292 = vrot.slane %v1290, 5
        %v1293 = vor.u32 %v1289, %v1292
        %v1294 = vrot.slane %v1293, 4
        %v1296 = vshll.u32 %v942, 16
        %v1298 = vrot.slane %v1296, 5
        %v1299 = vsel %vm949, %v1294, %v1298
        %v1300 = vshrl.u32 %v942, 16
        %v1302 = vrot.slane %v1300, 4
        %v1303 = vor.u32 %v1302, %v1298
        %v1304 = vrot.slane %v1303, 4
        %v1306 = vshll.u32 %v943, 16
        %v1308 = vrot.slane %v1306, 5
        %v1309 = vsel %vm949, %v1304, %v1308
        %v1311 = vshrl.u32 %v944, 16
        %v1313 = vrot.slane %v1311, 4
        %v1314 = vshll.u32 %v944, 16
        %v1316 = vrot.slane %v1314, 5
        %v1317 = vor.u32 %v1313, %v1316
        %v1318 = vrot.slane %v1317, 4
        %v1320 = vshll.u32 %v945, 16
        %v1322 = vrot.slane %v1320, 5
        %v1323 = vsel %vm949, %v1318, %v1322
        %v1324 = vshrl.u32 %v945, 16
        %v1326 = vrot.slane %v1324, 4
        %v1327 = vor.u32 %v1326, %v1322
        %v1328 = vrot.slane %v1327, 4
        %v1330 = vshll.u32 %v946, 16
        %v1332 = vrot.slane %v1330, 5
        %v1333 = vsel %vm949, %v1328, %v1332
        %1334 = vrot.lane.b32.xlu0 %v963, 4
        %v1335 = vpop.permute.xlu0 %1334
        %1336 = vrot.lane.b32.xlu0 %v973, 4
        %v1337 = vpop.permute.xlu0 %1336
        %1338 = vrot.lane.b32.xlu0 %v987, 4
        %v1339 = vpop.permute.xlu0 %1338
        %1340 = vrot.lane.b32.xlu0 %v997, 4
        %v1341 = vpop.permute.xlu0 %1340
        %1342 = vrot.lane.b32.xlu0 %v1011, 4
        %v1343 = vpop.permute.xlu0 %1342
        %1344 = vrot.lane.b32.xlu0 %v1021, 4
        %v1345 = vpop.permute.xlu0 %1344
        %1346 = vrot.lane.b32.xlu0 %v1035, 4
        %v1347 = vpop.permute.xlu0 %1346
        %1348 = vrot.lane.b32.xlu0 %v1045, 4
        %v1349 = vpop.permute.xlu0 %1348
        %1350 = vrot.lane.b32.xlu0 %v1059, 4
        %v1351 = vpop.permute.xlu0 %1350
        %1352 = vrot.lane.b32.xlu0 %v1069, 4
        %v1353 = vpop.permute.xlu0 %1352
        %1354 = vrot.lane.b32.xlu0 %v1083, 4
        %v1355 = vpop.permute.xlu0 %1354
        %1356 = vrot.lane.b32.xlu0 %v1093, 4
        %v1357 = vpop.permute.xlu0 %1356
        %1358 = vrot.lane.b32.xlu0 %v1107, 4
        %v1359 = vpop.permute.xlu0 %1358
        %1360 = vrot.lane.b32.xlu0 %v1117, 4
        %v1361 = vpop.permute.xlu0 %1360
        %1362 = vrot.lane.b32.xlu0 %v1131, 4
        %v1363 = vpop.permute.xlu0 %1362
        %1364 = vrot.lane.b32.xlu0 %v1141, 4
        %v1365 = vpop.permute.xlu0 %1364
        %1366 = vrot.lane.b32.xlu0 %v1155, 4
        %v1367 = vpop.permute.xlu0 %1366
        %1368 = vrot.lane.b32.xlu0 %v1165, 4
        %v1369 = vpop.permute.xlu0 %1368
        %1370 = vrot.lane.b32.xlu0 %v1179, 4
        %v1371 = vpop.permute.xlu0 %1370
        %1372 = vrot.lane.b32.xlu0 %v1189, 4
        %v1373 = vpop.permute.xlu0 %1372
        %1374 = vrot.lane.b32.xlu0 %v1203, 4
        %v1375 = vpop.permute.xlu0 %1374
        %1376 = vrot.lane.b32.xlu0 %v1213, 4
        %v1377 = vpop.permute.xlu0 %1376
        %1378 = vrot.lane.b32.xlu0 %v1227, 4
        %v1379 = vpop.permute.xlu0 %1378
        %1380 = vrot.lane.b32.xlu0 %v1237, 4
        %v1381 = vpop.permute.xlu0 %1380
        %1382 = vrot.lane.b32.xlu0 %v1251, 4
        %v1383 = vpop.permute.xlu0 %1382
        %1384 = vrot.lane.b32.xlu0 %v1261, 4
        %v1385 = vpop.permute.xlu0 %1384
        %1386 = vrot.lane.b32.xlu0 %v1275, 4
        %v1387 = vpop.permute.xlu0 %1386
        %1388 = vrot.lane.b32.xlu0 %v1285, 4
        %v1389 = vpop.permute.xlu0 %1388
        %1390 = vrot.lane.b32.xlu0 %v1299, 4
        %v1391 = vpop.permute.xlu0 %1390
        %1392 = vrot.lane.b32.xlu0 %v1309, 4
        %v1393 = vpop.permute.xlu0 %1392
        %1394 = vrot.lane.b32.xlu0 %v1323, 4
        %v1395 = vpop.permute.xlu0 %1394
        %1396 = vrot.lane.b32.xlu0 %v1333, 4
        %v1397 = vpop.permute.xlu0 %1396
        %vm1430 = vcmask 60448
        %1431 = vst.msk [vmem:[#allocation3] sm:$0xf] %vm1430, %v1335
        %1432 = vst.msk [vmem:[#allocation3 + $0x4] sm:$0xf] %vm1430, %v1337
        %1433 = vst.msk [vmem:[#allocation3 + $0x8] sm:$0xf] %vm1430, %v1339
        %1434 = vst.msk [vmem:[#allocation3 + $0xc] sm:$0xf] %vm1430, %v1341
        %1435 = vst.msk [vmem:[#allocation3 + $0x10] sm:$0xf] %vm1430, %v1343
        %1436 = vst.msk [vmem:[#allocation3 + $0x14] sm:$0xf] %vm1430, %v1345
        %1437 = vst.msk [vmem:[#allocation3 + $0x18] sm:$0xf] %vm1430, %v1347
        %1438 = vst.msk [vmem:[#allocation3 + $0x1c] sm:$0xf] %vm1430, %v1349
        %1439 = vst.msk [vmem:[#allocation3 + $0x20] sm:$0xf] %vm1430, %v1351
        %1440 = vst.msk [vmem:[#allocation3 + $0x24] sm:$0xf] %vm1430, %v1353
        %1441 = vst.msk [vmem:[#allocation3 + $0x28] sm:$0xf] %vm1430, %v1355
        %1442 = vst.msk [vmem:[#allocation3 + $0x2c] sm:$0xf] %vm1430, %v1357
        %1443 = vst.msk [vmem:[#allocation3 + $0x30] sm:$0xf] %vm1430, %v1359
        %1444 = vst.msk [vmem:[#allocation3 + $0x34] sm:$0xf] %vm1430, %v1361
        %1445 = vst.msk [vmem:[#allocation3 + $0x38] sm:$0xf] %vm1430, %v1363
        %1446 = vst.msk [vmem:[#allocation3 + $0x3c] sm:$0xf] %vm1430, %v1365
        %1447 = vst.msk [vmem:[#allocation3 + $0x40] sm:$0xf] %vm1430, %v1367
        %1448 = vst.msk [vmem:[#allocation3 + $0x44] sm:$0xf] %vm1430, %v1369
        %1449 = vst.msk [vmem:[#allocation3 + $0x48] sm:$0xf] %vm1430, %v1371
        %1450 = vst.msk [vmem:[#allocation3 + $0x4c] sm:$0xf] %vm1430, %v1373
        %1451 = vst.msk [vmem:[#allocation3 + $0x50] sm:$0xf] %vm1430, %v1375
        %1452 = vst.msk [vmem:[#allocation3 + $0x54] sm:$0xf] %vm1430, %v1377
        %1453 = vst.msk [vmem:[#allocation3 + $0x58] sm:$0xf] %vm1430, %v1379
        %1454 = vst.msk [vmem:[#allocation3 + $0x5c] sm:$0xf] %vm1430, %v1381
        %1455 = vst.msk [vmem:[#allocation3 + $0x60] sm:$0xf] %vm1430, %v1383
        %1456 = vst.msk [vmem:[#allocation3 + $0x64] sm:$0xf] %vm1430, %v1385
        %1457 = vst.msk [vmem:[#allocation3 + $0x68] sm:$0xf] %vm1430, %v1387
        %1458 = vst.msk [vmem:[#allocation3 + $0x6c] sm:$0xf] %vm1430, %v1389
        %1459 = vst.msk [vmem:[#allocation3 + $0x70] sm:$0xf] %vm1430, %v1391
        %1460 = vst.msk [vmem:[#allocation3 + $0x74] sm:$0xf] %vm1430, %v1393
        %1461 = vst.msk [vmem:[#allocation3 + $0x78] sm:$0xf] %vm1430, %v1395
        %1462 = vst.msk [vmem:[#allocation3 + $0x7c] sm:$0xf] %vm1430, %v1397
        %v1463 = vld [vmem:[#allocation2] sm:$0xe]
        %v1464 = vld [vmem:[#allocation2 + $0x4] sm:$0xf]
        %v1465 = vld [vmem:[#allocation2 + $0x8] sm:$0x1]
        %v1466 = vld [vmem:[#allocation2 + $0xc] sm:$0xe]
        %v1467 = vld [vmem:[#allocation2 + $0x10] sm:$0xf]
        %v1468 = vld [vmem:[#allocation2 + $0x14] sm:$0x1]
        %v1469 = vld [vmem:[#allocation2 + $0x18] sm:$0xe]
        %v1470 = vld [vmem:[#allocation2 + $0x1c] sm:$0xf]
        %v1471 = vld [vmem:[#allocation2 + $0x20] sm:$0x1]
        %v1472 = vld [vmem:[#allocation2 + $0x24] sm:$0xe]
        %v1473 = vld [vmem:[#allocation2 + $0x28] sm:$0xf]
        %v1474 = vld [vmem:[#allocation2 + $0x2c] sm:$0x1]
        %v1475 = vld [vmem:[#allocation2 + $0x30] sm:$0xe]
        %v1476 = vld [vmem:[#allocation2 + $0x34] sm:$0xf]
        %v1477 = vld [vmem:[#allocation2 + $0x38] sm:$0x1]
        %v1478 = vld [vmem:[#allocation2 + $0x3c] sm:$0xe]
        %v1479 = vld [vmem:[#allocation2 + $0x40] sm:$0xf]
        %v1480 = vld [vmem:[#allocation2 + $0x44] sm:$0x1]
        %v1481 = vld [vmem:[#allocation2 + $0x48] sm:$0xe]
        %v1482 = vld [vmem:[#allocation2 + $0x4c] sm:$0xf]
        %v1483 = vld [vmem:[#allocation2 + $0x50] sm:$0x1]
        %v1484 = vld [vmem:[#allocation2 + $0x54] sm:$0xe]
        %v1485 = vld [vmem:[#allocation2 + $0x58] sm:$0xf]
        %v1486 = vld [vmem:[#allocation2 + $0x5c] sm:$0x1]
        %v1487 = vld [vmem:[#allocation2 + $0x60] sm:$0xe]
        %v1488 = vld [vmem:[#allocation2 + $0x64] sm:$0xf]
        %v1489 = vld [vmem:[#allocation2 + $0x68] sm:$0x1]
        %v1490 = vld [vmem:[#allocation2 + $0x6c] sm:$0xe]
        %v1491 = vld [vmem:[#allocation2 + $0x70] sm:$0xf]
        %v1492 = vld [vmem:[#allocation2 + $0x74] sm:$0x1]
        %v1493 = vld [vmem:[#allocation2 + $0x78] sm:$0xe]
        %v1494 = vld [vmem:[#allocation2 + $0x7c] sm:$0xf]
        %v1495 = vld [vmem:[#allocation2 + $0x80] sm:$0x1]
        %v1496 = vld [vmem:[#allocation2 + $0x84] sm:$0xe]
        %v1497 = vld [vmem:[#allocation2 + $0x88] sm:$0xf]
        %v1498 = vld [vmem:[#allocation2 + $0x8c] sm:$0x1]
        %v1499 = vld [vmem:[#allocation2 + $0x90] sm:$0xe]
        %v1500 = vld [vmem:[#allocation2 + $0x94] sm:$0xf]
        %v1501 = vld [vmem:[#allocation2 + $0x98] sm:$0x1]
        %v1502 = vld [vmem:[#allocation2 + $0x9c] sm:$0xe]
        %v1503 = vld [vmem:[#allocation2 + $0xa0] sm:$0xf]
        %v1504 = vld [vmem:[#allocation2 + $0xa4] sm:$0x1]
        %v1505 = vld [vmem:[#allocation2 + $0xa8] sm:$0xe]
        %v1506 = vld [vmem:[#allocation2 + $0xac] sm:$0xf]
        %v1507 = vld [vmem:[#allocation2 + $0xb0] sm:$0x1]
        %v1508 = vld [vmem:[#allocation2 + $0xb4] sm:$0xe]
        %v1509 = vld [vmem:[#allocation2 + $0xb8] sm:$0xf]
        %v1510 = vld [vmem:[#allocation2 + $0xbc] sm:$0x1]
        %vm1559 = vcmask 1042432
        %vm1560 = vcmask 1046532
        %vm1561 = vmor %vm1559, %vm1560
        %v1562 = vrot.slane %v1463, 5
        %v1563 = vrot.slane %v1562, 4
        %v1564 = vrot.slane %v1464, 5
        %v1565 = vsel %vm1561, %v1563, %v1564
        %v1566 = vrot.slane %v1564, 4
        %v1567 = vrot.slane %v1465, 5
        %v1568 = vsel %vm1561, %v1566, %v1567
        %v1569 = vrot.slane %v1466, 5
        %v1570 = vrot.slane %v1569, 4
        %v1571 = vrot.slane %v1467, 5
        %v1572 = vsel %vm1561, %v1570, %v1571
        %v1573 = vrot.slane %v1571, 4
        %v1574 = vrot.slane %v1468, 5
        %v1575 = vsel %vm1561, %v1573, %v1574
        %v1576 = vrot.slane %v1469, 5
        %v1577 = vrot.slane %v1576, 4
        %v1578 = vrot.slane %v1470, 5
        %v1579 = vsel %vm1561, %v1577, %v1578
        %v1580 = vrot.slane %v1578, 4
        %v1581 = vrot.slane %v1471, 5
        %v1582 = vsel %vm1561, %v1580, %v1581
        %v1583 = vrot.slane %v1472, 5
        %v1584 = vrot.slane %v1583, 4
        %v1585 = vrot.slane %v1473, 5
        %v1586 = vsel %vm1561, %v1584, %v1585
        %v1587 = vrot.slane %v1585, 4
        %v1588 = vrot.slane %v1474, 5
        %v1589 = vsel %vm1561, %v1587, %v1588
        %v1590 = vrot.slane %v1475, 5
        %v1591 = vrot.slane %v1590, 4
        %v1592 = vrot.slane %v1476, 5
        %v1593 = vsel %vm1561, %v1591, %v1592
        %v1594 = vrot.slane %v1592, 4
        %v1595 = vrot.slane %v1477, 5
        %v1596 = vsel %vm1561, %v1594, %v1595
        %v1597 = vrot.slane %v1478, 5
        %v1598 = vrot.slane %v1597, 4
        %v1599 = vrot.slane %v1479, 5
        %v1600 = vsel %vm1561, %v1598, %v1599
        %v1601 = vrot.slane %v1599, 4
        %v1602 = vrot.slane %v1480, 5
        %v1603 = vsel %vm1561, %v1601, %v1602
        %v1604 = vrot.slane %v1481, 5
        %v1605 = vrot.slane %v1604, 4
        %v1606 = vrot.slane %v1482, 5
        %v1607 = vsel %vm1561, %v1605, %v1606
        %v1608 = vrot.slane %v1606, 4
        %v1609 = vrot.slane %v1483, 5
        %v1610 = vsel %vm1561, %v1608, %v1609
        %v1611 = vrot.slane %v1484, 5
        %v1612 = vrot.slane %v1611, 4
        %v1613 = vrot.slane %v1485, 5
        %v1614 = vsel %vm1561, %v1612, %v1613
        %v1615 = vrot.slane %v1613, 4
        %v1616 = vrot.slane %v1486, 5
        %v1617 = vsel %vm1561, %v1615, %v1616
        %v1618 = vrot.slane %v1487, 5
        %v1619 = vrot.slane %v1618, 4
        %v1620 = vrot.slane %v1488, 5
        %v1621 = vsel %vm1561, %v1619, %v1620
        %v1622 = vrot.slane %v1620, 4
        %v1623 = vrot.slane %v1489, 5
        %v1624 = vsel %vm1561, %v1622, %v1623
        %v1625 = vrot.slane %v1490, 5
        %v1626 = vrot.slane %v1625, 4
        %v1627 = vrot.slane %v1491, 5
        %v1628 = vsel %vm1561, %v1626, %v1627
        %v1629 = vrot.slane %v1627, 4
        %v1630 = vrot.slane %v1492, 5
        %v1631 = vsel %vm1561, %v1629, %v1630
        %v1632 = vrot.slane %v1493, 5
        %v1633 = vrot.slane %v1632, 4
        %v1634 = vrot.slane %v1494, 5
        %v1635 = vsel %vm1561, %v1633, %v1634
        %v1636 = vrot.slane %v1634, 4
        %v1637 = vrot.slane %v1495, 5
        %v1638 = vsel %vm1561, %v1636, %v1637
        %v1639 = vrot.slane %v1496, 5
        %v1640 = vrot.slane %v1639, 4
        %v1641 = vrot.slane %v1497, 5
        %v1642 = vsel %vm1561, %v1640, %v1641
        %v1643 = vrot.slane %v1641, 4
        %v1644 = vrot.slane %v1498, 5
        %v1645 = vsel %vm1561, %v1643, %v1644
        %v1646 = vrot.slane %v1499, 5
        %v1647 = vrot.slane %v1646, 4
        %v1648 = vrot.slane %v1500, 5
        %v1649 = vsel %vm1561, %v1647, %v1648
        %v1650 = vrot.slane %v1648, 4
        %v1651 = vrot.slane %v1501, 5
        %v1652 = vsel %vm1561, %v1650, %v1651
        %v1653 = vrot.slane %v1502, 5
        %v1654 = vrot.slane %v1653, 4
        %v1655 = vrot.slane %v1503, 5
        %v1656 = vsel %vm1561, %v1654, %v1655
        %v1657 = vrot.slane %v1655, 4
        %v1658 = vrot.slane %v1504, 5
        %v1659 = vsel %vm1561, %v1657, %v1658
        %v1660 = vrot.slane %v1505, 5
        %v1661 = vrot.slane %v1660, 4
        %v1662 = vrot.slane %v1506, 5
        %v1663 = vsel %vm1561, %v1661, %v1662
        %v1664 = vrot.slane %v1662, 4
        %v1665 = vrot.slane %v1507, 5
        %v1666 = vsel %vm1561, %v1664, %v1665
        %v1667 = vrot.slane %v1508, 5
        %v1668 = vrot.slane %v1667, 4
        %v1669 = vrot.slane %v1509, 5
        %v1670 = vsel %vm1561, %v1668, %v1669
        %v1671 = vrot.slane %v1669, 4
        %v1672 = vrot.slane %v1510, 5
        %v1673 = vsel %vm1561, %v1671, %v1672
        %1674 = vrot.lane.b32.xlu0 %v1565, 8
        %v1675 = vpop.permute.xlu0 %1674
        %1676 = vrot.lane.b32.xlu0 %v1568, 8
        %v1677 = vpop.permute.xlu0 %1676
        %1678 = vrot.lane.b32.xlu0 %v1572, 8
        %v1679 = vpop.permute.xlu0 %1678
        %1680 = vrot.lane.b32.xlu0 %v1575, 8
        %v1681 = vpop.permute.xlu0 %1680
        %1682 = vrot.lane.b32.xlu0 %v1579, 8
        %v1683 = vpop.permute.xlu0 %1682
        %1684 = vrot.lane.b32.xlu0 %v1582, 8
        %v1685 = vpop.permute.xlu0 %1684
        %1686 = vrot.lane.b32.xlu0 %v1586, 8
        %v1687 = vpop.permute.xlu0 %1686
        %1688 = vrot.lane.b32.xlu0 %v1589, 8
        %v1689 = vpop.permute.xlu0 %1688
        %1690 = vrot.lane.b32.xlu0 %v1593, 8
        %v1691 = vpop.permute.xlu0 %1690
        %1692 = vrot.lane.b32.xlu0 %v1596, 8
        %v1693 = vpop.permute.xlu0 %1692
        %1694 = vrot.lane.b32.xlu0 %v1600, 8
        %v1695 = vpop.permute.xlu0 %1694
        %1696 = vrot.lane.b32.xlu0 %v1603, 8
        %v1697 = vpop.permute.xlu0 %1696
        %1698 = vrot.lane.b32.xlu0 %v1607, 8
        %v1699 = vpop.permute.xlu0 %1698
        %1700 = vrot.lane.b32.xlu0 %v1610, 8
        %v1701 = vpop.permute.xlu0 %1700
        %1702 = vrot.lane.b32.xlu0 %v1614, 8
        %v1703 = vpop.permute.xlu0 %1702
        %1704 = vrot.lane.b32.xlu0 %v1617, 8
        %v1705 = vpop.permute.xlu0 %1704
        %1706 = vrot.lane.b32.xlu0 %v1621, 8
        %v1707 = vpop.permute.xlu0 %1706
        %1708 = vrot.lane.b32.xlu0 %v1624, 8
        %v1709 = vpop.permute.xlu0 %1708
        %1710 = vrot.lane.b32.xlu0 %v1628, 8
        %v1711 = vpop.permute.xlu0 %1710
        %1712 = vrot.lane.b32.xlu0 %v1631, 8
        %v1713 = vpop.permute.xlu0 %1712
        %1714 = vrot.lane.b32.xlu0 %v1635, 8
        %v1715 = vpop.permute.xlu0 %1714
        %1716 = vrot.lane.b32.xlu0 %v1638, 8
        %v1717 = vpop.permute.xlu0 %1716
        %1718 = vrot.lane.b32.xlu0 %v1642, 8
        %v1719 = vpop.permute.xlu0 %1718
        %1720 = vrot.lane.b32.xlu0 %v1645, 8
        %v1721 = vpop.permute.xlu0 %1720
        %1722 = vrot.lane.b32.xlu0 %v1649, 8
        %v1723 = vpop.permute.xlu0 %1722
        %1724 = vrot.lane.b32.xlu0 %v1652, 8
        %v1725 = vpop.permute.xlu0 %1724
        %1726 = vrot.lane.b32.xlu0 %v1656, 8
        %v1727 = vpop.permute.xlu0 %1726
        %1728 = vrot.lane.b32.xlu0 %v1659, 8
        %v1729 = vpop.permute.xlu0 %1728
        %1730 = vrot.lane.b32.xlu0 %v1663, 8
        %v1731 = vpop.permute.xlu0 %1730
        %1732 = vrot.lane.b32.xlu0 %v1666, 8
        %v1733 = vpop.permute.xlu0 %1732
        %1734 = vrot.lane.b32.xlu0 %v1670, 8
        %v1735 = vpop.permute.xlu0 %1734
        %1736 = vrot.lane.b32.xlu0 %v1673, 8
        %v1737 = vpop.permute.xlu0 %1736
        %vm1770 = vcmask 93248
        %1771 = vst.msk [vmem:[#allocation3] sm:$0xf] %vm1770, %v1675
        %1772 = vst.msk [vmem:[#allocation3 + $0x4] sm:$0xf] %vm1770, %v1677
        %1773 = vst.msk [vmem:[#allocation3 + $0x8] sm:$0xf] %vm1770, %v1679
        %1774 = vst.msk [vmem:[#allocation3 + $0xc] sm:$0xf] %vm1770, %v1681
        %1775 = vst.msk [vmem:[#allocation3 + $0x10] sm:$0xf] %vm1770, %v1683
        %1776 = vst.msk [vmem:[#allocation3 + $0x14] sm:$0xf] %vm1770, %v1685
        %1777 = vst.msk [vmem:[#allocation3 + $0x18] sm:$0xf] %vm1770, %v1687
        %1778 = vst.msk [vmem:[#allocation3 + $0x1c] sm:$0xf] %vm1770, %v1689
        %1779 = vst.msk [vmem:[#allocation3 + $0x20] sm:$0xf] %vm1770, %v1691
        %1780 = vst.msk [vmem:[#allocation3 + $0x24] sm:$0xf] %vm1770, %v1693
        %1781 = vst.msk [vmem:[#allocation3 + $0x28] sm:$0xf] %vm1770, %v1695
        %1782 = vst.msk [vmem:[#allocation3 + $0x2c] sm:$0xf] %vm1770, %v1697
        %1783 = vst.msk [vmem:[#allocation3 + $0x30] sm:$0xf] %vm1770, %v1699
        %1784 = vst.msk [vmem:[#allocation3 + $0x34] sm:$0xf] %vm1770, %v1701
        %1785 = vst.msk [vmem:[#allocation3 + $0x38] sm:$0xf] %vm1770, %v1703
        %1786 = vst.msk [vmem:[#allocation3 + $0x3c] sm:$0xf] %vm1770, %v1705
        %1787 = vst.msk [vmem:[#allocation3 + $0x40] sm:$0xf] %vm1770, %v1707
        %1788 = vst.msk [vmem:[#allocation3 + $0x44] sm:$0xf] %vm1770, %v1709
        %1789 = vst.msk [vmem:[#allocation3 + $0x48] sm:$0xf] %vm1770, %v1711
        %1790 = vst.msk [vmem:[#allocation3 + $0x4c] sm:$0xf] %vm1770, %v1713
        %1791 = vst.msk [vmem:[#allocation3 + $0x50] sm:$0xf] %vm1770, %v1715
        %1792 = vst.msk [vmem:[#allocation3 + $0x54] sm:$0xf] %vm1770, %v1717
        %1793 = vst.msk [vmem:[#allocation3 + $0x58] sm:$0xf] %vm1770, %v1719
        %1794 = vst.msk [vmem:[#allocation3 + $0x5c] sm:$0xf] %vm1770, %v1721
        %1795 = vst.msk [vmem:[#allocation3 + $0x60] sm:$0xf] %vm1770, %v1723
        %1796 = vst.msk [vmem:[#allocation3 + $0x64] sm:$0xf] %vm1770, %v1725
        %1797 = vst.msk [vmem:[#allocation3 + $0x68] sm:$0xf] %vm1770, %v1727
        %1798 = vst.msk [vmem:[#allocation3 + $0x6c] sm:$0xf] %vm1770, %v1729
        %1799 = vst.msk [vmem:[#allocation3 + $0x70] sm:$0xf] %vm1770, %v1731
        %1800 = vst.msk [vmem:[#allocation3 + $0x74] sm:$0xf] %vm1770, %v1733
        %1801 = vst.msk [vmem:[#allocation3 + $0x78] sm:$0xf] %vm1770, %v1735
        %1802 = vst.msk [vmem:[#allocation3 + $0x7c] sm:$0xf] %vm1770, %v1737
        %s1803 = scalar_lea.vmem [#allocation2], 12
        %v1804 = vld [vmem:[%s1803] sm:$0xf]
        %v1805 = vld [vmem:[%s1803 + $0x4] sm:$0xf]
        %v1806 = vld [vmem:[%s1803 + $0xc] sm:$0xf]
        %v1807 = vld [vmem:[%s1803 + $0x10] sm:$0xf]
        %v1808 = vld [vmem:[%s1803 + $0x18] sm:$0xf]
        %v1809 = vld [vmem:[%s1803 + $0x1c] sm:$0xf]
        %v1810 = vld [vmem:[%s1803 + $0x24] sm:$0xf]
        %v1811 = vld [vmem:[%s1803 + $0x28] sm:$0xf]
        %v1812 = vld [vmem:[%s1803 + $0x30] sm:$0xf]
        %v1813 = vld [vmem:[%s1803 + $0x34] sm:$0xf]
        %v1814 = vld [vmem:[%s1803 + $0x3c] sm:$0xf]
        %v1815 = vld [vmem:[%s1803 + $0x40] sm:$0xf]
        %v1816 = vld [vmem:[%s1803 + $0x48] sm:$0xf]
        %v1817 = vld [vmem:[%s1803 + $0x4c] sm:$0xf]
        %v1818 = vld [vmem:[%s1803 + $0x54] sm:$0xf]
        %v1819 = vld [vmem:[%s1803 + $0x58] sm:$0xf]
        %v1820 = vld [vmem:[%s1803 + $0x60] sm:$0xf]
        %v1821 = vld [vmem:[%s1803 + $0x64] sm:$0xf]
        %v1822 = vld [vmem:[%s1803 + $0x6c] sm:$0xf]
        %v1823 = vld [vmem:[%s1803 + $0x70] sm:$0xf]
        %v1824 = vld [vmem:[%s1803 + $0x78] sm:$0xf]
        %v1825 = vld [vmem:[%s1803 + $0x7c] sm:$0xf]
        %v1826 = vld [vmem:[%s1803 + $0x84] sm:$0xf]
        %v1827 = vld [vmem:[%s1803 + $0x88] sm:$0xf]
        %v1828 = vld [vmem:[%s1803 + $0x90] sm:$0xf]
        %v1829 = vld [vmem:[%s1803 + $0x94] sm:$0xf]
        %v1830 = vld [vmem:[%s1803 + $0x9c] sm:$0xf]
        %v1831 = vld [vmem:[%s1803 + $0xa0] sm:$0xf]
        %v1832 = vld [vmem:[%s1803 + $0xa8] sm:$0xf]
        %v1833 = vld [vmem:[%s1803 + $0xac] sm:$0xf]
        %v1834 = vld [vmem:[%s1803 + $0xb4] sm:$0xf]
        %v1835 = vld [vmem:[%s1803 + $0xb8] sm:$0xf]
        %1868 = vrot.lane.b32.xlu0 %v1804, 12
        %v1869 = vpop.permute.xlu0 %1868
        %1870 = vrot.lane.b32.xlu0 %v1805, 12
        %v1871 = vpop.permute.xlu0 %1870
        %1872 = vrot.lane.b32.xlu0 %v1806, 12
        %v1873 = vpop.permute.xlu0 %1872
        %1874 = vrot.lane.b32.xlu0 %v1807, 12
        %v1875 = vpop.permute.xlu0 %1874
        %1876 = vrot.lane.b32.xlu0 %v1808, 12
        %v1877 = vpop.permute.xlu0 %1876
        %1878 = vrot.lane.b32.xlu0 %v1809, 12
        %v1879 = vpop.permute.xlu0 %1878
        %1880 = vrot.lane.b32.xlu0 %v1810, 12
        %v1881 = vpop.permute.xlu0 %1880
        %1882 = vrot.lane.b32.xlu0 %v1811, 12
        %v1883 = vpop.permute.xlu0 %1882
        %1884 = vrot.lane.b32.xlu0 %v1812, 12
        %v1885 = vpop.permute.xlu0 %1884
        %1886 = vrot.lane.b32.xlu0 %v1813, 12
        %v1887 = vpop.permute.xlu0 %1886
        %1888 = vrot.lane.b32.xlu0 %v1814, 12
        %v1889 = vpop.permute.xlu0 %1888
        %1890 = vrot.lane.b32.xlu0 %v1815, 12
        %v1891 = vpop.permute.xlu0 %1890
        %1892 = vrot.lane.b32.xlu0 %v1816, 12
        %v1893 = vpop.permute.xlu0 %1892
        %1894 = vrot.lane.b32.xlu0 %v1817, 12
        %v1895 = vpop.permute.xlu0 %1894
        %1896 = vrot.lane.b32.xlu0 %v1818, 12
        %v1897 = vpop.permute.xlu0 %1896
        %1898 = vrot.lane.b32.xlu0 %v1819, 12
        %v1899 = vpop.permute.xlu0 %1898
        %1900 = vrot.lane.b32.xlu0 %v1820, 12
        %v1901 = vpop.permute.xlu0 %1900
        %1902 = vrot.lane.b32.xlu0 %v1821, 12
        %v1903 = vpop.permute.xlu0 %1902
        %1904 = vrot.lane.b32.xlu0 %v1822, 12
        %v1905 = vpop.permute.xlu0 %1904
        %1906 = vrot.lane.b32.xlu0 %v1823, 12
        %v1907 = vpop.permute.xlu0 %1906
        %1908 = vrot.lane.b32.xlu0 %v1824, 12
        %v1909 = vpop.permute.xlu0 %1908
        %1910 = vrot.lane.b32.xlu0 %v1825, 12
        %v1911 = vpop.permute.xlu0 %1910
        %1912 = vrot.lane.b32.xlu0 %v1826, 12
        %v1913 = vpop.permute.xlu0 %1912
        %1914 = vrot.lane.b32.xlu0 %v1827, 12
        %v1915 = vpop.permute.xlu0 %1914
        %1916 = vrot.lane.b32.xlu0 %v1828, 12
        %v1917 = vpop.permute.xlu0 %1916
        %1918 = vrot.lane.b32.xlu0 %v1829, 12
        %v1919 = vpop.permute.xlu0 %1918
        %1920 = vrot.lane.b32.xlu0 %v1830, 12
        %v1921 = vpop.permute.xlu0 %1920
        %1922 = vrot.lane.b32.xlu0 %v1831, 12
        %v1923 = vpop.permute.xlu0 %1922
        %1924 = vrot.lane.b32.xlu0 %v1832, 12
        %v1925 = vpop.permute.xlu0 %1924
        %1926 = vrot.lane.b32.xlu0 %v1833, 12
        %v1927 = vpop.permute.xlu0 %1926
        %1928 = vrot.lane.b32.xlu0 %v1834, 12
        %v1929 = vpop.permute.xlu0 %1928
        %1930 = vrot.lane.b32.xlu0 %v1835, 12
        %v1931 = vpop.permute.xlu0 %1930
        %vm1964 = vcmask 126048
        %1965 = vst.msk [vmem:[#allocation3] sm:$0xf] %vm1964, %v1869
        %1966 = vst.msk [vmem:[#allocation3 + $0x4] sm:$0xf] %vm1964, %v1871
        %1967 = vst.msk [vmem:[#allocation3 + $0x8] sm:$0xf] %vm1964, %v1873
        %1968 = vst.msk [vmem:[#allocation3 + $0xc] sm:$0xf] %vm1964, %v1875
        %1969 = vst.msk [vmem:[#allocation3 + $0x10] sm:$0xf] %vm1964, %v1877
        %1970 = vst.msk [vmem:[#allocation3 + $0x14] sm:$0xf] %vm1964, %v1879
        %1971 = vst.msk [vmem:[#allocation3 + $0x18] sm:$0xf] %vm1964, %v1881
        %1972 = vst.msk [vmem:[#allocation3 + $0x1c] sm:$0xf] %vm1964, %v1883
        %1973 = vst.msk [vmem:[#allocation3 + $0x20] sm:$0xf] %vm1964, %v1885
        %1974 = vst.msk [vmem:[#allocation3 + $0x24] sm:$0xf] %vm1964, %v1887
        %1975 = vst.msk [vmem:[#allocation3 + $0x28] sm:$0xf] %vm1964, %v1889
        %1976 = vst.msk [vmem:[#allocation3 + $0x2c] sm:$0xf] %vm1964, %v1891
        %1977 = vst.msk [vmem:[#allocation3 + $0x30] sm:$0xf] %vm1964, %v1893
        %1978 = vst.msk [vmem:[#allocation3 + $0x34] sm:$0xf] %vm1964, %v1895
        %1979 = vst.msk [vmem:[#allocation3 + $0x38] sm:$0xf] %vm1964, %v1897
        %1980 = vst.msk [vmem:[#allocation3 + $0x3c] sm:$0xf] %vm1964, %v1899
        %1981 = vst.msk [vmem:[#allocation3 + $0x40] sm:$0xf] %vm1964, %v1901
        %1982 = vst.msk [vmem:[#allocation3 + $0x44] sm:$0xf] %vm1964, %v1903
        %1983 = vst.msk [vmem:[#allocation3 + $0x48] sm:$0xf] %vm1964, %v1905
        %1984 = vst.msk [vmem:[#allocation3 + $0x4c] sm:$0xf] %vm1964, %v1907
        %1985 = vst.msk [vmem:[#allocation3 + $0x50] sm:$0xf] %vm1964, %v1909
        %1986 = vst.msk [vmem:[#allocation3 + $0x54] sm:$0xf] %vm1964, %v1911
        %1987 = vst.msk [vmem:[#allocation3 + $0x58] sm:$0xf] %vm1964, %v1913
        %1988 = vst.msk [vmem:[#allocation3 + $0x5c] sm:$0xf] %vm1964, %v1915
        %1989 = vst.msk [vmem:[#allocation3 + $0x60] sm:$0xf] %vm1964, %v1917
        %1990 = vst.msk [vmem:[#allocation3 + $0x64] sm:$0xf] %vm1964, %v1919
        %1991 = vst.msk [vmem:[#allocation3 + $0x68] sm:$0xf] %vm1964, %v1921
        %1992 = vst.msk [vmem:[#allocation3 + $0x6c] sm:$0xf] %vm1964, %v1923
        %1993 = vst.msk [vmem:[#allocation3 + $0x70] sm:$0xf] %vm1964, %v1925
        %1994 = vst.msk [vmem:[#allocation3 + $0x74] sm:$0xf] %vm1964, %v1927
        %1995 = vst.msk [vmem:[#allocation3 + $0x78] sm:$0xf] %vm1964, %v1929
        %1996 = vst.msk [vmem:[#allocation3 + $0x7c] sm:$0xf] %vm1964, %v1931
        %v1997 = vld [vmem:[%s1803] sm:$0xf]
        %v1998 = vld [vmem:[%s1803 + $0x4] sm:$0xf]
        %v1999 = vld [vmem:[%s1803 + $0x8] sm:$0x1]
        %v2000 = vld [vmem:[%s1803 + $0xc] sm:$0xf]
        %v2001 = vld [vmem:[%s1803 + $0x10] sm:$0xf]
        %v2002 = vld [vmem:[%s1803 + $0x14] sm:$0x1]
        %v2003 = vld [vmem:[%s1803 + $0x18] sm:$0xf]
        %v2004 = vld [vmem:[%s1803 + $0x1c] sm:$0xf]
        %v2005 = vld [vmem:[%s1803 + $0x20] sm:$0x1]
        %v2006 = vld [vmem:[%s1803 + $0x24] sm:$0xf]
        %v2007 = vld [vmem:[%s1803 + $0x28] sm:$0xf]
        %v2008 = vld [vmem:[%s1803 + $0x2c] sm:$0x1]
        %v2009 = vld [vmem:[%s1803 + $0x30] sm:$0xf]
        %v2010 = vld [vmem:[%s1803 + $0x34] sm:$0xf]
        %v2011 = vld [vmem:[%s1803 + $0x38] sm:$0x1]
        %v2012 = vld [vmem:[%s1803 + $0x3c] sm:$0xf]
        %v2013 = vld [vmem:[%s1803 + $0x40] sm:$0xf]
        %v2014 = vld [vmem:[%s1803 + $0x44] sm:$0x1]
        %v2015 = vld [vmem:[%s1803 + $0x48] sm:$0xf]
        %v2016 = vld [vmem:[%s1803 + $0x4c] sm:$0xf]
        %v2017 = vld [vmem:[%s1803 + $0x50] sm:$0x1]
        %v2018 = vld [vmem:[%s1803 + $0x54] sm:$0xf]
        %v2019 = vld [vmem:[%s1803 + $0x58] sm:$0xf]
        %v2020 = vld [vmem:[%s1803 + $0x5c] sm:$0x1]
        %v2021 = vld [vmem:[%s1803 + $0x60] sm:$0xf]
        %v2022 = vld [vmem:[%s1803 + $0x64] sm:$0xf]
        %v2023 = vld [vmem:[%s1803 + $0x68] sm:$0x1]
        %v2024 = vld [vmem:[%s1803 + $0x6c] sm:$0xf]
        %v2025 = vld [vmem:[%s1803 + $0x70] sm:$0xf]
        %v2026 = vld [vmem:[%s1803 + $0x74] sm:$0x1]
        %v2027 = vld [vmem:[%s1803 + $0x78] sm:$0xf]
        %v2028 = vld [vmem:[%s1803 + $0x7c] sm:$0xf]
        %v2029 = vld [vmem:[%s1803 + $0x80] sm:$0x1]
        %v2030 = vld [vmem:[%s1803 + $0x84] sm:$0xf]
        %v2031 = vld [vmem:[%s1803 + $0x88] sm:$0xf]
        %v2032 = vld [vmem:[%s1803 + $0x8c] sm:$0x1]
        %v2033 = vld [vmem:[%s1803 + $0x90] sm:$0xf]
        %v2034 = vld [vmem:[%s1803 + $0x94] sm:$0xf]
        %v2035 = vld [vmem:[%s1803 + $0x98] sm:$0x1]
        %v2036 = vld [vmem:[%s1803 + $0x9c] sm:$0xf]
        %v2037 = vld [vmem:[%s1803 + $0xa0] sm:$0xf]
        %v2038 = vld [vmem:[%s1803 + $0xa4] sm:$0x1]
        %v2039 = vld [vmem:[%s1803 + $0xa8] sm:$0xf]
        %v2040 = vld [vmem:[%s1803 + $0xac] sm:$0xf]
        %v2041 = vld [vmem:[%s1803 + $0xb0] sm:$0x1]
        %v2042 = vld [vmem:[%s1803 + $0xb4] sm:$0xf]
        %v2043 = vld [vmem:[%s1803 + $0xb8] sm:$0xf]
        %v2044 = vld [vmem:[%s1803 + $0xbc] sm:$0x1]
        %v2046 = vshrl.u32 %v1997, 16
        %v2048 = vrot.slane %v2046, 4
        %v2049 = vshll.u32 %v1997, 16
        %v2051 = vrot.slane %v2049, 5
        %v2052 = vor.u32 %v2048, %v2051
        %v2053 = vrot.slane %v2052, 4
        %v2055 = vshll.u32 %v1998, 16
        %v2057 = vrot.slane %v2055, 5
        %v2058 = vsel %vm949, %v2053, %v2057
        %v2059 = vshrl.u32 %v1998, 16
        %v2061 = vrot.slane %v2059, 4
        %v2062 = vor.u32 %v2061, %v2057
        %v2063 = vrot.slane %v2062, 4
        %v2065 = vshll.u32 %v1999, 16
        %v2067 = vrot.slane %v2065, 5
        %v2068 = vsel %vm949, %v2063, %v2067
        %v2070 = vshrl.u32 %v2000, 16
        %v2072 = vrot.slane %v2070, 4
        %v2073 = vshll.u32 %v2000, 16
        %v2075 = vrot.slane %v2073, 5
        %v2076 = vor.u32 %v2072, %v2075
        %v2077 = vrot.slane %v2076, 4
        %v2079 = vshll.u32 %v2001, 16
        %v2081 = vrot.slane %v2079, 5
        %v2082 = vsel %vm949, %v2077, %v2081
        %v2083 = vshrl.u32 %v2001, 16
        %v2085 = vrot.slane %v2083, 4
        %v2086 = vor.u32 %v2085, %v2081
        %v2087 = vrot.slane %v2086, 4
        %v2089 = vshll.u32 %v2002, 16
        %v2091 = vrot.slane %v2089, 5
        %v2092 = vsel %vm949, %v2087, %v2091
        %v2094 = vshrl.u32 %v2003, 16
        %v2096 = vrot.slane %v2094, 4
        %v2097 = vshll.u32 %v2003, 16
        %v2099 = vrot.slane %v2097, 5
        %v2100 = vor.u32 %v2096, %v2099
        %v2101 = vrot.slane %v2100, 4
        %v2103 = vshll.u32 %v2004, 16
        %v2105 = vrot.slane %v2103, 5
        %v2106 = vsel %vm949, %v2101, %v2105
        %v2107 = vshrl.u32 %v2004, 16
        %v2109 = vrot.slane %v2107, 4
        %v2110 = vor.u32 %v2109, %v2105
        %v2111 = vrot.slane %v2110, 4
        %v2113 = vshll.u32 %v2005, 16
        %v2115 = vrot.slane %v2113, 5
        %v2116 = vsel %vm949, %v2111, %v2115
        %v2118 = vshrl.u32 %v2006, 16
        %v2120 = vrot.slane %v2118, 4
        %v2121 = vshll.u32 %v2006, 16
        %v2123 = vrot.slane %v2121, 5
        %v2124 = vor.u32 %v2120, %v2123
        %v2125 = vrot.slane %v2124, 4
        %v2127 = vshll.u32 %v2007, 16
        %v2129 = vrot.slane %v2127, 5
        %v2130 = vsel %vm949, %v2125, %v2129
        %v2131 = vshrl.u32 %v2007, 16
        %v2133 = vrot.slane %v2131, 4
        %v2134 = vor.u32 %v2133, %v2129
        %v2135 = vrot.slane %v2134, 4
        %v2137 = vshll.u32 %v2008, 16
        %v2139 = vrot.slane %v2137, 5
        %v2140 = vsel %vm949, %v2135, %v2139
        %v2142 = vshrl.u32 %v2009, 16
        %v2144 = vrot.slane %v2142, 4
        %v2145 = vshll.u32 %v2009, 16
        %v2147 = vrot.slane %v2145, 5
        %v2148 = vor.u32 %v2144, %v2147
        %v2149 = vrot.slane %v2148, 4
        %v2151 = vshll.u32 %v2010, 16
        %v2153 = vrot.slane %v2151, 5
        %v2154 = vsel %vm949, %v2149, %v2153
        %v2155 = vshrl.u32 %v2010, 16
        %v2157 = vrot.slane %v2155, 4
        %v2158 = vor.u32 %v2157, %v2153
        %v2159 = vrot.slane %v2158, 4
        %v2161 = vshll.u32 %v2011, 16
        %v2163 = vrot.slane %v2161, 5
        %v2164 = vsel %vm949, %v2159, %v2163
        %v2166 = vshrl.u32 %v2012, 16
        %v2168 = vrot.slane %v2166, 4
        %v2169 = vshll.u32 %v2012, 16
        %v2171 = vrot.slane %v2169, 5
        %v2172 = vor.u32 %v2168, %v2171
        %v2173 = vrot.slane %v2172, 4
        %v2175 = vshll.u32 %v2013, 16
        %v2177 = vrot.slane %v2175, 5
        %v2178 = vsel %vm949, %v2173, %v2177
        %v2179 = vshrl.u32 %v2013, 16
        %v2181 = vrot.slane %v2179, 4
        %v2182 = vor.u32 %v2181, %v2177
        %v2183 = vrot.slane %v2182, 4
        %v2185 = vshll.u32 %v2014, 16
        %v2187 = vrot.slane %v2185, 5
        %v2188 = vsel %vm949, %v2183, %v2187
        %v2190 = vshrl.u32 %v2015, 16
        %v2192 = vrot.slane %v2190, 4
        %v2193 = vshll.u32 %v2015, 16
        %v2195 = vrot.slane %v2193, 5
        %v2196 = vor.u32 %v2192, %v2195
        %v2197 = vrot.slane %v2196, 4
        %v2199 = vshll.u32 %v2016, 16
        %v2201 = vrot.slane %v2199, 5
        %v2202 = vsel %vm949, %v2197, %v2201
        %v2203 = vshrl.u32 %v2016, 16
        %v2205 = vrot.slane %v2203, 4
        %v2206 = vor.u32 %v2205, %v2201
        %v2207 = vrot.slane %v2206, 4
        %v2209 = vshll.u32 %v2017, 16
        %v2211 = vrot.slane %v2209, 5
        %v2212 = vsel %vm949, %v2207, %v2211
        %v2214 = vshrl.u32 %v2018, 16
        %v2216 = vrot.slane %v2214, 4
        %v2217 = vshll.u32 %v2018, 16
        %v2219 = vrot.slane %v2217, 5
        %v2220 = vor.u32 %v2216, %v2219
        %v2221 = vrot.slane %v2220, 4
        %v2223 = vshll.u32 %v2019, 16
        %v2225 = vrot.slane %v2223, 5
        %v2226 = vsel %vm949, %v2221, %v2225
        %v2227 = vshrl.u32 %v2019, 16
        %v2229 = vrot.slane %v2227, 4
        %v2230 = vor.u32 %v2229, %v2225
        %v2231 = vrot.slane %v2230, 4
        %v2233 = vshll.u32 %v2020, 16
        %v2235 = vrot.slane %v2233, 5
        %v2236 = vsel %vm949, %v2231, %v2235
        %v2238 = vshrl.u32 %v2021, 16
        %v2240 = vrot.slane %v2238, 4
        %v2241 = vshll.u32 %v2021, 16
        %v2243 = vrot.slane %v2241, 5
        %v2244 = vor.u32 %v2240, %v2243
        %v2245 = vrot.slane %v2244, 4
        %v2247 = vshll.u32 %v2022, 16
        %v2249 = vrot.slane %v2247, 5
        %v2250 = vsel %vm949, %v2245, %v2249
        %v2251 = vshrl.u32 %v2022, 16
        %v2253 = vrot.slane %v2251, 4
        %v2254 = vor.u32 %v2253, %v2249
        %v2255 = vrot.slane %v2254, 4
        %v2257 = vshll.u32 %v2023, 16
        %v2259 = vrot.slane %v2257, 5
        %v2260 = vsel %vm949, %v2255, %v2259
        %v2262 = vshrl.u32 %v2024, 16
        %v2264 = vrot.slane %v2262, 4
        %v2265 = vshll.u32 %v2024, 16
        %v2267 = vrot.slane %v2265, 5
        %v2268 = vor.u32 %v2264, %v2267
        %v2269 = vrot.slane %v2268, 4
        %v2271 = vshll.u32 %v2025, 16
        %v2273 = vrot.slane %v2271, 5
        %v2274 = vsel %vm949, %v2269, %v2273
        %v2275 = vshrl.u32 %v2025, 16
        %v2277 = vrot.slane %v2275, 4
        %v2278 = vor.u32 %v2277, %v2273
        %v2279 = vrot.slane %v2278, 4
        %v2281 = vshll.u32 %v2026, 16
        %v2283 = vrot.slane %v2281, 5
        %v2284 = vsel %vm949, %v2279, %v2283
        %v2286 = vshrl.u32 %v2027, 16
        %v2288 = vrot.slane %v2286, 4
        %v2289 = vshll.u32 %v2027, 16
        %v2291 = vrot.slane %v2289, 5
        %v2292 = vor.u32 %v2288, %v2291
        %v2293 = vrot.slane %v2292, 4
        %v2295 = vshll.u32 %v2028, 16
        %v2297 = vrot.slane %v2295, 5
        %v2298 = vsel %vm949, %v2293, %v2297
        %v2299 = vshrl.u32 %v2028, 16
        %v2301 = vrot.slane %v2299, 4
        %v2302 = vor.u32 %v2301, %v2297
        %v2303 = vrot.slane %v2302, 4
        %v2305 = vshll.u32 %v2029, 16
        %v2307 = vrot.slane %v2305, 5
        %v2308 = vsel %vm949, %v2303, %v2307
        %v2310 = vshrl.u32 %v2030, 16
        %v2312 = vrot.slane %v2310, 4
        %v2313 = vshll.u32 %v2030, 16
        %v2315 = vrot.slane %v2313, 5
        %v2316 = vor.u32 %v2312, %v2315
        %v2317 = vrot.slane %v2316, 4
        %v2319 = vshll.u32 %v2031, 16
        %v2321 = vrot.slane %v2319, 5
        %v2322 = vsel %vm949, %v2317, %v2321
        %v2323 = vshrl.u32 %v2031, 16
        %v2325 = vrot.slane %v2323, 4
        %v2326 = vor.u32 %v2325, %v2321
        %v2327 = vrot.slane %v2326, 4
        %v2329 = vshll.u32 %v2032, 16
        %v2331 = vrot.slane %v2329, 5
        %v2332 = vsel %vm949, %v2327, %v2331
        %v2334 = vshrl.u32 %v2033, 16
        %v2336 = vrot.slane %v2334, 4
        %v2337 = vshll.u32 %v2033, 16
        %v2339 = vrot.slane %v2337, 5
        %v2340 = vor.u32 %v2336, %v2339
        %v2341 = vrot.slane %v2340, 4
        %v2343 = vshll.u32 %v2034, 16
        %v2345 = vrot.slane %v2343, 5
        %v2346 = vsel %vm949, %v2341, %v2345
        %v2347 = vshrl.u32 %v2034, 16
        %v2349 = vrot.slane %v2347, 4
        %v2350 = vor.u32 %v2349, %v2345
        %v2351 = vrot.slane %v2350, 4
        %v2353 = vshll.u32 %v2035, 16
        %v2355 = vrot.slane %v2353, 5
        %v2356 = vsel %vm949, %v2351, %v2355
        %v2358 = vshrl.u32 %v2036, 16
        %v2360 = vrot.slane %v2358, 4
        %v2361 = vshll.u32 %v2036, 16
        %v2363 = vrot.slane %v2361, 5
        %v2364 = vor.u32 %v2360, %v2363
        %v2365 = vrot.slane %v2364, 4
        %v2367 = vshll.u32 %v2037, 16
        %v2369 = vrot.slane %v2367, 5
        %v2370 = vsel %vm949, %v2365, %v2369
        %v2371 = vshrl.u32 %v2037, 16
        %v2373 = vrot.slane %v2371, 4
        %v2374 = vor.u32 %v2373, %v2369
        %v2375 = vrot.slane %v2374, 4
        %v2377 = vshll.u32 %v2038, 16
        %v2379 = vrot.slane %v2377, 5
        %v2380 = vsel %vm949, %v2375, %v2379
        %v2382 = vshrl.u32 %v2039, 16
        %v2384 = vrot.slane %v2382, 4
        %v2385 = vshll.u32 %v2039, 16
        %v2387 = vrot.slane %v2385, 5
        %v2388 = vor.u32 %v2384, %v2387
        %v2389 = vrot.slane %v2388, 4
        %v2391 = vshll.u32 %v2040, 16
        %v2393 = vrot.slane %v2391, 5
        %v2394 = vsel %vm949, %v2389, %v2393
        %v2395 = vshrl.u32 %v2040, 16
        %v2397 = vrot.slane %v2395, 4
        %v2398 = vor.u32 %v2397, %v2393
        %v2399 = vrot.slane %v2398, 4
        %v2401 = vshll.u32 %v2041, 16
        %v2403 = vrot.slane %v2401, 5
        %v2404 = vsel %vm949, %v2399, %v2403
        %v2406 = vshrl.u32 %v2042, 16
        %v2408 = vrot.slane %v2406, 4
        %v2409 = vshll.u32 %v2042, 16
        %v2411 = vrot.slane %v2409, 5
        %v2412 = vor.u32 %v2408, %v2411
        %v2413 = vrot.slane %v2412, 4
        %v2415 = vshll.u32 %v2043, 16
        %v2417 = vrot.slane %v2415, 5
        %v2418 = vsel %vm949, %v2413, %v2417
        %v2419 = vshrl.u32 %v2043, 16
        %v2421 = vrot.slane %v2419, 4
        %v2422 = vor.u32 %v2421, %v2417
        %v2423 = vrot.slane %v2422, 4
        %v2425 = vshll.u32 %v2044, 16
        %v2427 = vrot.slane %v2425, 5
        %v2428 = vsel %vm949, %v2423, %v2427
        %2429 = vrot.lane.b32.xlu0 %v2058, 16
        %v2430 = vpop.permute.xlu0 %2429
        %2431 = vrot.lane.b32.xlu0 %v2068, 16
        %v2432 = vpop.permute.xlu0 %2431
        %2433 = vrot.lane.b32.xlu0 %v2082, 16
        %v2434 = vpop.permute.xlu0 %2433
        %2435 = vrot.lane.b32.xlu0 %v2092, 16
        %v2436 = vpop.permute.xlu0 %2435
        %2437 = vrot.lane.b32.xlu0 %v2106, 16
        %v2438 = vpop.permute.xlu0 %2437
        %2439 = vrot.lane.b32.xlu0 %v2116, 16
        %v2440 = vpop.permute.xlu0 %2439
        %2441 = vrot.lane.b32.xlu0 %v2130, 16
        %v2442 = vpop.permute.xlu0 %2441
        %2443 = vrot.lane.b32.xlu0 %v2140, 16
        %v2444 = vpop.permute.xlu0 %2443
        %2445 = vrot.lane.b32.xlu0 %v2154, 16
        %v2446 = vpop.permute.xlu0 %2445
        %2447 = vrot.lane.b32.xlu0 %v2164, 16
        %v2448 = vpop.permute.xlu0 %2447
        %2449 = vrot.lane.b32.xlu0 %v2178, 16
        %v2450 = vpop.permute.xlu0 %2449
        %2451 = vrot.lane.b32.xlu0 %v2188, 16
        %v2452 = vpop.permute.xlu0 %2451
        %2453 = vrot.lane.b32.xlu0 %v2202, 16
        %v2454 = vpop.permute.xlu0 %2453
        %2455 = vrot.lane.b32.xlu0 %v2212, 16
        %v2456 = vpop.permute.xlu0 %2455
        %2457 = vrot.lane.b32.xlu0 %v2226, 16
        %v2458 = vpop.permute.xlu0 %2457
        %2459 = vrot.lane.b32.xlu0 %v2236, 16
        %v2460 = vpop.permute.xlu0 %2459
        %2461 = vrot.lane.b32.xlu0 %v2250, 16
        %v2462 = vpop.permute.xlu0 %2461
        %2463 = vrot.lane.b32.xlu0 %v2260, 16
        %v2464 = vpop.permute.xlu0 %2463
        %2465 = vrot.lane.b32.xlu0 %v2274, 16
        %v2466 = vpop.permute.xlu0 %2465
        %2467 = vrot.lane.b32.xlu0 %v2284, 16
        %v2468 = vpop.permute.xlu0 %2467
        %2469 = vrot.lane.b32.xlu0 %v2298, 16
        %v2470 = vpop.permute.xlu0 %2469
        %2471 = vrot.lane.b32.xlu0 %v2308, 16
        %v2472 = vpop.permute.xlu0 %2471
        %2473 = vrot.lane.b32.xlu0 %v2322, 16
        %v2474 = vpop.permute.xlu0 %2473
        %2475 = vrot.lane.b32.xlu0 %v2332, 16
        %v2476 = vpop.permute.xlu0 %2475
        %2477 = vrot.lane.b32.xlu0 %v2346, 16
        %v2478 = vpop.permute.xlu0 %2477
        %2479 = vrot.lane.b32.xlu0 %v2356, 16
        %v2480 = vpop.permute.xlu0 %2479
        %2481 = vrot.lane.b32.xlu0 %v2370, 16
        %v2482 = vpop.permute.xlu0 %2481
        %2483 = vrot.lane.b32.xlu0 %v2380, 16
        %v2484 = vpop.permute.xlu0 %2483
        %2485 = vrot.lane.b32.xlu0 %v2394, 16
        %v2486 = vpop.permute.xlu0 %2485
        %2487 = vrot.lane.b32.xlu0 %v2404, 16
        %v2488 = vpop.permute.xlu0 %2487
        %2489 = vrot.lane.b32.xlu0 %v2418, 16
        %v2490 = vpop.permute.xlu0 %2489
        %2491 = vrot.lane.b32.xlu0 %v2428, 16
        %v2492 = vpop.permute.xlu0 %2491
        %vm2525 = vcmask 158848
        %2526 = vst.msk [vmem:[#allocation3] sm:$0xf] %vm2525, %v2430
        %2527 = vst.msk [vmem:[#allocation3 + $0x4] sm:$0xf] %vm2525, %v2432
        %2528 = vst.msk [vmem:[#allocation3 + $0x8] sm:$0xf] %vm2525, %v2434
        %2529 = vst.msk [vmem:[#allocation3 + $0xc] sm:$0xf] %vm2525, %v2436
        %2530 = vst.msk [vmem:[#allocation3 + $0x10] sm:$0xf] %vm2525, %v2438
        %2531 = vst.msk [vmem:[#allocation3 + $0x14] sm:$0xf] %vm2525, %v2440
        %2532 = vst.msk [vmem:[#allocation3 + $0x18] sm:$0xf] %vm2525, %v2442
        %2533 = vst.msk [vmem:[#allocation3 + $0x1c] sm:$0xf] %vm2525, %v2444
        %2534 = vst.msk [vmem:[#allocation3 + $0x20] sm:$0xf] %vm2525, %v2446
        %2535 = vst.msk [vmem:[#allocation3 + $0x24] sm:$0xf] %vm2525, %v2448
        %2536 = vst.msk [vmem:[#allocation3 + $0x28] sm:$0xf] %vm2525, %v2450
        %2537 = vst.msk [vmem:[#allocation3 + $0x2c] sm:$0xf] %vm2525, %v2452
        %2538 = vst.msk [vmem:[#allocation3 + $0x30] sm:$0xf] %vm2525, %v2454
        %2539 = vst.msk [vmem:[#allocation3 + $0x34] sm:$0xf] %vm2525, %v2456
        %2540 = vst.msk [vmem:[#allocation3 + $0x38] sm:$0xf] %vm2525, %v2458
        %2541 = vst.msk [vmem:[#allocation3 + $0x3c] sm:$0xf] %vm2525, %v2460
        %2542 = vst.msk [vmem:[#allocation3 + $0x40] sm:$0xf] %vm2525, %v2462
        %2543 = vst.msk [vmem:[#allocation3 + $0x44] sm:$0xf] %vm2525, %v2464
        %2544 = vst.msk [vmem:[#allocation3 + $0x48] sm:$0xf] %vm2525, %v2466
        %2545 = vst.msk [vmem:[#allocation3 + $0x4c] sm:$0xf] %vm2525, %v2468
        %2546 = vst.msk [vmem:[#allocation3 + $0x50] sm:$0xf] %vm2525, %v2470
        %2547 = vst.msk [vmem:[#allocation3 + $0x54] sm:$0xf] %vm2525, %v2472
        %2548 = vst.msk [vmem:[#allocation3 + $0x58] sm:$0xf] %vm2525, %v2474
        %2549 = vst.msk [vmem:[#allocation3 + $0x5c] sm:$0xf] %vm2525, %v2476
        %2550 = vst.msk [vmem:[#allocation3 + $0x60] sm:$0xf] %vm2525, %v2478
        %2551 = vst.msk [vmem:[#allocation3 + $0x64] sm:$0xf] %vm2525, %v2480
        %2552 = vst.msk [vmem:[#allocation3 + $0x68] sm:$0xf] %vm2525, %v2482
        %2553 = vst.msk [vmem:[#allocation3 + $0x6c] sm:$0xf] %vm2525, %v2484
        %2554 = vst.msk [vmem:[#allocation3 + $0x70] sm:$0xf] %vm2525, %v2486
        %2555 = vst.msk [vmem:[#allocation3 + $0x74] sm:$0xf] %vm2525, %v2488
        %2556 = vst.msk [vmem:[#allocation3 + $0x78] sm:$0xf] %vm2525, %v2490
        %2557 = vst.msk [vmem:[#allocation3 + $0x7c] sm:$0xf] %vm2525, %v2492
        %v2558 = vld [vmem:[%s1803] sm:$0xe]
        %v2559 = vld [vmem:[%s1803 + $0x4] sm:$0xf]
        %v2560 = vld [vmem:[%s1803 + $0x8] sm:$0x1]
        %v2561 = vld [vmem:[%s1803 + $0xc] sm:$0xe]
        %v2562 = vld [vmem:[%s1803 + $0x10] sm:$0xf]
        %v2563 = vld [vmem:[%s1803 + $0x14] sm:$0x1]
        %v2564 = vld [vmem:[%s1803 + $0x18] sm:$0xe]
        %v2565 = vld [vmem:[%s1803 + $0x1c] sm:$0xf]
        %v2566 = vld [vmem:[%s1803 + $0x20] sm:$0x1]
        %v2567 = vld [vmem:[%s1803 + $0x24] sm:$0xe]
        %v2568 = vld [vmem:[%s1803 + $0x28] sm:$0xf]
        %v2569 = vld [vmem:[%s1803 + $0x2c] sm:$0x1]
        %v2570 = vld [vmem:[%s1803 + $0x30] sm:$0xe]
        %v2571 = vld [vmem:[%s1803 + $0x34] sm:$0xf]
        %v2572 = vld [vmem:[%s1803 + $0x38] sm:$0x1]
        %v2573 = vld [vmem:[%s1803 + $0x3c] sm:$0xe]
        %v2574 = vld [vmem:[%s1803 + $0x40] sm:$0xf]
        %v2575 = vld [vmem:[%s1803 + $0x44] sm:$0x1]
        %v2576 = vld [vmem:[%s1803 + $0x48] sm:$0xe]
        %v2577 = vld [vmem:[%s1803 + $0x4c] sm:$0xf]
        %v2578 = vld [vmem:[%s1803 + $0x50] sm:$0x1]
        %v2579 = vld [vmem:[%s1803 + $0x54] sm:$0xe]
        %v2580 = vld [vmem:[%s1803 + $0x58] sm:$0xf]
        %v2581 = vld [vmem:[%s1803 + $0x5c] sm:$0x1]
        %v2582 = vld [vmem:[%s1803 + $0x60] sm:$0xe]
        %v2583 = vld [vmem:[%s1803 + $0x64] sm:$0xf]
        %v2584 = vld [vmem:[%s1803 + $0x68] sm:$0x1]
        %v2585 = vld [vmem:[%s1803 + $0x6c] sm:$0xe]
        %v2586 = vld [vmem:[%s1803 + $0x70] sm:$0xf]
        %v2587 = vld [vmem:[%s1803 + $0x74] sm:$0x1]
        %v2588 = vld [vmem:[%s1803 + $0x78] sm:$0xe]
        %v2589 = vld [vmem:[%s1803 + $0x7c] sm:$0xf]
        %v2590 = vld [vmem:[%s1803 + $0x80] sm:$0x1]
        %v2591 = vld [vmem:[%s1803 + $0x84] sm:$0xe]
        %v2592 = vld [vmem:[%s1803 + $0x88] sm:$0xf]
        %v2593 = vld [vmem:[%s1803 + $0x8c] sm:$0x1]
        %v2594 = vld [vmem:[%s1803 + $0x90] sm:$0xe]
        %v2595 = vld [vmem:[%s1803 + $0x94] sm:$0xf]
        %v2596 = vld [vmem:[%s1803 + $0x98] sm:$0x1]
        %v2597 = vld [vmem:[%s1803 + $0x9c] sm:$0xe]
        %v2598 = vld [vmem:[%s1803 + $0xa0] sm:$0xf]
        %v2599 = vld [vmem:[%s1803 + $0xa4] sm:$0x1]
        %v2600 = vld [vmem:[%s1803 + $0xa8] sm:$0xe]
        %v2601 = vld [vmem:[%s1803 + $0xac] sm:$0xf]
        %v2602 = vld [vmem:[%s1803 + $0xb0] sm:$0x1]
        %v2603 = vld [vmem:[%s1803 + $0xb4] sm:$0xe]
        %v2604 = vld [vmem:[%s1803 + $0xb8] sm:$0xf]
        %v2605 = vld [vmem:[%s1803 + $0xbc] sm:$0x1]
        %v2654 = vrot.slane %v2558, 5
        %v2655 = vrot.slane %v2654, 4
        %v2656 = vrot.slane %v2559, 5
        %v2657 = vsel %vm1561, %v2655, %v2656
        %v2658 = vrot.slane %v2656, 4
        %v2659 = vrot.slane %v2560, 5
        %v2660 = vsel %vm1561, %v2658, %v2659
        %v2661 = vrot.slane %v2561, 5
        %v2662 = vrot.slane %v2661, 4
        %v2663 = vrot.slane %v2562, 5
        %v2664 = vsel %vm1561, %v2662, %v2663
        %v2665 = vrot.slane %v2663, 4
        %v2666 = vrot.slane %v2563, 5
        %v2667 = vsel %vm1561, %v2665, %v2666
        %v2668 = vrot.slane %v2564, 5
        %v2669 = vrot.slane %v2668, 4
        %v2670 = vrot.slane %v2565, 5
        %v2671 = vsel %vm1561, %v2669, %v2670
        %v2672 = vrot.slane %v2670, 4
        %v2673 = vrot.slane %v2566, 5
        %v2674 = vsel %vm1561, %v2672, %v2673
        %v2675 = vrot.slane %v2567, 5
        %v2676 = vrot.slane %v2675, 4
        %v2677 = vrot.slane %v2568, 5
        %v2678 = vsel %vm1561, %v2676, %v2677
        %v2679 = vrot.slane %v2677, 4
        %v2680 = vrot.slane %v2569, 5
        %v2681 = vsel %vm1561, %v2679, %v2680
        %v2682 = vrot.slane %v2570, 5
        %v2683 = vrot.slane %v2682, 4
        %v2684 = vrot.slane %v2571, 5
        %v2685 = vsel %vm1561, %v2683, %v2684
        %v2686 = vrot.slane %v2684, 4
        %v2687 = vrot.slane %v2572, 5
        %v2688 = vsel %vm1561, %v2686, %v2687
        %v2689 = vrot.slane %v2573, 5
        %v2690 = vrot.slane %v2689, 4
        %v2691 = vrot.slane %v2574, 5
        %v2692 = vsel %vm1561, %v2690, %v2691
        %v2693 = vrot.slane %v2691, 4
        %v2694 = vrot.slane %v2575, 5
        %v2695 = vsel %vm1561, %v2693, %v2694
        %v2696 = vrot.slane %v2576, 5
        %v2697 = vrot.slane %v2696, 4
        %v2698 = vrot.slane %v2577, 5
        %v2699 = vsel %vm1561, %v2697, %v2698
        %v2700 = vrot.slane %v2698, 4
        %v2701 = vrot.slane %v2578, 5
        %v2702 = vsel %vm1561, %v2700, %v2701
        %v2703 = vrot.slane %v2579, 5
        %v2704 = vrot.slane %v2703, 4
        %v2705 = vrot.slane %v2580, 5
        %v2706 = vsel %vm1561, %v2704, %v2705
        %v2707 = vrot.slane %v2705, 4
        %v2708 = vrot.slane %v2581, 5
        %v2709 = vsel %vm1561, %v2707, %v2708
        %v2710 = vrot.slane %v2582, 5
        %v2711 = vrot.slane %v2710, 4
        %v2712 = vrot.slane %v2583, 5
        %v2713 = vsel %vm1561, %v2711, %v2712
        %v2714 = vrot.slane %v2712, 4
        %v2715 = vrot.slane %v2584, 5
        %v2716 = vsel %vm1561, %v2714, %v2715
        %v2717 = vrot.slane %v2585, 5
        %v2718 = vrot.slane %v2717, 4
        %v2719 = vrot.slane %v2586, 5
        %v2720 = vsel %vm1561, %v2718, %v2719
        %v2721 = vrot.slane %v2719, 4
        %v2722 = vrot.slane %v2587, 5
        %v2723 = vsel %vm1561, %v2721, %v2722
        %v2724 = vrot.slane %v2588, 5
        %v2725 = vrot.slane %v2724, 4
        %v2726 = vrot.slane %v2589, 5
        %v2727 = vsel %vm1561, %v2725, %v2726
        %v2728 = vrot.slane %v2726, 4
        %v2729 = vrot.slane %v2590, 5
        %v2730 = vsel %vm1561, %v2728, %v2729
        %v2731 = vrot.slane %v2591, 5
        %v2732 = vrot.slane %v2731, 4
        %v2733 = vrot.slane %v2592, 5
        %v2734 = vsel %vm1561, %v2732, %v2733
        %v2735 = vrot.slane %v2733, 4
        %v2736 = vrot.slane %v2593, 5
        %v2737 = vsel %vm1561, %v2735, %v2736
        %v2738 = vrot.slane %v2594, 5
        %v2739 = vrot.slane %v2738, 4
        %v2740 = vrot.slane %v2595, 5
        %v2741 = vsel %vm1561, %v2739, %v2740
        %v2742 = vrot.slane %v2740, 4
        %v2743 = vrot.slane %v2596, 5
        %v2744 = vsel %vm1561, %v2742, %v2743
        %v2745 = vrot.slane %v2597, 5
        %v2746 = vrot.slane %v2745, 4
        %v2747 = vrot.slane %v2598, 5
        %v2748 = vsel %vm1561, %v2746, %v2747
        %v2749 = vrot.slane %v2747, 4
        %v2750 = vrot.slane %v2599, 5
        %v2751 = vsel %vm1561, %v2749, %v2750
        %v2752 = vrot.slane %v2600, 5
        %v2753 = vrot.slane %v2752, 4
        %v2754 = vrot.slane %v2601, 5
        %v2755 = vsel %vm1561, %v2753, %v2754
        %v2756 = vrot.slane %v2754, 4
        %v2757 = vrot.slane %v2602, 5
        %v2758 = vsel %vm1561, %v2756, %v2757
        %v2759 = vrot.slane %v2603, 5
        %v2760 = vrot.slane %v2759, 4
        %v2761 = vrot.slane %v2604, 5
        %v2762 = vsel %vm1561, %v2760, %v2761
        %v2763 = vrot.slane %v2761, 4
        %v2764 = vrot.slane %v2605, 5
        %v2765 = vsel %vm1561, %v2763, %v2764
        %2766 = vrot.lane.b32.xlu0 %v2657, 20
        %v2767 = vpop.permute.xlu0 %2766
        %2768 = vrot.lane.b32.xlu0 %v2660, 20
        %v2769 = vpop.permute.xlu0 %2768
        %2770 = vrot.lane.b32.xlu0 %v2664, 20
        %v2771 = vpop.permute.xlu0 %2770
        %2772 = vrot.lane.b32.xlu0 %v2667, 20
        %v2773 = vpop.permute.xlu0 %2772
        %2774 = vrot.lane.b32.xlu0 %v2671, 20
        %v2775 = vpop.permute.xlu0 %2774
        %2776 = vrot.lane.b32.xlu0 %v2674, 20
        %v2777 = vpop.permute.xlu0 %2776
        %2778 = vrot.lane.b32.xlu0 %v2678, 20
        %v2779 = vpop.permute.xlu0 %2778
        %2780 = vrot.lane.b32.xlu0 %v2681, 20
        %v2781 = vpop.permute.xlu0 %2780
        %2782 = vrot.lane.b32.xlu0 %v2685, 20
        %v2783 = vpop.permute.xlu0 %2782
        %2784 = vrot.lane.b32.xlu0 %v2688, 20
        %v2785 = vpop.permute.xlu0 %2784
        %2786 = vrot.lane.b32.xlu0 %v2692, 20
        %v2787 = vpop.permute.xlu0 %2786
        %2788 = vrot.lane.b32.xlu0 %v2695, 20
        %v2789 = vpop.permute.xlu0 %2788
        %2790 = vrot.lane.b32.xlu0 %v2699, 20
        %v2791 = vpop.permute.xlu0 %2790
        %2792 = vrot.lane.b32.xlu0 %v2702, 20
        %v2793 = vpop.permute.xlu0 %2792
        %2794 = vrot.lane.b32.xlu0 %v2706, 20
        %v2795 = vpop.permute.xlu0 %2794
        %2796 = vrot.lane.b32.xlu0 %v2709, 20
        %v2797 = vpop.permute.xlu0 %2796
        %2798 = vrot.lane.b32.xlu0 %v2713, 20
        %v2799 = vpop.permute.xlu0 %2798
        %2800 = vrot.lane.b32.xlu0 %v2716, 20
        %v2801 = vpop.permute.xlu0 %2800
        %2802 = vrot.lane.b32.xlu0 %v2720, 20
        %v2803 = vpop.permute.xlu0 %2802
        %2804 = vrot.lane.b32.xlu0 %v2723, 20
        %v2805 = vpop.permute.xlu0 %2804
        %2806 = vrot.lane.b32.xlu0 %v2727, 20
        %v2807 = vpop.permute.xlu0 %2806
        %2808 = vrot.lane.b32.xlu0 %v2730, 20
        %v2809 = vpop.permute.xlu0 %2808
        %2810 = vrot.lane.b32.xlu0 %v2734, 20
        %v2811 = vpop.permute.xlu0 %2810
        %2812 = vrot.lane.b32.xlu0 %v2737, 20
        %v2813 = vpop.permute.xlu0 %2812
        %2814 = vrot.lane.b32.xlu0 %v2741, 20
        %v2815 = vpop.permute.xlu0 %2814
        %2816 = vrot.lane.b32.xlu0 %v2744, 20
        %v2817 = vpop.permute.xlu0 %2816
        %2818 = vrot.lane.b32.xlu0 %v2748, 20
        %v2819 = vpop.permute.xlu0 %2818
        %2820 = vrot.lane.b32.xlu0 %v2751, 20
        %v2821 = vpop.permute.xlu0 %2820
        %2822 = vrot.lane.b32.xlu0 %v2755, 20
        %v2823 = vpop.permute.xlu0 %2822
        %2824 = vrot.lane.b32.xlu0 %v2758, 20
        %v2825 = vpop.permute.xlu0 %2824
        %2826 = vrot.lane.b32.xlu0 %v2762, 20
        %v2827 = vpop.permute.xlu0 %2826
        %2828 = vrot.lane.b32.xlu0 %v2765, 20
        %v2829 = vpop.permute.xlu0 %2828
        %vm2862 = vcmask 191648
        %2863 = vst.msk [vmem:[#allocation3] sm:$0xf] %vm2862, %v2767
        %2864 = vst.msk [vmem:[#allocation3 + $0x4] sm:$0xf] %vm2862, %v2769
        %2865 = vst.msk [vmem:[#allocation3 + $0x8] sm:$0xf] %vm2862, %v2771
        %2866 = vst.msk [vmem:[#allocation3 + $0xc] sm:$0xf] %vm2862, %v2773
        %2867 = vst.msk [vmem:[#allocation3 + $0x10] sm:$0xf] %vm2862, %v2775
        %2868 = vst.msk [vmem:[#allocation3 + $0x14] sm:$0xf] %vm2862, %v2777
        %2869 = vst.msk [vmem:[#allocation3 + $0x18] sm:$0xf] %vm2862, %v2779
        %2870 = vst.msk [vmem:[#allocation3 + $0x1c] sm:$0xf] %vm2862, %v2781
        %2871 = vst.msk [vmem:[#allocation3 + $0x20] sm:$0xf] %vm2862, %v2783
        %2872 = vst.msk [vmem:[#allocation3 + $0x24] sm:$0xf] %vm2862, %v2785
        %2873 = vst.msk [vmem:[#allocation3 + $0x28] sm:$0xf] %vm2862, %v2787
        %2874 = vst.msk [vmem:[#allocation3 + $0x2c] sm:$0xf] %vm2862, %v2789
        %2875 = vst.msk [vmem:[#allocation3 + $0x30] sm:$0xf] %vm2862, %v2791
        %2876 = vst.msk [vmem:[#allocation3 + $0x34] sm:$0xf] %vm2862, %v2793
        %2877 = vst.msk [vmem:[#allocation3 + $0x38] sm:$0xf] %vm2862, %v2795
        %2878 = vst.msk [vmem:[#allocation3 + $0x3c] sm:$0xf] %vm2862, %v2797
        %2879 = vst.msk [vmem:[#allocation3 + $0x40] sm:$0xf] %vm2862, %v2799
        %2880 = vst.msk [vmem:[#allocation3 + $0x44] sm:$0xf] %vm2862, %v2801
        %2881 = vst.msk [vmem:[#allocation3 + $0x48] sm:$0xf] %vm2862, %v2803
        %2882 = vst.msk [vmem:[#allocation3 + $0x4c] sm:$0xf] %vm2862, %v2805
        %2883 = vst.msk [vmem:[#allocation3 + $0x50] sm:$0xf] %vm2862, %v2807
        %2884 = vst.msk [vmem:[#allocation3 + $0x54] sm:$0xf] %vm2862, %v2809
        %2885 = vst.msk [vmem:[#allocation3 + $0x58] sm:$0xf] %vm2862, %v2811
        %2886 = vst.msk [vmem:[#allocation3 + $0x5c] sm:$0xf] %vm2862, %v2813
        %2887 = vst.msk [vmem:[#allocation3 + $0x60] sm:$0xf] %vm2862, %v2815
        %2888 = vst.msk [vmem:[#allocation3 + $0x64] sm:$0xf] %vm2862, %v2817
        %2889 = vst.msk [vmem:[#allocation3 + $0x68] sm:$0xf] %vm2862, %v2819
        %2890 = vst.msk [vmem:[#allocation3 + $0x6c] sm:$0xf] %vm2862, %v2821
        %2891 = vst.msk [vmem:[#allocation3 + $0x70] sm:$0xf] %vm2862, %v2823
        %2892 = vst.msk [vmem:[#allocation3 + $0x74] sm:$0xf] %vm2862, %v2825
        %2893 = vst.msk [vmem:[#allocation3 + $0x78] sm:$0xf] %vm2862, %v2827
        %2894 = vst.msk [vmem:[#allocation3 + $0x7c] sm:$0xf] %vm2862, %v2829
        %v2895 = vld [vmem:[%s716] sm:$0xf]
        %v2896 = vld [vmem:[%s716 + $0x4] sm:$0xf]
        %v2897 = vld [vmem:[%s716 + $0xc] sm:$0xf]
        %v2898 = vld [vmem:[%s716 + $0x10] sm:$0xf]
        %v2899 = vld [vmem:[%s716 + $0x18] sm:$0xf]
        %v2900 = vld [vmem:[%s716 + $0x1c] sm:$0xf]
        %v2901 = vld [vmem:[%s716 + $0x24] sm:$0xf]
        %v2902 = vld [vmem:[%s716 + $0x28] sm:$0xf]
        %v2903 = vld [vmem:[%s716 + $0x30] sm:$0xf]
        %v2904 = vld [vmem:[%s716 + $0x34] sm:$0xf]
        %v2905 = vld [vmem:[%s716 + $0x3c] sm:$0xf]
        %v2906 = vld [vmem:[%s716 + $0x40] sm:$0xf]
        %v2907 = vld [vmem:[%s716 + $0x48] sm:$0xf]
        %v2908 = vld [vmem:[%s716 + $0x4c] sm:$0xf]
        %v2909 = vld [vmem:[%s716 + $0x54] sm:$0xf]
        %v2910 = vld [vmem:[%s716 + $0x58] sm:$0xf]
        %v2911 = vld [vmem:[%s716 + $0x60] sm:$0xf]
        %v2912 = vld [vmem:[%s716 + $0x64] sm:$0xf]
        %v2913 = vld [vmem:[%s716 + $0x6c] sm:$0xf]
        %v2914 = vld [vmem:[%s716 + $0x70] sm:$0xf]
        %v2915 = vld [vmem:[%s716 + $0x78] sm:$0xf]
        %v2916 = vld [vmem:[%s716 + $0x7c] sm:$0xf]
        %v2917 = vld [vmem:[%s716 + $0x84] sm:$0xf]
        %v2918 = vld [vmem:[%s716 + $0x88] sm:$0xf]
        %v2919 = vld [vmem:[%s716 + $0x90] sm:$0xf]
        %v2920 = vld [vmem:[%s716 + $0x94] sm:$0xf]
        %v2921 = vld [vmem:[%s716 + $0x9c] sm:$0xf]
        %v2922 = vld [vmem:[%s716 + $0xa0] sm:$0xf]
        %v2923 = vld [vmem:[%s716 + $0xa8] sm:$0xf]
        %v2924 = vld [vmem:[%s716 + $0xac] sm:$0xf]
        %v2925 = vld [vmem:[%s716 + $0xb4] sm:$0xf]
        %v2926 = vld [vmem:[%s716 + $0xb8] sm:$0xf]
        %2959 = vrot.lane.b32.xlu0 %v2895, 24
        %v2960 = vpop.permute.xlu0 %2959
        %2961 = vrot.lane.b32.xlu0 %v2896, 24
        %v2962 = vpop.permute.xlu0 %2961
        %2963 = vrot.lane.b32.xlu0 %v2897, 24
        %v2964 = vpop.permute.xlu0 %2963
        %2965 = vrot.lane.b32.xlu0 %v2898, 24
        %v2966 = vpop.permute.xlu0 %2965
        %2967 = vrot.lane.b32.xlu0 %v2899, 24
        %v2968 = vpop.permute.xlu0 %2967
        %2969 = vrot.lane.b32.xlu0 %v2900, 24
        %v2970 = vpop.permute.xlu0 %2969
        %2971 = vrot.lane.b32.xlu0 %v2901, 24
        %v2972 = vpop.permute.xlu0 %2971
        %2973 = vrot.lane.b32.xlu0 %v2902, 24
        %v2974 = vpop.permute.xlu0 %2973
        %2975 = vrot.lane.b32.xlu0 %v2903, 24
        %v2976 = vpop.permute.xlu0 %2975
        %2977 = vrot.lane.b32.xlu0 %v2904, 24
        %v2978 = vpop.permute.xlu0 %2977
        %2979 = vrot.lane.b32.xlu0 %v2905, 24
        %v2980 = vpop.permute.xlu0 %2979
        %2981 = vrot.lane.b32.xlu0 %v2906, 24
        %v2982 = vpop.permute.xlu0 %2981
        %2983 = vrot.lane.b32.xlu0 %v2907, 24
        %v2984 = vpop.permute.xlu0 %2983
        %2985 = vrot.lane.b32.xlu0 %v2908, 24
        %v2986 = vpop.permute.xlu0 %2985
        %2987 = vrot.lane.b32.xlu0 %v2909, 24
        %v2988 = vpop.permute.xlu0 %2987
        %2989 = vrot.lane.b32.xlu0 %v2910, 24
        %v2990 = vpop.permute.xlu0 %2989
        %2991 = vrot.lane.b32.xlu0 %v2911, 24
        %v2992 = vpop.permute.xlu0 %2991
        %2993 = vrot.lane.b32.xlu0 %v2912, 24
        %v2994 = vpop.permute.xlu0 %2993
        %2995 = vrot.lane.b32.xlu0 %v2913, 24
        %v2996 = vpop.permute.xlu0 %2995
        %2997 = vrot.lane.b32.xlu0 %v2914, 24
        %v2998 = vpop.permute.xlu0 %2997
        %2999 = vrot.lane.b32.xlu0 %v2915, 24
        %v3000 = vpop.permute.xlu0 %2999
        %3001 = vrot.lane.b32.xlu0 %v2916, 24
        %v3002 = vpop.permute.xlu0 %3001
        %3003 = vrot.lane.b32.xlu0 %v2917, 24
        %v3004 = vpop.permute.xlu0 %3003
        %3005 = vrot.lane.b32.xlu0 %v2918, 24
        %v3006 = vpop.permute.xlu0 %3005
        %3007 = vrot.lane.b32.xlu0 %v2919, 24
        %v3008 = vpop.permute.xlu0 %3007
        %3009 = vrot.lane.b32.xlu0 %v2920, 24
        %v3010 = vpop.permute.xlu0 %3009
        %3011 = vrot.lane.b32.xlu0 %v2921, 24
        %v3012 = vpop.permute.xlu0 %3011
        %3013 = vrot.lane.b32.xlu0 %v2922, 24
        %v3014 = vpop.permute.xlu0 %3013
        %3015 = vrot.lane.b32.xlu0 %v2923, 24
        %v3016 = vpop.permute.xlu0 %3015
        %3017 = vrot.lane.b32.xlu0 %v2924, 24
        %v3018 = vpop.permute.xlu0 %3017
        %3019 = vrot.lane.b32.xlu0 %v2925, 24
        %v3020 = vpop.permute.xlu0 %3019
        %3021 = vrot.lane.b32.xlu0 %v2926, 24
        %v3022 = vpop.permute.xlu0 %3021
        %vm3055 = vcmask 224448
        %3056 = vst.msk [vmem:[#allocation3] sm:$0xf] %vm3055, %v2960
        %3057 = vst.msk [vmem:[#allocation3 + $0x4] sm:$0xf] %vm3055, %v2962
        %3058 = vst.msk [vmem:[#allocation3 + $0x8] sm:$0xf] %vm3055, %v2964
        %3059 = vst.msk [vmem:[#allocation3 + $0xc] sm:$0xf] %vm3055, %v2966
        %3060 = vst.msk [vmem:[#allocation3 + $0x10] sm:$0xf] %vm3055, %v2968
        %3061 = vst.msk [vmem:[#allocation3 + $0x14] sm:$0xf] %vm3055, %v2970
        %3062 = vst.msk [vmem:[#allocation3 + $0x18] sm:$0xf] %vm3055, %v2972
        %3063 = vst.msk [vmem:[#allocation3 + $0x1c] sm:$0xf] %vm3055, %v2974
        %3064 = vst.msk [vmem:[#allocation3 + $0x20] sm:$0xf] %vm3055, %v2976
        %3065 = vst.msk [vmem:[#allocation3 + $0x24] sm:$0xf] %vm3055, %v2978
        %3066 = vst.msk [vmem:[#allocation3 + $0x28] sm:$0xf] %vm3055, %v2980
        %3067 = vst.msk [vmem:[#allocation3 + $0x2c] sm:$0xf] %vm3055, %v2982
        %3068 = vst.msk [vmem:[#allocation3 + $0x30] sm:$0xf] %vm3055, %v2984
        %3069 = vst.msk [vmem:[#allocation3 + $0x34] sm:$0xf] %vm3055, %v2986
        %3070 = vst.msk [vmem:[#allocation3 + $0x38] sm:$0xf] %vm3055, %v2988
        %3071 = vst.msk [vmem:[#allocation3 + $0x3c] sm:$0xf] %vm3055, %v2990
        %3072 = vst.msk [vmem:[#allocation3 + $0x40] sm:$0xf] %vm3055, %v2992
        %3073 = vst.msk [vmem:[#allocation3 + $0x44] sm:$0xf] %vm3055, %v2994
        %3074 = vst.msk [vmem:[#allocation3 + $0x48] sm:$0xf] %vm3055, %v2996
        %3075 = vst.msk [vmem:[#allocation3 + $0x4c] sm:$0xf] %vm3055, %v2998
        %3076 = vst.msk [vmem:[#allocation3 + $0x50] sm:$0xf] %vm3055, %v3000
        %3077 = vst.msk [vmem:[#allocation3 + $0x54] sm:$0xf] %vm3055, %v3002
        %3078 = vst.msk [vmem:[#allocation3 + $0x58] sm:$0xf] %vm3055, %v3004
        %3079 = vst.msk [vmem:[#allocation3 + $0x5c] sm:$0xf] %vm3055, %v3006
        %3080 = vst.msk [vmem:[#allocation3 + $0x60] sm:$0xf] %vm3055, %v3008
        %3081 = vst.msk [vmem:[#allocation3 + $0x64] sm:$0xf] %vm3055, %v3010
        %3082 = vst.msk [vmem:[#allocation3 + $0x68] sm:$0xf] %vm3055, %v3012
        %3083 = vst.msk [vmem:[#allocation3 + $0x6c] sm:$0xf] %vm3055, %v3014
        %3084 = vst.msk [vmem:[#allocation3 + $0x70] sm:$0xf] %vm3055, %v3016
        %3085 = vst.msk [vmem:[#allocation3 + $0x74] sm:$0xf] %vm3055, %v3018
        %3086 = vst.msk [vmem:[#allocation3 + $0x78] sm:$0xf] %vm3055, %v3020
        %3087 = vst.msk [vmem:[#allocation3 + $0x7c] sm:$0xf] %vm3055, %v3022
        %v3088 = vld [vmem:[%s716] sm:$0xf]
        %v3089 = vld [vmem:[%s716 + $0x4] sm:$0xf]
        %v3090 = vld [vmem:[%s716 + $0x8] sm:$0x1]
        %v3091 = vld [vmem:[%s716 + $0xc] sm:$0xf]
        %v3092 = vld [vmem:[%s716 + $0x10] sm:$0xf]
        %v3093 = vld [vmem:[%s716 + $0x14] sm:$0x1]
        %v3094 = vld [vmem:[%s716 + $0x18] sm:$0xf]
        %v3095 = vld [vmem:[%s716 + $0x1c] sm:$0xf]
        %v3096 = vld [vmem:[%s716 + $0x20] sm:$0x1]
        %v3097 = vld [vmem:[%s716 + $0x24] sm:$0xf]
        %v3098 = vld [vmem:[%s716 + $0x28] sm:$0xf]
        %v3099 = vld [vmem:[%s716 + $0x2c] sm:$0x1]
        %v3100 = vld [vmem:[%s716 + $0x30] sm:$0xf]
        %v3101 = vld [vmem:[%s716 + $0x34] sm:$0xf]
        %v3102 = vld [vmem:[%s716 + $0x38] sm:$0x1]
        %v3103 = vld [vmem:[%s716 + $0x3c] sm:$0xf]
        %v3104 = vld [vmem:[%s716 + $0x40] sm:$0xf]
        %v3105 = vld [vmem:[%s716 + $0x44] sm:$0x1]
        %v3106 = vld [vmem:[%s716 + $0x48] sm:$0xf]
        %v3107 = vld [vmem:[%s716 + $0x4c] sm:$0xf]
        %v3108 = vld [vmem:[%s716 + $0x50] sm:$0x1]
        %v3109 = vld [vmem:[%s716 + $0x54] sm:$0xf]
        %v3110 = vld [vmem:[%s716 + $0x58] sm:$0xf]
        %v3111 = vld [vmem:[%s716 + $0x5c] sm:$0x1]
        %v3112 = vld [vmem:[%s716 + $0x60] sm:$0xf]
        %v3113 = vld [vmem:[%s716 + $0x64] sm:$0xf]
        %v3114 = vld [vmem:[%s716 + $0x68] sm:$0x1]
        %v3115 = vld [vmem:[%s716 + $0x6c] sm:$0xf]
        %v3116 = vld [vmem:[%s716 + $0x70] sm:$0xf]
        %v3117 = vld [vmem:[%s716 + $0x74] sm:$0x1]
        %v3118 = vld [vmem:[%s716 + $0x78] sm:$0xf]
        %v3119 = vld [vmem:[%s716 + $0x7c] sm:$0xf]
        %v3120 = vld [vmem:[%s716 + $0x80] sm:$0x1]
        %v3121 = vld [vmem:[%s716 + $0x84] sm:$0xf]
        %v3122 = vld [vmem:[%s716 + $0x88] sm:$0xf]
        %v3123 = vld [vmem:[%s716 + $0x8c] sm:$0x1]
        %v3124 = vld [vmem:[%s716 + $0x90] sm:$0xf]
        %v3125 = vld [vmem:[%s716 + $0x94] sm:$0xf]
        %v3126 = vld [vmem:[%s716 + $0x98] sm:$0x1]
        %v3127 = vld [vmem:[%s716 + $0x9c] sm:$0xf]
        %v3128 = vld [vmem:[%s716 + $0xa0] sm:$0xf]
        %v3129 = vld [vmem:[%s716 + $0xa4] sm:$0x1]
        %v3130 = vld [vmem:[%s716 + $0xa8] sm:$0xf]
        %v3131 = vld [vmem:[%s716 + $0xac] sm:$0xf]
        %v3132 = vld [vmem:[%s716 + $0xb0] sm:$0x1]
        %v3133 = vld [vmem:[%s716 + $0xb4] sm:$0xf]
        %v3134 = vld [vmem:[%s716 + $0xb8] sm:$0xf]
        %v3135 = vld [vmem:[%s716 + $0xbc] sm:$0x1]
        %v3137 = vshrl.u32 %v3088, 16
        %v3139 = vrot.slane %v3137, 4
        %v3140 = vshll.u32 %v3088, 16
        %v3142 = vrot.slane %v3140, 5
        %v3143 = vor.u32 %v3139, %v3142
        %v3144 = vrot.slane %v3143, 4
        %v3146 = vshll.u32 %v3089, 16
        %v3148 = vrot.slane %v3146, 5
        %v3149 = vsel %vm949, %v3144, %v3148
        %v3150 = vshrl.u32 %v3089, 16
        %v3152 = vrot.slane %v3150, 4
        %v3153 = vor.u32 %v3152, %v3148
        %v3154 = vrot.slane %v3153, 4
        %v3156 = vshll.u32 %v3090, 16
        %v3158 = vrot.slane %v3156, 5
        %v3159 = vsel %vm949, %v3154, %v3158
        %v3161 = vshrl.u32 %v3091, 16
        %v3163 = vrot.slane %v3161, 4
        %v3164 = vshll.u32 %v3091, 16
        %v3166 = vrot.slane %v3164, 5
        %v3167 = vor.u32 %v3163, %v3166
        %v3168 = vrot.slane %v3167, 4
        %v3170 = vshll.u32 %v3092, 16
        %v3172 = vrot.slane %v3170, 5
        %v3173 = vsel %vm949, %v3168, %v3172
        %v3174 = vshrl.u32 %v3092, 16
        %v3176 = vrot.slane %v3174, 4
        %v3177 = vor.u32 %v3176, %v3172
        %v3178 = vrot.slane %v3177, 4
        %v3180 = vshll.u32 %v3093, 16
        %v3182 = vrot.slane %v3180, 5
        %v3183 = vsel %vm949, %v3178, %v3182
        %v3185 = vshrl.u32 %v3094, 16
        %v3187 = vrot.slane %v3185, 4
        %v3188 = vshll.u32 %v3094, 16
        %v3190 = vrot.slane %v3188, 5
        %v3191 = vor.u32 %v3187, %v3190
        %v3192 = vrot.slane %v3191, 4
        %v3194 = vshll.u32 %v3095, 16
        %v3196 = vrot.slane %v3194, 5
        %v3197 = vsel %vm949, %v3192, %v3196
        %v3198 = vshrl.u32 %v3095, 16
        %v3200 = vrot.slane %v3198, 4
        %v3201 = vor.u32 %v3200, %v3196
        %v3202 = vrot.slane %v3201, 4
        %v3204 = vshll.u32 %v3096, 16
        %v3206 = vrot.slane %v3204, 5
        %v3207 = vsel %vm949, %v3202, %v3206
        %v3209 = vshrl.u32 %v3097, 16
        %v3211 = vrot.slane %v3209, 4
        %v3212 = vshll.u32 %v3097, 16
        %v3214 = vrot.slane %v3212, 5
        %v3215 = vor.u32 %v3211, %v3214
        %v3216 = vrot.slane %v3215, 4
        %v3218 = vshll.u32 %v3098, 16
        %v3220 = vrot.slane %v3218, 5
        %v3221 = vsel %vm949, %v3216, %v3220
        %v3222 = vshrl.u32 %v3098, 16
        %v3224 = vrot.slane %v3222, 4
        %v3225 = vor.u32 %v3224, %v3220
        %v3226 = vrot.slane %v3225, 4
        %v3228 = vshll.u32 %v3099, 16
        %v3230 = vrot.slane %v3228, 5
        %v3231 = vsel %vm949, %v3226, %v3230
        %v3233 = vshrl.u32 %v3100, 16
        %v3235 = vrot.slane %v3233, 4
        %v3236 = vshll.u32 %v3100, 16
        %v3238 = vrot.slane %v3236, 5
        %v3239 = vor.u32 %v3235, %v3238
        %v3240 = vrot.slane %v3239, 4
        %v3242 = vshll.u32 %v3101, 16
        %v3244 = vrot.slane %v3242, 5
        %v3245 = vsel %vm949, %v3240, %v3244
        %v3246 = vshrl.u32 %v3101, 16
        %v3248 = vrot.slane %v3246, 4
        %v3249 = vor.u32 %v3248, %v3244
        %v3250 = vrot.slane %v3249, 4
        %v3252 = vshll.u32 %v3102, 16
        %v3254 = vrot.slane %v3252, 5
        %v3255 = vsel %vm949, %v3250, %v3254
        %v3257 = vshrl.u32 %v3103, 16
        %v3259 = vrot.slane %v3257, 4
        %v3260 = vshll.u32 %v3103, 16
        %v3262 = vrot.slane %v3260, 5
        %v3263 = vor.u32 %v3259, %v3262
        %v3264 = vrot.slane %v3263, 4
        %v3266 = vshll.u32 %v3104, 16
        %v3268 = vrot.slane %v3266, 5
        %v3269 = vsel %vm949, %v3264, %v3268
        %v3270 = vshrl.u32 %v3104, 16
        %v3272 = vrot.slane %v3270, 4
        %v3273 = vor.u32 %v3272, %v3268
        %v3274 = vrot.slane %v3273, 4
        %v3276 = vshll.u32 %v3105, 16
        %v3278 = vrot.slane %v3276, 5
        %v3279 = vsel %vm949, %v3274, %v3278
        %v3281 = vshrl.u32 %v3106, 16
        %v3283 = vrot.slane %v3281, 4
        %v3284 = vshll.u32 %v3106, 16
        %v3286 = vrot.slane %v3284, 5
        %v3287 = vor.u32 %v3283, %v3286
        %v3288 = vrot.slane %v3287, 4
        %v3290 = vshll.u32 %v3107, 16
        %v3292 = vrot.slane %v3290, 5
        %v3293 = vsel %vm949, %v3288, %v3292
        %v3294 = vshrl.u32 %v3107, 16
        %v3296 = vrot.slane %v3294, 4
        %v3297 = vor.u32 %v3296, %v3292
        %v3298 = vrot.slane %v3297, 4
        %v3300 = vshll.u32 %v3108, 16
        %v3302 = vrot.slane %v3300, 5
        %v3303 = vsel %vm949, %v3298, %v3302
        %v3305 = vshrl.u32 %v3109, 16
        %v3307 = vrot.slane %v3305, 4
        %v3308 = vshll.u32 %v3109, 16
        %v3310 = vrot.slane %v3308, 5
        %v3311 = vor.u32 %v3307, %v3310
        %v3312 = vrot.slane %v3311, 4
        %v3314 = vshll.u32 %v3110, 16
        %v3316 = vrot.slane %v3314, 5
        %v3317 = vsel %vm949, %v3312, %v3316
        %v3318 = vshrl.u32 %v3110, 16
        %v3320 = vrot.slane %v3318, 4
        %v3321 = vor.u32 %v3320, %v3316
        %v3322 = vrot.slane %v3321, 4
        %v3324 = vshll.u32 %v3111, 16
        %v3326 = vrot.slane %v3324, 5
        %v3327 = vsel %vm949, %v3322, %v3326
        %v3329 = vshrl.u32 %v3112, 16
        %v3331 = vrot.slane %v3329, 4
        %v3332 = vshll.u32 %v3112, 16
        %v3334 = vrot.slane %v3332, 5
        %v3335 = vor.u32 %v3331, %v3334
        %v3336 = vrot.slane %v3335, 4
        %v3338 = vshll.u32 %v3113, 16
        %v3340 = vrot.slane %v3338, 5
        %v3341 = vsel %vm949, %v3336, %v3340
        %v3342 = vshrl.u32 %v3113, 16
        %v3344 = vrot.slane %v3342, 4
        %v3345 = vor.u32 %v3344, %v3340
        %v3346 = vrot.slane %v3345, 4
        %v3348 = vshll.u32 %v3114, 16
        %v3350 = vrot.slane %v3348, 5
        %v3351 = vsel %vm949, %v3346, %v3350
        %v3353 = vshrl.u32 %v3115, 16
        %v3355 = vrot.slane %v3353, 4
        %v3356 = vshll.u32 %v3115, 16
        %v3358 = vrot.slane %v3356, 5
        %v3359 = vor.u32 %v3355, %v3358
        %v3360 = vrot.slane %v3359, 4
        %v3362 = vshll.u32 %v3116, 16
        %v3364 = vrot.slane %v3362, 5
        %v3365 = vsel %vm949, %v3360, %v3364
        %v3366 = vshrl.u32 %v3116, 16
        %v3368 = vrot.slane %v3366, 4
        %v3369 = vor.u32 %v3368, %v3364
        %v3370 = vrot.slane %v3369, 4
        %v3372 = vshll.u32 %v3117, 16
        %v3374 = vrot.slane %v3372, 5
        %v3375 = vsel %vm949, %v3370, %v3374
        %v3377 = vshrl.u32 %v3118, 16
        %v3379 = vrot.slane %v3377, 4
        %v3380 = vshll.u32 %v3118, 16
        %v3382 = vrot.slane %v3380, 5
        %v3383 = vor.u32 %v3379, %v3382
        %v3384 = vrot.slane %v3383, 4
        %v3386 = vshll.u32 %v3119, 16
        %v3388 = vrot.slane %v3386, 5
        %v3389 = vsel %vm949, %v3384, %v3388
        %v3390 = vshrl.u32 %v3119, 16
        %v3392 = vrot.slane %v3390, 4
        %v3393 = vor.u32 %v3392, %v3388
        %v3394 = vrot.slane %v3393, 4
        %v3396 = vshll.u32 %v3120, 16
        %v3398 = vrot.slane %v3396, 5
        %v3399 = vsel %vm949, %v3394, %v3398
        %v3401 = vshrl.u32 %v3121, 16
        %v3403 = vrot.slane %v3401, 4
        %v3404 = vshll.u32 %v3121, 16
        %v3406 = vrot.slane %v3404, 5
        %v3407 = vor.u32 %v3403, %v3406
        %v3408 = vrot.slane %v3407, 4
        %v3410 = vshll.u32 %v3122, 16
        %v3412 = vrot.slane %v3410, 5
        %v3413 = vsel %vm949, %v3408, %v3412
        %v3414 = vshrl.u32 %v3122, 16
        %v3416 = vrot.slane %v3414, 4
        %v3417 = vor.u32 %v3416, %v3412
        %v3418 = vrot.slane %v3417, 4
        %v3420 = vshll.u32 %v3123, 16
        %v3422 = vrot.slane %v3420, 5
        %v3423 = vsel %vm949, %v3418, %v3422
        %v3425 = vshrl.u32 %v3124, 16
        %v3427 = vrot.slane %v3425, 4
        %v3428 = vshll.u32 %v3124, 16
        %v3430 = vrot.slane %v3428, 5
        %v3431 = vor.u32 %v3427, %v3430
        %v3432 = vrot.slane %v3431, 4
        %v3434 = vshll.u32 %v3125, 16
        %v3436 = vrot.slane %v3434, 5
        %v3437 = vsel %vm949, %v3432, %v3436
        %v3438 = vshrl.u32 %v3125, 16
        %v3440 = vrot.slane %v3438, 4
        %v3441 = vor.u32 %v3440, %v3436
        %v3442 = vrot.slane %v3441, 4
        %v3444 = vshll.u32 %v3126, 16
        %v3446 = vrot.slane %v3444, 5
        %v3447 = vsel %vm949, %v3442, %v3446
        %v3449 = vshrl.u32 %v3127, 16
        %v3451 = vrot.slane %v3449, 4
        %v3452 = vshll.u32 %v3127, 16
        %v3454 = vrot.slane %v3452, 5
        %v3455 = vor.u32 %v3451, %v3454
        %v3456 = vrot.slane %v3455, 4
        %v3458 = vshll.u32 %v3128, 16
        %v3460 = vrot.slane %v3458, 5
        %v3461 = vsel %vm949, %v3456, %v3460
        %v3462 = vshrl.u32 %v3128, 16
        %v3464 = vrot.slane %v3462, 4
        %v3465 = vor.u32 %v3464, %v3460
        %v3466 = vrot.slane %v3465, 4
        %v3468 = vshll.u32 %v3129, 16
        %v3470 = vrot.slane %v3468, 5
        %v3471 = vsel %vm949, %v3466, %v3470
        %v3473 = vshrl.u32 %v3130, 16
        %v3475 = vrot.slane %v3473, 4
        %v3476 = vshll.u32 %v3130, 16
        %v3478 = vrot.slane %v3476, 5
        %v3479 = vor.u32 %v3475, %v3478
        %v3480 = vrot.slane %v3479, 4
        %v3482 = vshll.u32 %v3131, 16
        %v3484 = vrot.slane %v3482, 5
        %v3485 = vsel %vm949, %v3480, %v3484
        %v3486 = vshrl.u32 %v3131, 16
        %v3488 = vrot.slane %v3486, 4
        %v3489 = vor.u32 %v3488, %v3484
        %v3490 = vrot.slane %v3489, 4
        %v3492 = vshll.u32 %v3132, 16
        %v3494 = vrot.slane %v3492, 5
        %v3495 = vsel %vm949, %v3490, %v3494
        %v3497 = vshrl.u32 %v3133, 16
        %v3499 = vrot.slane %v3497, 4
        %v3500 = vshll.u32 %v3133, 16
        %v3502 = vrot.slane %v3500, 5
        %v3503 = vor.u32 %v3499, %v3502
        %v3504 = vrot.slane %v3503, 4
        %v3506 = vshll.u32 %v3134, 16
        %v3508 = vrot.slane %v3506, 5
        %v3509 = vsel %vm949, %v3504, %v3508
        %v3510 = vshrl.u32 %v3134, 16
        %v3512 = vrot.slane %v3510, 4
        %v3513 = vor.u32 %v3512, %v3508
        %v3514 = vrot.slane %v3513, 4
        %v3516 = vshll.u32 %v3135, 16
        %v3518 = vrot.slane %v3516, 5
        %v3519 = vsel %vm949, %v3514, %v3518
        %3520 = vrot.lane.b32.xlu0 %v3149, 28
        %v3521 = vpop.permute.xlu0 %3520
        %3522 = vrot.lane.b32.xlu0 %v3159, 28
        %v3523 = vpop.permute.xlu0 %3522
        %3524 = vrot.lane.b32.xlu0 %v3173, 28
        %v3525 = vpop.permute.xlu0 %3524
        %3526 = vrot.lane.b32.xlu0 %v3183, 28
        %v3527 = vpop.permute.xlu0 %3526
        %3528 = vrot.lane.b32.xlu0 %v3197, 28
        %v3529 = vpop.permute.xlu0 %3528
        %3530 = vrot.lane.b32.xlu0 %v3207, 28
        %v3531 = vpop.permute.xlu0 %3530
        %3532 = vrot.lane.b32.xlu0 %v3221, 28
        %v3533 = vpop.permute.xlu0 %3532
        %3534 = vrot.lane.b32.xlu0 %v3231, 28
        %v3535 = vpop.permute.xlu0 %3534
        %3536 = vrot.lane.b32.xlu0 %v3245, 28
        %v3537 = vpop.permute.xlu0 %3536
        %3538 = vrot.lane.b32.xlu0 %v3255, 28
        %v3539 = vpop.permute.xlu0 %3538
        %3540 = vrot.lane.b32.xlu0 %v3269, 28
        %v3541 = vpop.permute.xlu0 %3540
        %3542 = vrot.lane.b32.xlu0 %v3279, 28
        %v3543 = vpop.permute.xlu0 %3542
        %3544 = vrot.lane.b32.xlu0 %v3293, 28
        %v3545 = vpop.permute.xlu0 %3544
        %3546 = vrot.lane.b32.xlu0 %v3303, 28
        %v3547 = vpop.permute.xlu0 %3546
        %3548 = vrot.lane.b32.xlu0 %v3317, 28
        %v3549 = vpop.permute.xlu0 %3548
        %3550 = vrot.lane.b32.xlu0 %v3327, 28
        %v3551 = vpop.permute.xlu0 %3550
        %3552 = vrot.lane.b32.xlu0 %v3341, 28
        %v3553 = vpop.permute.xlu0 %3552
        %3554 = vrot.lane.b32.xlu0 %v3351, 28
        %v3555 = vpop.permute.xlu0 %3554
        %3556 = vrot.lane.b32.xlu0 %v3365, 28
        %v3557 = vpop.permute.xlu0 %3556
        %3558 = vrot.lane.b32.xlu0 %v3375, 28
        %v3559 = vpop.permute.xlu0 %3558
        %3560 = vrot.lane.b32.xlu0 %v3389, 28
        %v3561 = vpop.permute.xlu0 %3560
        %3562 = vrot.lane.b32.xlu0 %v3399, 28
        %v3563 = vpop.permute.xlu0 %3562
        %3564 = vrot.lane.b32.xlu0 %v3413, 28
        %v3565 = vpop.permute.xlu0 %3564
        %3566 = vrot.lane.b32.xlu0 %v3423, 28
        %v3567 = vpop.permute.xlu0 %3566
        %3568 = vrot.lane.b32.xlu0 %v3437, 28
        %v3569 = vpop.permute.xlu0 %3568
        %3570 = vrot.lane.b32.xlu0 %v3447, 28
        %v3571 = vpop.permute.xlu0 %3570
        %3572 = vrot.lane.b32.xlu0 %v3461, 28
        %v3573 = vpop.permute.xlu0 %3572
        %3574 = vrot.lane.b32.xlu0 %v3471, 28
        %v3575 = vpop.permute.xlu0 %3574
        %3576 = vrot.lane.b32.xlu0 %v3485, 28
        %v3577 = vpop.permute.xlu0 %3576
        %3578 = vrot.lane.b32.xlu0 %v3495, 28
        %v3579 = vpop.permute.xlu0 %3578
        %3580 = vrot.lane.b32.xlu0 %v3509, 28
        %v3581 = vpop.permute.xlu0 %3580
        %3582 = vrot.lane.b32.xlu0 %v3519, 28
        %v3583 = vpop.permute.xlu0 %3582
        %vm3616 = vcmask 257248
        %3617 = vst.msk [vmem:[#allocation3] sm:$0xf] %vm3616, %v3521
        %3618 = vst.msk [vmem:[#allocation3 + $0x4] sm:$0xf] %vm3616, %v3523
        %3619 = vst.msk [vmem:[#allocation3 + $0x8] sm:$0xf] %vm3616, %v3525
        %3620 = vst.msk [vmem:[#allocation3 + $0xc] sm:$0xf] %vm3616, %v3527
        %3621 = vst.msk [vmem:[#allocation3 + $0x10] sm:$0xf] %vm3616, %v3529
        %3622 = vst.msk [vmem:[#allocation3 + $0x14] sm:$0xf] %vm3616, %v3531
        %3623 = vst.msk [vmem:[#allocation3 + $0x18] sm:$0xf] %vm3616, %v3533
        %3624 = vst.msk [vmem:[#allocation3 + $0x1c] sm:$0xf] %vm3616, %v3535
        %3625 = vst.msk [vmem:[#allocation3 + $0x20] sm:$0xf] %vm3616, %v3537
        %3626 = vst.msk [vmem:[#allocation3 + $0x24] sm:$0xf] %vm3616, %v3539
        %3627 = vst.msk [vmem:[#allocation3 + $0x28] sm:$0xf] %vm3616, %v3541
        %3628 = vst.msk [vmem:[#allocation3 + $0x2c] sm:$0xf] %vm3616, %v3543
        %3629 = vst.msk [vmem:[#allocation3 + $0x30] sm:$0xf] %vm3616, %v3545
        %3630 = vst.msk [vmem:[#allocation3 + $0x34] sm:$0xf] %vm3616, %v3547
        %3631 = vst.msk [vmem:[#allocation3 + $0x38] sm:$0xf] %vm3616, %v3549
        %3632 = vst.msk [vmem:[#allocation3 + $0x3c] sm:$0xf] %vm3616, %v3551
        %3633 = vst.msk [vmem:[#allocation3 + $0x40] sm:$0xf] %vm3616, %v3553
        %3634 = vst.msk [vmem:[#allocation3 + $0x44] sm:$0xf] %vm3616, %v3555
        %3635 = vst.msk [vmem:[#allocation3 + $0x48] sm:$0xf] %vm3616, %v3557
        %3636 = vst.msk [vmem:[#allocation3 + $0x4c] sm:$0xf] %vm3616, %v3559
        %3637 = vst.msk [vmem:[#allocation3 + $0x50] sm:$0xf] %vm3616, %v3561
        %3638 = vst.msk [vmem:[#allocation3 + $0x54] sm:$0xf] %vm3616, %v3563
        %3639 = vst.msk [vmem:[#allocation3 + $0x58] sm:$0xf] %vm3616, %v3565
        %3640 = vst.msk [vmem:[#allocation3 + $0x5c] sm:$0xf] %vm3616, %v3567
        %3641 = vst.msk [vmem:[#allocation3 + $0x60] sm:$0xf] %vm3616, %v3569
        %3642 = vst.msk [vmem:[#allocation3 + $0x64] sm:$0xf] %vm3616, %v3571
        %3643 = vst.msk [vmem:[#allocation3 + $0x68] sm:$0xf] %vm3616, %v3573
        %3644 = vst.msk [vmem:[#allocation3 + $0x6c] sm:$0xf] %vm3616, %v3575
        %3645 = vst.msk [vmem:[#allocation3 + $0x70] sm:$0xf] %vm3616, %v3577
        %3646 = vst.msk [vmem:[#allocation3 + $0x74] sm:$0xf] %vm3616, %v3579
        %3647 = vst.msk [vmem:[#allocation3 + $0x78] sm:$0xf] %vm3616, %v3581
        %3648 = vst.msk [vmem:[#allocation3 + $0x7c] sm:$0xf] %vm3616, %v3583
        %v3649 = vld [vmem:[%s716] sm:$0xe]
        %v3650 = vld [vmem:[%s716 + $0x4] sm:$0xf]
        %v3651 = vld [vmem:[%s716 + $0x8] sm:$0x1]
        %v3652 = vld [vmem:[%s716 + $0xc] sm:$0xe]
        %v3653 = vld [vmem:[%s716 + $0x10] sm:$0xf]
        %v3654 = vld [vmem:[%s716 + $0x14] sm:$0x1]
        %v3655 = vld [vmem:[%s716 + $0x18] sm:$0xe]
        %v3656 = vld [vmem:[%s716 + $0x1c] sm:$0xf]
        %v3657 = vld [vmem:[%s716 + $0x20] sm:$0x1]
        %v3658 = vld [vmem:[%s716 + $0x24] sm:$0xe]
        %v3659 = vld [vmem:[%s716 + $0x28] sm:$0xf]
        %v3660 = vld [vmem:[%s716 + $0x2c] sm:$0x1]
        %v3661 = vld [vmem:[%s716 + $0x30] sm:$0xe]
        %v3662 = vld [vmem:[%s716 + $0x34] sm:$0xf]
        %v3663 = vld [vmem:[%s716 + $0x38] sm:$0x1]
        %v3664 = vld [vmem:[%s716 + $0x3c] sm:$0xe]
        %v3665 = vld [vmem:[%s716 + $0x40] sm:$0xf]
        %v3666 = vld [vmem:[%s716 + $0x44] sm:$0x1]
        %v3667 = vld [vmem:[%s716 + $0x48] sm:$0xe]
        %v3668 = vld [vmem:[%s716 + $0x4c] sm:$0xf]
        %v3669 = vld [vmem:[%s716 + $0x50] sm:$0x1]
        %v3670 = vld [vmem:[%s716 + $0x54] sm:$0xe]
        %v3671 = vld [vmem:[%s716 + $0x58] sm:$0xf]
        %v3672 = vld [vmem:[%s716 + $0x5c] sm:$0x1]
        %v3673 = vld [vmem:[%s716 + $0x60] sm:$0xe]
        %v3674 = vld [vmem:[%s716 + $0x64] sm:$0xf]
        %v3675 = vld [vmem:[%s716 + $0x68] sm:$0x1]
        %v3676 = vld [vmem:[%s716 + $0x6c] sm:$0xe]
        %v3677 = vld [vmem:[%s716 + $0x70] sm:$0xf]
        %v3678 = vld [vmem:[%s716 + $0x74] sm:$0x1]
        %v3679 = vld [vmem:[%s716 + $0x78] sm:$0xe]
        %v3680 = vld [vmem:[%s716 + $0x7c] sm:$0xf]
        %v3681 = vld [vmem:[%s716 + $0x80] sm:$0x1]
        %v3682 = vld [vmem:[%s716 + $0x84] sm:$0xe]
        %v3683 = vld [vmem:[%s716 + $0x88] sm:$0xf]
        %v3684 = vld [vmem:[%s716 + $0x8c] sm:$0x1]
        %v3685 = vld [vmem:[%s716 + $0x90] sm:$0xe]
        %v3686 = vld [vmem:[%s716 + $0x94] sm:$0xf]
        %v3687 = vld [vmem:[%s716 + $0x98] sm:$0x1]
        %v3688 = vld [vmem:[%s716 + $0x9c] sm:$0xe]
        %v3689 = vld [vmem:[%s716 + $0xa0] sm:$0xf]
        %v3690 = vld [vmem:[%s716 + $0xa4] sm:$0x1]
        %v3691 = vld [vmem:[%s716 + $0xa8] sm:$0xe]
        %v3692 = vld [vmem:[%s716 + $0xac] sm:$0xf]
        %v3693 = vld [vmem:[%s716 + $0xb0] sm:$0x1]
        %v3694 = vld [vmem:[%s716 + $0xb4] sm:$0xe]
        %v3695 = vld [vmem:[%s716 + $0xb8] sm:$0xf]
        %v3696 = vld [vmem:[%s716 + $0xbc] sm:$0x1]
        %v3745 = vrot.slane %v3649, 5
        %v3746 = vrot.slane %v3745, 4
        %v3747 = vrot.slane %v3650, 5
        %v3748 = vsel %vm1561, %v3746, %v3747
        %v3749 = vrot.slane %v3747, 4
        %v3750 = vrot.slane %v3651, 5
        %v3751 = vsel %vm1561, %v3749, %v3750
        %v3752 = vrot.slane %v3652, 5
        %v3753 = vrot.slane %v3752, 4
        %v3754 = vrot.slane %v3653, 5
        %v3755 = vsel %vm1561, %v3753, %v3754
        %v3756 = vrot.slane %v3754, 4
        %v3757 = vrot.slane %v3654, 5
        %v3758 = vsel %vm1561, %v3756, %v3757
        %v3759 = vrot.slane %v3655, 5
        %v3760 = vrot.slane %v3759, 4
        %v3761 = vrot.slane %v3656, 5
        %v3762 = vsel %vm1561, %v3760, %v3761
        %v3763 = vrot.slane %v3761, 4
        %v3764 = vrot.slane %v3657, 5
        %v3765 = vsel %vm1561, %v3763, %v3764
        %v3766 = vrot.slane %v3658, 5
        %v3767 = vrot.slane %v3766, 4
        %v3768 = vrot.slane %v3659, 5
        %v3769 = vsel %vm1561, %v3767, %v3768
        %v3770 = vrot.slane %v3768, 4
        %v3771 = vrot.slane %v3660, 5
        %v3772 = vsel %vm1561, %v3770, %v3771
        %v3773 = vrot.slane %v3661, 5
        %v3774 = vrot.slane %v3773, 4
        %v3775 = vrot.slane %v3662, 5
        %v3776 = vsel %vm1561, %v3774, %v3775
        %v3777 = vrot.slane %v3775, 4
        %v3778 = vrot.slane %v3663, 5
        %v3779 = vsel %vm1561, %v3777, %v3778
        %v3780 = vrot.slane %v3664, 5
        %v3781 = vrot.slane %v3780, 4
        %v3782 = vrot.slane %v3665, 5
        %v3783 = vsel %vm1561, %v3781, %v3782
        %v3784 = vrot.slane %v3782, 4
        %v3785 = vrot.slane %v3666, 5
        %v3786 = vsel %vm1561, %v3784, %v3785
        %v3787 = vrot.slane %v3667, 5
        %v3788 = vrot.slane %v3787, 4
        %v3789 = vrot.slane %v3668, 5
        %v3790 = vsel %vm1561, %v3788, %v3789
        %v3791 = vrot.slane %v3789, 4
        %v3792 = vrot.slane %v3669, 5
        %v3793 = vsel %vm1561, %v3791, %v3792
        %v3794 = vrot.slane %v3670, 5
        %v3795 = vrot.slane %v3794, 4
        %v3796 = vrot.slane %v3671, 5
        %v3797 = vsel %vm1561, %v3795, %v3796
        %v3798 = vrot.slane %v3796, 4
        %v3799 = vrot.slane %v3672, 5
        %v3800 = vsel %vm1561, %v3798, %v3799
        %v3801 = vrot.slane %v3673, 5
        %v3802 = vrot.slane %v3801, 4
        %v3803 = vrot.slane %v3674, 5
        %v3804 = vsel %vm1561, %v3802, %v3803
        %v3805 = vrot.slane %v3803, 4
        %v3806 = vrot.slane %v3675, 5
        %v3807 = vsel %vm1561, %v3805, %v3806
        %v3808 = vrot.slane %v3676, 5
        %v3809 = vrot.slane %v3808, 4
        %v3810 = vrot.slane %v3677, 5
        %v3811 = vsel %vm1561, %v3809, %v3810
        %v3812 = vrot.slane %v3810, 4
        %v3813 = vrot.slane %v3678, 5
        %v3814 = vsel %vm1561, %v3812, %v3813
        %v3815 = vrot.slane %v3679, 5
        %v3816 = vrot.slane %v3815, 4
        %v3817 = vrot.slane %v3680, 5
        %v3818 = vsel %vm1561, %v3816, %v3817
        %v3819 = vrot.slane %v3817, 4
        %v3820 = vrot.slane %v3681, 5
        %v3821 = vsel %vm1561, %v3819, %v3820
        %v3822 = vrot.slane %v3682, 5
        %v3823 = vrot.slane %v3822, 4
        %v3824 = vrot.slane %v3683, 5
        %v3825 = vsel %vm1561, %v3823, %v3824
        %v3826 = vrot.slane %v3824, 4
        %v3827 = vrot.slane %v3684, 5
        %v3828 = vsel %vm1561, %v3826, %v3827
        %v3829 = vrot.slane %v3685, 5
        %v3830 = vrot.slane %v3829, 4
        %v3831 = vrot.slane %v3686, 5
        %v3832 = vsel %vm1561, %v3830, %v3831
        %v3833 = vrot.slane %v3831, 4
        %v3834 = vrot.slane %v3687, 5
        %v3835 = vsel %vm1561, %v3833, %v3834
        %v3836 = vrot.slane %v3688, 5
        %v3837 = vrot.slane %v3836, 4
        %v3838 = vrot.slane %v3689, 5
        %v3839 = vsel %vm1561, %v3837, %v3838
        %v3840 = vrot.slane %v3838, 4
        %v3841 = vrot.slane %v3690, 5
        %v3842 = vsel %vm1561, %v3840, %v3841
        %v3843 = vrot.slane %v3691, 5
        %v3844 = vrot.slane %v3843, 4
        %v3845 = vrot.slane %v3692, 5
        %v3846 = vsel %vm1561, %v3844, %v3845
        %v3847 = vrot.slane %v3845, 4
        %v3848 = vrot.slane %v3693, 5
        %v3849 = vsel %vm1561, %v3847, %v3848
        %v3850 = vrot.slane %v3694, 5
        %v3851 = vrot.slane %v3850, 4
        %v3852 = vrot.slane %v3695, 5
        %v3853 = vsel %vm1561, %v3851, %v3852
        %v3854 = vrot.slane %v3852, 4
        %v3855 = vrot.slane %v3696, 5
        %v3856 = vsel %vm1561, %v3854, %v3855
        %3857 = vrot.lane.b32.xlu0 %v3748, 32
        %v3858 = vpop.permute.xlu0 %3857
        %3859 = vrot.lane.b32.xlu0 %v3751, 32
        %v3860 = vpop.permute.xlu0 %3859
        %3861 = vrot.lane.b32.xlu0 %v3755, 32
        %v3862 = vpop.permute.xlu0 %3861
        %3863 = vrot.lane.b32.xlu0 %v3758, 32
        %v3864 = vpop.permute.xlu0 %3863
        %3865 = vrot.lane.b32.xlu0 %v3762, 32
        %v3866 = vpop.permute.xlu0 %3865
        %3867 = vrot.lane.b32.xlu0 %v3765, 32
        %v3868 = vpop.permute.xlu0 %3867
        %3869 = vrot.lane.b32.xlu0 %v3769, 32
        %v3870 = vpop.permute.xlu0 %3869
        %3871 = vrot.lane.b32.xlu0 %v3772, 32
        %v3872 = vpop.permute.xlu0 %3871
        %3873 = vrot.lane.b32.xlu0 %v3776, 32
        %v3874 = vpop.permute.xlu0 %3873
        %3875 = vrot.lane.b32.xlu0 %v3779, 32
        %v3876 = vpop.permute.xlu0 %3875
        %3877 = vrot.lane.b32.xlu0 %v3783, 32
        %v3878 = vpop.permute.xlu0 %3877
        %3879 = vrot.lane.b32.xlu0 %v3786, 32
        %v3880 = vpop.permute.xlu0 %3879
        %3881 = vrot.lane.b32.xlu0 %v3790, 32
        %v3882 = vpop.permute.xlu0 %3881
        %3883 = vrot.lane.b32.xlu0 %v3793, 32
        %v3884 = vpop.permute.xlu0 %3883
        %3885 = vrot.lane.b32.xlu0 %v3797, 32
        %v3886 = vpop.permute.xlu0 %3885
        %3887 = vrot.lane.b32.xlu0 %v3800, 32
        %v3888 = vpop.permute.xlu0 %3887
        %3889 = vrot.lane.b32.xlu0 %v3804, 32
        %v3890 = vpop.permute.xlu0 %3889
        %3891 = vrot.lane.b32.xlu0 %v3807, 32
        %v3892 = vpop.permute.xlu0 %3891
        %3893 = vrot.lane.b32.xlu0 %v3811, 32
        %v3894 = vpop.permute.xlu0 %3893
        %3895 = vrot.lane.b32.xlu0 %v3814, 32
        %v3896 = vpop.permute.xlu0 %3895
        %3897 = vrot.lane.b32.xlu0 %v3818, 32
        %v3898 = vpop.permute.xlu0 %3897
        %3899 = vrot.lane.b32.xlu0 %v3821, 32
        %v3900 = vpop.permute.xlu0 %3899
        %3901 = vrot.lane.b32.xlu0 %v3825, 32
        %v3902 = vpop.permute.xlu0 %3901
        %3903 = vrot.lane.b32.xlu0 %v3828, 32
        %v3904 = vpop.permute.xlu0 %3903
        %3905 = vrot.lane.b32.xlu0 %v3832, 32
        %v3906 = vpop.permute.xlu0 %3905
        %3907 = vrot.lane.b32.xlu0 %v3835, 32
        %v3908 = vpop.permute.xlu0 %3907
        %3909 = vrot.lane.b32.xlu0 %v3839, 32
        %v3910 = vpop.permute.xlu0 %3909
        %3911 = vrot.lane.b32.xlu0 %v3842, 32
        %v3912 = vpop.permute.xlu0 %3911
        %3913 = vrot.lane.b32.xlu0 %v3846, 32
        %v3914 = vpop.permute.xlu0 %3913
        %3915 = vrot.lane.b32.xlu0 %v3849, 32
        %v3916 = vpop.permute.xlu0 %3915
        %3917 = vrot.lane.b32.xlu0 %v3853, 32
        %v3918 = vpop.permute.xlu0 %3917
        %3919 = vrot.lane.b32.xlu0 %v3856, 32
        %v3920 = vpop.permute.xlu0 %3919
        %vm3953 = vcmask 290048
        %3954 = vst.msk [vmem:[#allocation3] sm:$0xf] %vm3953, %v3858
        %3955 = vst.msk [vmem:[#allocation3 + $0x4] sm:$0xf] %vm3953, %v3860
        %3956 = vst.msk [vmem:[#allocation3 + $0x8] sm:$0xf] %vm3953, %v3862
        %3957 = vst.msk [vmem:[#allocation3 + $0xc] sm:$0xf] %vm3953, %v3864
        %3958 = vst.msk [vmem:[#allocation3 + $0x10] sm:$0xf] %vm3953, %v3866
        %3959 = vst.msk [vmem:[#allocation3 + $0x14] sm:$0xf] %vm3953, %v3868
        %3960 = vst.msk [vmem:[#allocation3 + $0x18] sm:$0xf] %vm3953, %v3870
        %3961 = vst.msk [vmem:[#allocation3 + $0x1c] sm:$0xf] %vm3953, %v3872
        %3962 = vst.msk [vmem:[#allocation3 + $0x20] sm:$0xf] %vm3953, %v3874
        %3963 = vst.msk [vmem:[#allocation3 + $0x24] sm:$0xf] %vm3953, %v3876
        %3964 = vst.msk [vmem:[#allocation3 + $0x28] sm:$0xf] %vm3953, %v3878
        %3965 = vst.msk [vmem:[#allocation3 + $0x2c] sm:$0xf] %vm3953, %v3880
        %3966 = vst.msk [vmem:[#allocation3 + $0x30] sm:$0xf] %vm3953, %v3882
        %3967 = vst.msk [vmem:[#allocation3 + $0x34] sm:$0xf] %vm3953, %v3884
        %3968 = vst.msk [vmem:[#allocation3 + $0x38] sm:$0xf] %vm3953, %v3886
        %3969 = vst.msk [vmem:[#allocation3 + $0x3c] sm:$0xf] %vm3953, %v3888
        %3970 = vst.msk [vmem:[#allocation3 + $0x40] sm:$0xf] %vm3953, %v3890
        %3971 = vst.msk [vmem:[#allocation3 + $0x44] sm:$0xf] %vm3953, %v3892
        %3972 = vst.msk [vmem:[#allocation3 + $0x48] sm:$0xf] %vm3953, %v3894
        %3973 = vst.msk [vmem:[#allocation3 + $0x4c] sm:$0xf] %vm3953, %v3896
        %3974 = vst.msk [vmem:[#allocation3 + $0x50] sm:$0xf] %vm3953, %v3898
        %3975 = vst.msk [vmem:[#allocation3 + $0x54] sm:$0xf] %vm3953, %v3900
        %3976 = vst.msk [vmem:[#allocation3 + $0x58] sm:$0xf] %vm3953, %v3902
        %3977 = vst.msk [vmem:[#allocation3 + $0x5c] sm:$0xf] %vm3953, %v3904
        %3978 = vst.msk [vmem:[#allocation3 + $0x60] sm:$0xf] %vm3953, %v3906
        %3979 = vst.msk [vmem:[#allocation3 + $0x64] sm:$0xf] %vm3953, %v3908
        %3980 = vst.msk [vmem:[#allocation3 + $0x68] sm:$0xf] %vm3953, %v3910
        %3981 = vst.msk [vmem:[#allocation3 + $0x6c] sm:$0xf] %vm3953, %v3912
        %3982 = vst.msk [vmem:[#allocation3 + $0x70] sm:$0xf] %vm3953, %v3914
        %3983 = vst.msk [vmem:[#allocation3 + $0x74] sm:$0xf] %vm3953, %v3916
        %3984 = vst.msk [vmem:[#allocation3 + $0x78] sm:$0xf] %vm3953, %v3918
        %3985 = vst.msk [vmem:[#allocation3 + $0x7c] sm:$0xf] %vm3953, %v3920
        %v3986 = vld [vmem:[%s240] sm:$0xf]
        %v3987 = vld [vmem:[#allocation3] sm:$0xf]
        %v3988 = vld [vmem:[#allocation3 + $0x4] sm:$0xf]
        %v3989 = vld [vmem:[#allocation3 + $0x8] sm:$0xf]
        %v3990 = vld [vmem:[#allocation3 + $0xc] sm:$0xf]
        %v3991 = vld [vmem:[#allocation3 + $0x10] sm:$0xf]
        %v3992 = vld [vmem:[#allocation3 + $0x14] sm:$0xf]
        %v3993 = vld [vmem:[#allocation3 + $0x18] sm:$0xf]
        %v3994 = vld [vmem:[#allocation3 + $0x1c] sm:$0xf]
        %v3995 = vld [vmem:[#allocation3 + $0x20] sm:$0xf]
        %v3996 = vld [vmem:[#allocation3 + $0x24] sm:$0xf]
        %v3997 = vld [vmem:[#allocation3 + $0x28] sm:$0xf]
        %v3998 = vld [vmem:[#allocation3 + $0x2c] sm:$0xf]
        %v3999 = vld [vmem:[#allocation3 + $0x30] sm:$0xf]
        %v4000 = vld [vmem:[#allocation3 + $0x34] sm:$0xf]
        %v4001 = vld [vmem:[#allocation3 + $0x38] sm:$0xf]
        %v4002 = vld [vmem:[#allocation3 + $0x3c] sm:$0xf]
        %v4003 = vld [vmem:[#allocation3 + $0x40] sm:$0xf]
        %v4004 = vld [vmem:[#allocation3 + $0x44] sm:$0xf]
        %v4005 = vld [vmem:[#allocation3 + $0x48] sm:$0xf]
        %v4006 = vld [vmem:[#allocation3 + $0x4c] sm:$0xf]
        %v4007 = vld [vmem:[#allocation3 + $0x50] sm:$0xf]
        %v4008 = vld [vmem:[#allocation3 + $0x54] sm:$0xf]
        %v4009 = vld [vmem:[#allocation3 + $0x58] sm:$0xf]
        %v4010 = vld [vmem:[#allocation3 + $0x5c] sm:$0xf]
        %v4011 = vld [vmem:[#allocation3 + $0x60] sm:$0xf]
        %v4012 = vld [vmem:[#allocation3 + $0x64] sm:$0xf]
        %v4013 = vld [vmem:[#allocation3 + $0x68] sm:$0xf]
        %v4014 = vld [vmem:[#allocation3 + $0x6c] sm:$0xf]
        %v4015 = vld [vmem:[#allocation3 + $0x70] sm:$0xf]
        %v4016 = vld [vmem:[#allocation3 + $0x74] sm:$0xf]
        %v4017 = vld [vmem:[#allocation3 + $0x78] sm:$0xf]
        %v4018 = vld [vmem:[#allocation3 + $0x7c] sm:$0xf]
        %v4019 = vld [vmem:[%s244] sm:$0xff]
        %4021 = vset.pattern.permute.xlu0 0
        %4022 = vperm.xlu0 %4021, %v4019
        %v4023 = vpop.permute.xlu0 %4022
        %v4057 = vunpack.c.l.b16 %v3987
        %v4058 = vunpack.c.l.b16 %v3988
        %v4059 = vunpack.c.l.b16 %v3989
        %v4060 = vunpack.c.l.b16 %v3990
        %v4061 = vunpack.c.l.b16 %v3991
        %v4062 = vunpack.c.l.b16 %v3992
        %v4063 = vunpack.c.l.b16 %v3993
        %v4064 = vunpack.c.l.b16 %v3994
        %v4065 = vunpack.c.l.b16 %v3995
        %v4066 = vunpack.c.l.b16 %v3996
        %v4067 = vunpack.c.l.b16 %v3997
        %v4068 = vunpack.c.l.b16 %v3998
        %v4069 = vunpack.c.l.b16 %v3999
        %v4070 = vunpack.c.l.b16 %v4000
        %v4071 = vunpack.c.l.b16 %v4001
        %v4072 = vunpack.c.l.b16 %v4002
        %v4073 = vunpack.c.l.b16 %v4003
        %v4074 = vunpack.c.l.b16 %v4004
        %v4075 = vunpack.c.l.b16 %v4005
        %v4076 = vunpack.c.l.b16 %v4006
        %v4077 = vunpack.c.l.b16 %v4007
        %v4078 = vunpack.c.l.b16 %v4008
        %v4079 = vunpack.c.l.b16 %v4009
        %v4080 = vunpack.c.l.b16 %v4010
        %v4081 = vunpack.c.l.b16 %v4011
        %v4082 = vunpack.c.l.b16 %v4012
        %v4083 = vunpack.c.l.b16 %v4013
        %v4084 = vunpack.c.l.b16 %v4014
        %v4085 = vunpack.c.l.b16 %v4015
        %v4086 = vunpack.c.l.b16 %v4016
        %v4087 = vunpack.c.l.b16 %v4017
        %v4088 = vunpack.c.l.b16 %v4018
        %v4089 = vpack.c.b16 %v4058, %v4057
        %v4090 = vpack.c.b16 %v4060, %v4059
        %v4091 = vpack.c.b16 %v4062, %v4061
        %v4092 = vpack.c.b16 %v4064, %v4063
        %v4093 = vpack.c.b16 %v4066, %v4065
        %v4094 = vpack.c.b16 %v4068, %v4067
        %v4095 = vpack.c.b16 %v4070, %v4069
        %v4096 = vpack.c.b16 %v4072, %v4071
        %v4097 = vpack.c.b16 %v4074, %v4073
        %v4098 = vpack.c.b16 %v4076, %v4075
        %v4099 = vpack.c.b16 %v4078, %v4077
        %v4100 = vpack.c.b16 %v4080, %v4079
        %v4101 = vpack.c.b16 %v4082, %v4081
        %v4102 = vpack.c.b16 %v4084, %v4083
        %v4103 = vpack.c.b16 %v4086, %v4085
        %v4104 = vpack.c.b16 %v4088, %v4087
        %vm4105 = vcmask 293888
        %v4107 = vsel %vm4105, %v3986, 0
        %v4110 = vsel %vm4105, %v4089, 0
        %v4113 = vsel %vm4105, %v4090, 0
        %v4116 = vsel %vm4105, %v4091, 0
        %v4119 = vsel %vm4105, %v4092, 0
        %v4122 = vsel %vm4105, %v4093, 0
        %v4125 = vsel %vm4105, %v4094, 0
        %v4128 = vsel %vm4105, %v4095, 0
        %v4131 = vsel %vm4105, %v4096, 0
        %v4134 = vsel %vm4105, %v4097, 0
        %v4137 = vsel %vm4105, %v4098, 0
        %v4140 = vsel %vm4105, %v4099, 0
        %v4143 = vsel %vm4105, %v4100, 0
        %v4146 = vsel %vm4105, %v4101, 0
        %v4149 = vsel %vm4105, %v4102, 0
        %v4152 = vsel %vm4105, %v4103, 0
        %v4155 = vsel %vm4105, %v4104, 0
        %4157 = vmatprep.subr.bf16.mxu0 0
        %4158 = vmatpush1.bf16.xpose.msra.mxu0 %v4131
        %4159 = vmatprep.subr.bf16.mxu0 0
        %4160 = vmatpush1.bf16.xpose.msra.mxu0 %v4128
        %4161 = vmatprep.subr.bf16.mxu0 0
        %4162 = vmatpush1.bf16.xpose.msra.mxu0 %v4125
        %4163 = vmatprep.subr.bf16.mxu0 0
        %4164 = vmatpush1.bf16.xpose.msra.mxu0 %v4122
        %4165 = vmatprep.subr.bf16.mxu0 0
        %4166 = vmatpush1.bf16.xpose.msra.mxu0 %v4119
        %4167 = vmatprep.subr.bf16.mxu0 0
        %4168 = vmatpush1.bf16.xpose.msra.mxu0 %v4116
        %4169 = vmatprep.subr.bf16.mxu0 0
        %4170 = vmatpush1.bf16.xpose.msra.mxu0 %v4113
        %4171 = vmatprep.subr.bf16.mxu0 0
        %4172 = vmatpush1.bf16.xpose.msra.mxu0 %v4110
        %4173 = vmatprep.subr.bf16.mxu0 0
        %4174 = vmatpush2.bf16.xpose.msra.mxu0 %v4155
        %4175 = vmatprep.subr.bf16.mxu0 0
        %4176 = vmatpush2.bf16.xpose.msra.mxu0 %v4152
        %4177 = vmatprep.subr.bf16.mxu0 0
        %4178 = vmatpush2.bf16.xpose.msra.mxu0 %v4149
        %4179 = vmatprep.subr.bf16.mxu0 0
        %4180 = vmatpush2.bf16.xpose.msra.mxu0 %v4146
        %4181 = vmatprep.subr.bf16.mxu0 0
        %4182 = vmatpush2.bf16.xpose.msra.mxu0 %v4143
        %4183 = vmatprep.subr.bf16.mxu0 0
        %4184 = vmatpush2.bf16.xpose.msra.mxu0 %v4140
        %4185 = vmatprep.subr.bf16.mxu0 0
        %4186 = vmatpush2.bf16.xpose.msra.mxu0 %v4137
        %4187 = vmatprep.subr.bf16.mxu0 0
        %4188 = vmatpush2.bf16.xpose.msra.mxu0 %v4134
        %4189 = vmatprep.mubr.bf16.mxu0 0
        %4190 = vmatmul.mubr.bf16.gmra.mxu0 %v4107
        %v4191 = vpop.f32.mrf.mxu0
        %v4192 = vadd.f32 %v4023, %v4191
        %v4193 = vpop.f32.mrf.mxu0
        %v4194 = vadd.f32 %v4023, %v4193
        %v4195 = vpop.f32.mrf.mxu0
        %v4196 = vpop.f32.mrf.mxu0
        %4197 = vdwg.mxu0
        %4198 = vst [vmem:[%s225] sm:$0xff] %v4192
        %4199 = vst [vmem:[%s225 + $0x8] sm:$0xff] %v4194
        %s4200 = sand.u32 %s128, 1
        %s4201 = scalar_lea.sflag [#allocation5], %s4200
        %s4202 = sand.u32 %s128, 1
        %s4203 = smul.addr %s4202, 16
        %s4204 = scalar_lea.vmem [#allocation4], %s4203
        // Predicated region
        $region37: #{tpu_custom_call.1} parent=31 // pred_check
          %p4205 = pneg %p138
        $region38: #{tpu_custom_call.1} parent=31 // pred_check_branch
          %4207 = sbr.rel (%p4205) target = $region40
        $region39: #{tpu_custom_call.1} parent=31 // pred_region
          %s4208 = smul.u32 2, %s24
          %s4210 = ssub.s32 256, 256
          %4211 = vsyncadd %s4201, %s4210
          %s4212 = smul.addr %s23, 2
          %s4213 = sadd.s32 %s4208, %s4212
          %s4214 = smul.addr %s22, 2
          %s4215 = sadd.s32 %s4213, %s4214
          %s4216 = smul.addr %s4215, 128
          %s4217 = scalar_lea.hbm %s3, %s4216
          %s4219 = sshll.u32 %s4204, 4
          %s4220 = int_to_ptr.vmem [resolvable:$true] %s4219
          %4222 = dma.vmem_to_hbm [thread:$0]  %s4220, 256, %s4217, %s4201
        $region40: #{tpu_custom_call.1} parent=31 // pred_fallthru
          _
      $region32: #{tpu_custom_call.1} parent=5 // pred_fallthru
        _
      %p4223 = scmp.le.s32.totalorder 2, %s12
      // Predicated region
      $region41: #{tpu_custom_call.1} parent=5 // pred_check
        %p4224 = pneg %p4223
      $region42: #{tpu_custom_call.1} parent=5 // pred_check_branch
        %4226 = sbr.rel (%p4224) target = $region44
      $region43: #{tpu_custom_call.1} parent=5 // pred_region
        %s4227 = ssub.s32 %s12, 2
        // Predicated region
        $region45: #{tpu_custom_call.1} parent=43 // pred_check
          %p4228 = pneg %p144
        $region46: #{tpu_custom_call.1} parent=43 // pred_check_branch
          %4230 = sbr.rel (%p4228) target = $region48
        $region47: #{tpu_custom_call.1} parent=43 // pred_region
          %s4231 = sand.u32 %s129, 1
          %s4232 = scalar_lea.sflag [#allocation5], %s4231
          %s4233 = sand.u32 %s129, 1
          %s4234 = smul.addr %s4233, 16
          %s4235 = scalar_lea.vmem [#allocation4], %s4234
          %4236 = dma.done %s4232, 256
        $region48: #{tpu_custom_call.1} parent=43 // pred_fallthru
          _
      $region44: #{tpu_custom_call.1} parent=5 // pred_fallthru
        _
    $region6: #{tpu_custom_call.1} parent=1 // loop_footer
      %s16 = sadd.s32 1, %s12
    $region7: #{tpu_custom_call.1} parent=1 // loop_footer_branch
      %11 = sbr.rel target = $region3
    $region8: #{tpu_custom_call.1} parent=1 // loop_exit
      _
    %4237 = vsyncpa [#allocation5], 1
    %s4238 = scalar_lea.sflag [#allocation5], 1
    %4239 = vsyncpa %s4238, 1

</llo_original>
